<compile_context>
chip_gen: v7x
topology: tpu7x:2x2x1
jax: 0.10.0
libtpu: 0.0.40
codegen_flags: <defaults>
</compile_context>

<pallas_src>
import functools

import numpy as np
import jax
import jax.numpy as jnp
from jax import lax
from jax.experimental import pallas as pl
from jax.experimental.pallas import tpu as pltpu


def _round_up(v, m):
    return (v + m - 1) // m * m


def _pair(v):
    if isinstance(v, (tuple, list)):
        return (int(v[0]), int(v[1]))
    return (int(v), int(v))


def _pick_tile(dim, cap=512):
    """Largest MXU-friendly tile (multiple of 128, <= cap) minimizing padding."""
    best_t, best_pad = 128, _round_up(max(dim, 1), 128)
    for t in (512, 256, 128):
        if t > cap:
            continue
        p = _round_up(max(dim, 1), t)
        if p < best_pad or (p == best_pad and t > best_t):
            best_t, best_pad = t, p
    return best_t, best_pad


def _pick_mtile(M, sub32bit):
    """Row (M) tile: as large as padding waste allows; sublane-pack aware."""
    base = 16 if sub32bit else 8           # bf16 vregs pack (16, 128)
    for t in (1024, 512, 256, 128):
        if M % t == 0 or M > 4 * t:
            return t
    return _round_up(max(M, 1), base)


# --------------------------------------------------------------------------- #
# Pallas kernel: one (tm, tn) output tile, accumulated over the K grid axis.
# Grid is (G, N/tn, M/tm, K/tk); K (axis 3) innermost ("arbitrary").
# pl.program_id is only evaluated at the top level of the body (never inside
# pl.when branches) — required for interpret-mode / lowering robustness.
# --------------------------------------------------------------------------- #
def _conv_gemm_kernel(*refs, precision, tk, num_k, resident_w, has_bias):
    if has_bias:
        x_ref, w_ref, b_ref, o_ref, acc_ref = refs
    else:
        x_ref, w_ref, o_ref, acc_ref = refs
        b_ref = None

    def _write_out(acc_f32):
        if has_bias:
            acc_f32 = acc_f32 + b_ref[...].astype(jnp.float32)  # (1, tn) bcast
        o_ref[...] = acc_f32.astype(o_ref.dtype)

    if num_k == 1:
        # Single K step: no accumulator round-trip, no program_id needed.
        _write_out(jnp.dot(x_ref[...], w_ref[...],
                           preferred_element_type=jnp.float32,
                           precision=precision))
        return

    k = pl.program_id(3)

    @pl.when(k == 0)
    def _init():
        acc_ref[...] = jnp.zeros_like(acc_ref)

    if resident_w:
        # Resident (Kgp, tn) weight slab: slice the current K block in VMEM.
        w_blk = w_ref[pl.ds(k * tk, tk), :]
    else:
        w_blk = w_ref[...]                                      # streamed block

    acc_ref[...] += jnp.dot(x_ref[...], w_blk,
                            preferred_element_type=jnp.float32,
                            precision=precision)

    @pl.when(k == num_k - 1)
    def _finalize():
        _write_out(acc_ref[...])


_VMEM_RESIDENT_BUDGET = 34 * 1024 * 1024   # total pipeline bytes allowed for residency
_VMEM_LIMIT_CAP = 44 * 1024 * 1024         # headroom below v7x's 64 MiB physical VMEM


def _grouped_gemm(patches, w_packed, b_packed, out_dtype, *, tm, tk, tn, precision):
    """patches: (Mp, G, Kgp);  w_packed: (G, Kgp, Np);  b_packed: (G, 1, Np) | None."""
    Mp, G, Kgp = patches.shape
    Np = w_packed.shape[-1]
    nk = Kgp // tk
    cs = patches.dtype.itemsize
    osz = np.dtype(out_dtype).itemsize

    # VMEM budget: double-buffered pipeline blocks + f32 accumulator scratch.
    base_bytes = 2 * tm * tk * cs + 2 * tm * tn * osz + tm * tn * 4
    if b_packed is not None:
        base_bytes += 2 * tn * 4
    resident_bytes = 2 * Kgp * tn * cs
    resident_w = (base_bytes + resident_bytes) <= _VMEM_RESIDENT_BUDGET
    total_bytes = base_bytes + (resident_bytes if resident_w else 2 * tk * tn * cs)
    vmem_limit = int(min(_VMEM_LIMIT_CAP, max(total_bytes + (8 << 20), 32 << 20)))

    # Grid (group, n-tile, m-tile, k-step): with the m sweep inside the n sweep,
    # the per-(g, n) resident weight slab is DMA'd once and reused for all m.
    grid = (G, Np // tn, Mp // tm, nk)

    x_spec = pl.BlockSpec((tm, None, tk), lambda g, j, i, k: (i, g, k))
    if resident_w:
        w_spec = pl.BlockSpec((None, Kgp, tn), lambda g, j, i, k: (g, 0, j))
    else:
        w_spec = pl.BlockSpec((None, tk, tn), lambda g, j, i, k: (g, k, j))
    o_spec = pl.BlockSpec((tm, None, tn), lambda g, j, i, k: (i, g, j))

    in_specs = [x_spec, w_spec]
    operands = [patches, w_packed]
    if b_packed is not None:
        in_specs.append(pl.BlockSpec((None, 1, tn), lambda g, j, i, k: (g, 0, j)))
        operands.append(b_packed)

    kernel = functools.partial(
        _conv_gemm_kernel, precision=precision, tk=tk, num_k=nk,
        resident_w=resident_w, has_bias=b_packed is not None)

    cost = pl.CostEstimate(
        flops=2 * Mp * G * Kgp * Np,
        transcendentals=0,
        bytes_accessed=(Mp * G * Kgp * cs * (Np // tn)
                        + G * Kgp * Np * cs * (1 if resident_w else Mp // tm)
                        + Mp * G * Np * osz))

    return pl.pallas_call(
        kernel,
        out_shape=jax.ShapeDtypeStruct((Mp, G, Np), out_dtype),
        grid_spec=pltpu.PrefetchScalarGridSpec(
            num_scalar_prefetch=0,
            grid=grid,
            in_specs=in_specs,
            out_specs=o_spec,
            scratch_shapes=[pltpu.VMEM((tm, tn), jnp.float32)],
        ),
        compiler_params=pltpu.CompilerParams(
            dimension_semantics=("parallel", "parallel", "parallel", "arbitrary"),
            vmem_limit_bytes=vmem_limit,
        ),
        cost_estimate=cost,
    )(*operands)


# --------------------------------------------------------------------------- #
# Forward (jitted): single-pass im2col glue + grouped Pallas GEMM.
# --------------------------------------------------------------------------- #
def _ipex_conv2d_forward_pallas(x, w_packed, b_packed, *, kernel_size, stride,
                                padding, dilation, groups, in_channels,
                                out_channels, kg, kgp, tk, tn, compute_dtype,
                                precision, channels_last_output):
    B, Cin, H, W = x.shape
    assert Cin == in_channels, f"expected {in_channels} input channels, got {Cin}"
    kh, kw = kernel_size
    sh, sw = stride
    ph, pw = padding
    dh, dw = dilation
    G = groups
    Cin_g = in_channels // G
    Cout_g = out_channels // G
    S = kh * kw

    Ho = (H + 2 * ph - dh * (kh - 1) - 1) // sh + 1
    Wo = (W + 2 * pw - dw * (kw - 1) - 1) // sw + 1
    M = B * Ho * Wo
    if M <= 0:  # degenerate spatial extent
        return jnp.zeros((B, out_channels, max(Ho, 0), max(Wo, 0)), x.dtype)

    # One NHWC transpose of the (small) activation; everything after is cheap
    # slices + one concat/stack + free reshapes: the S-times-larger patch
    # tensor makes exactly one HBM pass before the GEMM.
    xh = jnp.transpose(x, (0, 2, 3, 1)).astype(compute_dtype)
    if ph or pw:
        xh = jnp.pad(xh, ((0, 0), (ph, ph), (pw, pw), (0, 0)))

    slices = []
    for fi in range(kh):
        for fj in range(kw):
            h0, w0 = fi * dh, fj * dw
            slices.append(xh[:, h0:h0 + (Ho - 1) * sh + 1:sh,
                              w0:w0 + (Wo - 1) * sw + 1:sw, :])

    if S == 1:
        # 1x1 fast path: no patch tensor at all.
        p = slices[0].reshape(M, G, Cin_g)
    elif G == 1:
        # K order (fi, fj, cin): lane-contiguous channel concat (weight packed
        # in the same order at construction).
        p = jnp.concatenate(slices, axis=-1).reshape(M, 1, kg)
    else:
        # K order (cin_g, fi, fj): keeps each group's K slab contiguous so the
        # (M, G, Kg) layout needs no transpose.
        p = jnp.stack(slices, axis=-1).reshape(M, G, kg)

    sub32 = np.dtype(compute_dtype).itemsize < 4
    tm = _pick_mtile(M, sub32)
    Mp = _round_up(M, tm)
    if Mp != M or kgp != kg:  # skip the pad copy when already aligned
        p = jnp.pad(p, ((0, Mp - M), (0, 0), (0, kgp - kg)))

    out_p = _grouped_gemm(p, w_packed, b_packed, x.dtype,
                          tm=tm, tk=tk, tn=tn, precision=precision)

    out = out_p[:M, :, :Cout_g].reshape(B, Ho, Wo, out_channels)   # NHWC
    if channels_last_output:
        return out
    return jnp.transpose(out, (0, 3, 1, 2))                        # NCHW


def _ipex_conv2d_forward_xla(x, weight, bias, *, stride, padding, dilation,
                             groups, compute_dtype, channels_last_output):
    """Fallback for tiny heavily-grouped convs where the Pallas GEMM would be
    >8x MXU padding waste (e.g. depthwise)."""
    out = lax.conv_general_dilated(
        x.astype(compute_dtype), weight,
        window_strides=stride,
        padding=[(padding[0], padding[0]), (padding[1], padding[1])],
        rhs_dilation=dilation,
        dimension_numbers=("NCHW", "OIHW", "NCHW"),
        feature_group_count=groups,
        preferred_element_type=jnp.float32)
    if bias is not None:
        out = out + bias.reshape(1, -1, 1, 1)
    out = out.astype(x.dtype)
    if channels_last_output:
        out = jnp.transpose(out, (0, 2, 3, 1))
    return out


class IPEXConvNdPallas:
    """JAX/Pallas analogue of _IPEXConvNd (2-D case).

    Weight is given in the public PyTorch OIHW layout (Cout, Cin/groups, kh, kw)
    and "prepacked" once at construction into the GEMM layout the kernel needs.
    """

    def __init__(self, weight, bias, stride=(1, 1), padding=(0, 0),
                 dilation=(1, 1), groups=1, compute_dtype=None, precision=None,
                 pallas_mode="auto", channels_last_output=False):
        # TODO(synk): the dnnl convolution_prepack ctx / weight_channels_last flag
        # are CPU blocked-layout concepts with no TPU equivalent; prepacking here
        # is a one-time repack into the (G, K, Cout_g) GEMM layout instead.
        # TODO(synk): only the 2-D (Conv2d) case is implemented; the 1-D/3-D
        # variants and the master_weight / weight_trail split-bf16 training
        # state of _IPEXConvNd are not covered.
        weight = jnp.asarray(weight)
        Cout, Cin_g, kh, kw = (int(s) for s in weight.shape)
        G = int(groups)
        self.out_channels = Cout
        self.in_channels = Cin_g * G
        self.kernel_size = (kh, kw)
        self.stride = _pair(stride)
        self.padding = _pair(padding)
        self.dilation = _pair(dilation)
        self.groups = G
        self.channels_last_output = bool(channels_last_output)

        # Default perf path: bf16 operands + f32 accumulation (matches XLA:TPU's
        # default f32-conv numerics).  Pass compute_dtype=jnp.float32 for the
        # exact path (Precision.HIGHEST kept only behind that flag).
        if compute_dtype is None:
            compute_dtype = (jnp.bfloat16 if weight.dtype == jnp.float32
                             else weight.dtype)
        self.compute_dtype = np.dtype(compute_dtype)
        if precision is None and self.compute_dtype == np.dtype(np.float32):
            precision = jax.lax.Precision.HIGHEST
        self.precision = precision

        Cout_g = Cout // G
        Kg = Cin_g * kh * kw
        S = kh * kw

        # Heavily grouped / tiny-channel convs would waste >8x of the MXU on
        # zero padding; dispatch those to the XLA conv instead.
        pad_waste = (_round_up(Cout_g, 128) * _round_up(Kg, 128)) / float(Cout_g * Kg)
        if pallas_mode == "always":
            self._use_pallas = True
        elif pallas_mode == "never":
            self._use_pallas = False
        else:
            self._use_pallas = pad_waste <= 8.0

        if self._use_pallas:
            tn, Np = _pick_tile(Cout_g)
            tk, Kgp = _pick_tile(Kg)

            # Prepack once: choose the K ordering that lets the forward pass
            # build patches with a single cheap concat/stack.
            if G == 1 and S > 1:
                # K order (fi, fj, cin)
                w = jnp.transpose(weight, (2, 3, 1, 0)).reshape(1, Kg, Cout)
            else:
                # K order (cin_g, fi, fj)
                w = jnp.transpose(weight.reshape(G, Cout_g, Kg), (0, 2, 1))
            w = w.astype(self.compute_dtype)
            if Kgp != Kg or Np != Cout_g:
                w = jnp.pad(w, ((0, 0), (0, Kgp - Kg), (0, Np - Cout_g)))
            self.weight_packed = w

            if bias is not None:
                b = jnp.asarray(bias, jnp.float32).reshape(G, 1, Cout_g)
                if Np != Cout_g:
                    b = jnp.pad(b, ((0, 0), (0, 0), (0, Np - Cout_g)))
                self.bias_packed = b
            else:
                self.bias_packed = None

            self._forward = jax.jit(functools.partial(
                _ipex_conv2d_forward_pallas,
                kernel_size=self.kernel_size, stride=self.stride,
                padding=self.padding, dilation=self.dilation, groups=G,
                in_channels=self.in_channels, out_channels=self.out_channels,
                kg=Kg, kgp=Kgp, tk=tk, tn=tn,
                compute_dtype=self.compute_dtype, precision=self.precision,
                channels_last_output=self.channels_last_output))
        else:
            self.weight_packed = weight.astype(self.compute_dtype)
            self.bias_packed = (jnp.asarray(bias, jnp.float32)
                                if bias is not None else None)
            self._forward = jax.jit(functools.partial(
                _ipex_conv2d_forward_xla,
                stride=self.stride, padding=self.padding,
                dilation=self.dilation, groups=G,
                compute_dtype=self.compute_dtype,
                channels_last_output=self.channels_last_output))

    def __call__(self, x):
        return self._forward(x, self.weight_packed, self.bias_packed)


def _conv_ref(x, weight, bias, stride, padding, dilation, groups):
    out = lax.conv_general_dilated(
        x, weight, window_strides=stride,
        padding=[(padding[0], padding[0]), (padding[1], padding[1])],
        rhs_dilation=dilation,
        dimension_numbers=("NCHW", "OIHW", "NCHW"),
        feature_group_count=groups,
        precision=jax.lax.Precision.HIGHEST)
    if bias is not None:
        out = out + bias.reshape(1, -1, 1, 1)
    return out


if __name__ == "__main__":
    key = jax.random.PRNGKey(0)
    k1, k2, k3, k4, k5, k6 = jax.random.split(key, 6)

    # Case 1: Conv2d 3x3, stride 2, padding 1, bias, default bf16 compute path.
    B, Cin, H, W, Cout, ksz = 2, 16, 16, 16, 128, 3
    x = jax.random.normal(k1, (B, Cin, H, W), jnp.float32)
    w = jax.random.normal(k2, (Cout, Cin, ksz, ksz), jnp.float32) * 0.05
    b = jax.random.normal(k3, (Cout,), jnp.float32) * 0.1
    ref = _conv_ref(x, w, b, (2, 2), (1, 1), (1, 1), 1)

    conv = IPEXConvNdPallas(w, b, stride=(2, 2), padding=(1, 1),
                            dilation=(1, 1), groups=1)
    assert conv._use_pallas
    out = jax.block_until_ready(conv(x))
    np.testing.assert_allclose(np.asarray(out), np.asarray(ref),
                               rtol=2e-2, atol=2e-2)

    # Case 2: explicit fp32 exact path (Precision.HIGHEST).
    conv_f32 = IPEXConvNdPallas(w, b, stride=(2, 2), padding=(1, 1),
                                dilation=(1, 1), groups=1,
                                compute_dtype=jnp.float32)
    assert conv_f32._use_pallas
    out_f32 = jax.block_until_ready(conv_f32(x))
    np.testing.assert_allclose(np.asarray(out_f32), np.asarray(ref),
                               rtol=1e-4, atol=1e-4)

    # Case 3: grouped conv (groups=2), dilation 2, no bias, fp32 Pallas path.
    G = 2
    x2 = jax.random.normal(k4, (2, 32, 8, 8), jnp.float32)
    w2 = jax.random.normal(k5, (128, 32 // G, 3, 3), jnp.float32) * 0.05
    conv2 = IPEXConvNdPallas(w2, None, stride=(1, 1), padding=(2, 2),
                             dilation=(2, 2), groups=G,
                             compute_dtype=jnp.float32)
    assert conv2._use_pallas
    out2 = jax.block_until_ready(conv2(x2))
    ref2 = _conv_ref(x2, w2, None, (1, 1), (2, 2), (2, 2), G)
    np.testing.assert_allclose(np.asarray(out2), np.asarray(ref2),
                               rtol=1e-4, atol=1e-4)

    # Case 4: tiny heavily-grouped conv -> auto XLA fallback (MXU padding waste).
    x3 = jax.random.normal(k6, (2, 4, 8, 8), jnp.float32)
    w3 = jax.random.normal(k2, (8, 4 // 2, 3, 3), jnp.float32) * 0.05
    conv3 = IPEXConvNdPallas(w3, None, stride=(1, 1), padding=(1, 1),
                             dilation=(1, 1), groups=2)
    assert not conv3._use_pallas
    out3 = jax.block_until_ready(conv3(x3))
    ref3 = _conv_ref(x3, w3, None, (1, 1), (1, 1), (1, 1), 2)
    np.testing.assert_allclose(np.asarray(out3), np.asarray(ref3),
                               rtol=2e-2, atol=2e-2)

    print("KERNEL_OK")
</pallas_src>

<mosaic_0001>
module attributes {stable_mosaic.version = 11 : i64} {
  func.func @_conv_gemm_kernel(%arg0: i32, %arg1: i32, %arg2: i32, %arg3: i32, %arg4: memref<128x1x256xbf16, #tpu.memory_space<vmem>>, %arg5: memref<1x256x128xbf16, #tpu.memory_space<vmem>>, %arg6: memref<1x1x128xf32, #tpu.memory_space<vmem>>, %arg7: memref<128x1x128xf32, #tpu.memory_space<vmem>>, %arg8: memref<128x128xf32, #tpu.memory_space<vmem>>) attributes {dimension_semantics = [#tpu.dimension_semantics<parallel>, #tpu.dimension_semantics<parallel>, #tpu.dimension_semantics<parallel>, #tpu.dimension_semantics<arbitrary>], iteration_bounds = array<i64: 1, 1, 1, 1>, scalar_prefetch = 0 : i64, scratch_operands = 1 : i64, tpu.core_type = #tpu.core_type<tc>, window_params = [{transform_indices = @transform_0, window_bounds = array<i64: 128, 1, 256>}, {transform_indices = @transform_1, window_bounds = array<i64: 1, 256, 128>}, {transform_indices = @transform_2, window_bounds = array<i64: 1, 1, 128>}, {transform_indices = @transform_3, window_bounds = array<i64: 128, 1, 128>}]} {
    %c0 = arith.constant 0 : index
    %c0_0 = arith.constant 0 : index
    %c0_1 = arith.constant 0 : index
    %0 = vector.load %arg4[%c0, %c0_0, %c0_1] : memref<128x1x256xbf16, #tpu.memory_space<vmem>>, vector<128x1x256xbf16>
    %1 = vector.shape_cast %0 : vector<128x1x256xbf16> to vector<128x256xbf16>
    %c0_2 = arith.constant 0 : index
    %c0_3 = arith.constant 0 : index
    %c0_4 = arith.constant 0 : index
    %2 = vector.load %arg5[%c0_2, %c0_3, %c0_4] : memref<1x256x128xbf16, #tpu.memory_space<vmem>>, vector<1x256x128xbf16>
    %3 = vector.shape_cast %2 : vector<1x256x128xbf16> to vector<256x128xbf16>
    %cst = arith.constant dense<0.000000e+00> : vector<128x128xf32>
    %4 = tpu.matmul %1, %3, %cst {dimension_numbers = #tpu.dot_dimension_numbers<[1], [0], [0], [1], [0, 0, 1, 1], [], []>} : vector<128x256xbf16>, vector<256x128xbf16>, vector<128x128xf32> -> vector<128x128xf32>
    %c0_5 = arith.constant 0 : index
    %c0_6 = arith.constant 0 : index
    %c0_7 = arith.constant 0 : index
    %5 = vector.load %arg6[%c0_5, %c0_6, %c0_7] : memref<1x1x128xf32, #tpu.memory_space<vmem>>, vector<1x1x128xf32>
    %6 = vector.shape_cast %5 : vector<1x1x128xf32> to vector<1x128xf32>
    %7 = vector.broadcast %6 : vector<1x128xf32> to vector<128x128xf32>
    %8 = arith.addf %4, %7 : vector<128x128xf32>
    %c0_8 = arith.constant 0 : index
    %c0_9 = arith.constant 0 : index
    %c0_10 = arith.constant 0 : index
    %9 = vector.load %arg7[%c0_8, %c0_9, %c0_10] : memref<128x1x128xf32, #tpu.memory_space<vmem>>, vector<128x1x128xf32>
    %10 = vector.shape_cast %9 : vector<128x1x128xf32> to vector<128x128xf32>
    %11 = vector.shape_cast %8 : vector<128x128xf32> to vector<128x1x128xf32>
    tpu.vector_store %arg7[%c0_8, %c0_9, %c0_10], %11 {strides = array<i32>} : memref<128x1x128xf32, #tpu.memory_space<vmem>>, vector<128x1x128xf32>,
    return
  }
  func.func @transform_0(%arg0: i32, %arg1: i32, %arg2: i32, %arg3: i32) -> (i32, i32, i32) {
    %c0_i32 = arith.constant 0 : i32
    return %arg2, %arg0, %arg3 : i32, i32, i32
  }
  func.func @transform_1(%arg0: i32, %arg1: i32, %arg2: i32, %arg3: i32) -> (i32, i32, i32) {
    %c0_i32 = arith.constant 0 : i32
    %c0_i32_0 = arith.constant 0 : i32
    return %arg0, %c0_i32, %arg1 : i32, i32, i32
  }
  func.func @transform_2(%arg0: i32, %arg1: i32, %arg2: i32, %arg3: i32) -> (i32, i32, i32) {
    %c0_i32 = arith.constant 0 : i32
    %c0_i32_0 = arith.constant 0 : i32
    return %arg0, %c0_i32, %arg1 : i32, i32, i32
  }
  func.func @transform_3(%arg0: i32, %arg1: i32, %arg2: i32, %arg3: i32) -> (i32, i32, i32) {
    %c0_i32 = arith.constant 0 : i32
    return %arg2, %arg0, %arg1 : i32, i32, i32
  }
}

</mosaic_0001>

<llo_original>
// kernel: _ipex_conv2d_forward_pallas.1
$region0: #{_ipex_conv2d_forward_pallas.1}
  #allocation0 [shape = 'u32[]', space=smem, size = 0x4, offset = 0x4, fixed_abs, tag = 'smem constant byte address 0x4 - core index']
  #allocation1 [shape = 'u32[144,128]{1,0:T(1,128)}', space=vmem, size = 0x12000, scoped, tag = 'internal scratch']
  #allocation2 [shape = 'f32[128,128]{1,0:T(8,128)}', space=vmem, size = 0x10000, scoped, tag = 'scratch operand']
  %s0 = inlined_call_operand.vmem [shape: bf16[128,1,256], index: 0, kind: input, shape index: {}]
  %s1 = inlined_call_operand.vmem [shape: bf16[1,256,128], index: 1, kind: input, shape index: {}]
  %s2 = inlined_call_operand.vmem [shape: f32[1,1,128], index: 2, kind: input, shape index: {}]
  %s3 = inlined_call_operand.hbm [shape: f32[128,1,128], index: 3, kind: output, shape index: {}]
  %s4 = sld [smem:[#allocation0]]
  $region22: #{_ipex_conv2d_forward_pallas.1} parent=0
    _
  %s6 = ssub.s32 1, %s4
  %s7 = scalar_select 0, %s6, %s4
  $region1: #{_ipex_conv2d_forward_pallas.1} parent=0
    #allocation3 [shape = 'u8[65536]{0}', space=vmem, size = 0x10000, scoped, tag = 'output window, operand 0, single buffered']
    #allocation4 [shape = 's32[1]{0}', space=sflag, size = 0x4, scoped, tag = 'scoped memory for _ipex_conv2d_forward_pallas.1']
    %8 = vsyncpa [#allocation4], 0
    // Predicated region
    $region2: #{_ipex_conv2d_forward_pallas.1} parent=1 // pred_check
      _
    $region3: #{_ipex_conv2d_forward_pallas.1} parent=1 // pred_check_branch
      %10 = sbr.rel (0) target = $region5
    $region4: #{_ipex_conv2d_forward_pallas.1} parent=1 // pred_region
      _
    $region5: #{_ipex_conv2d_forward_pallas.1} parent=1 // pred_fallthru
      _
    // Predicated region
    $region6: #{_ipex_conv2d_forward_pallas.1} parent=1 // pred_check
      _
    $region7: #{_ipex_conv2d_forward_pallas.1} parent=1 // pred_check_branch
      %12 = sbr.rel (0) target = $region9
    $region8: #{_ipex_conv2d_forward_pallas.1} parent=1 // pred_region
      _
    $region9: #{_ipex_conv2d_forward_pallas.1} parent=1 // pred_fallthru
      _
    // Predicated region
    $region10: #{_ipex_conv2d_forward_pallas.1} parent=1 // pred_check
      _
    $region11: #{_ipex_conv2d_forward_pallas.1} parent=1 // pred_check_branch
      %14 = sbr.rel (0) target = $region13
    $region12: #{_ipex_conv2d_forward_pallas.1} parent=1 // pred_region
      _
    $region13: #{_ipex_conv2d_forward_pallas.1} parent=1 // pred_fallthru
      _
    %v16 = vld [vmem:[%s0] sm:$0x3]
    %v17 = vld [vmem:[%s0 + $0x2] sm:$0x3]
    %v18 = vld [vmem:[%s0 + $0x4] sm:$0x3]
    %v19 = vld [vmem:[%s0 + $0x6] sm:$0x3]
    %v20 = vld [vmem:[%s0 + $0x8] sm:$0x3]
    %v21 = vld [vmem:[%s0 + $0xa] sm:$0x3]
    %v22 = vld [vmem:[%s0 + $0xc] sm:$0x3]
    %v23 = vld [vmem:[%s0 + $0xe] sm:$0x3]
    %v24 = vld [vmem:[%s0 + $0x10] sm:$0x3]
    %v25 = vld [vmem:[%s0 + $0x12] sm:$0x3]
    %v26 = vld [vmem:[%s0 + $0x14] sm:$0x3]
    %v27 = vld [vmem:[%s0 + $0x16] sm:$0x3]
    %v28 = vld [vmem:[%s0 + $0x18] sm:$0x3]
    %v29 = vld [vmem:[%s0 + $0x1a] sm:$0x3]
    %v30 = vld [vmem:[%s0 + $0x1c] sm:$0x3]
    %v31 = vld [vmem:[%s0 + $0x1e] sm:$0x3]
    %v32 = vld [vmem:[%s0 + $0x20] sm:$0x3]
    %v33 = vld [vmem:[%s0 + $0x22] sm:$0x3]
    %v34 = vld [vmem:[%s0 + $0x24] sm:$0x3]
    %v35 = vld [vmem:[%s0 + $0x26] sm:$0x3]
    %v36 = vld [vmem:[%s0 + $0x28] sm:$0x3]
    %v37 = vld [vmem:[%s0 + $0x2a] sm:$0x3]
    %v38 = vld [vmem:[%s0 + $0x2c] sm:$0x3]
    %v39 = vld [vmem:[%s0 + $0x2e] sm:$0x3]
    %v40 = vld [vmem:[%s0 + $0x30] sm:$0x3]
    %v41 = vld [vmem:[%s0 + $0x32] sm:$0x3]
    %v42 = vld [vmem:[%s0 + $0x34] sm:$0x3]
    %v43 = vld [vmem:[%s0 + $0x36] sm:$0x3]
    %v44 = vld [vmem:[%s0 + $0x38] sm:$0x3]
    %v45 = vld [vmem:[%s0 + $0x3a] sm:$0x3]
    %v46 = vld [vmem:[%s0 + $0x3c] sm:$0x3]
    %v47 = vld [vmem:[%s0 + $0x3e] sm:$0x3]
    %v48 = vld [vmem:[%s0 + $0x40] sm:$0x3]
    %v49 = vld [vmem:[%s0 + $0x42] sm:$0x3]
    %v50 = vld [vmem:[%s0 + $0x44] sm:$0x3]
    %v51 = vld [vmem:[%s0 + $0x46] sm:$0x3]
    %v52 = vld [vmem:[%s0 + $0x48] sm:$0x3]
    %v53 = vld [vmem:[%s0 + $0x4a] sm:$0x3]
    %v54 = vld [vmem:[%s0 + $0x4c] sm:$0x3]
    %v55 = vld [vmem:[%s0 + $0x4e] sm:$0x3]
    %v56 = vld [vmem:[%s0 + $0x50] sm:$0x3]
    %v57 = vld [vmem:[%s0 + $0x52] sm:$0x3]
    %v58 = vld [vmem:[%s0 + $0x54] sm:$0x3]
    %v59 = vld [vmem:[%s0 + $0x56] sm:$0x3]
    %v60 = vld [vmem:[%s0 + $0x58] sm:$0x3]
    %v61 = vld [vmem:[%s0 + $0x5a] sm:$0x3]
    %v62 = vld [vmem:[%s0 + $0x5c] sm:$0x3]
    %v63 = vld [vmem:[%s0 + $0x5e] sm:$0x3]
    %v64 = vld [vmem:[%s0 + $0x60] sm:$0x3]
    %v65 = vld [vmem:[%s0 + $0x62] sm:$0x3]
    %v66 = vld [vmem:[%s0 + $0x64] sm:$0x3]
    %v67 = vld [vmem:[%s0 + $0x66] sm:$0x3]
    %v68 = vld [vmem:[%s0 + $0x68] sm:$0x3]
    %v69 = vld [vmem:[%s0 + $0x6a] sm:$0x3]
    %v70 = vld [vmem:[%s0 + $0x6c] sm:$0x3]
    %v71 = vld [vmem:[%s0 + $0x6e] sm:$0x3]
    %v72 = vld [vmem:[%s0 + $0x70] sm:$0x3]
    %v73 = vld [vmem:[%s0 + $0x72] sm:$0x3]
    %v74 = vld [vmem:[%s0 + $0x74] sm:$0x3]
    %v75 = vld [vmem:[%s0 + $0x76] sm:$0x3]
    %v76 = vld [vmem:[%s0 + $0x78] sm:$0x3]
    %v77 = vld [vmem:[%s0 + $0x7a] sm:$0x3]
    %v78 = vld [vmem:[%s0 + $0x7c] sm:$0x3]
    %v79 = vld [vmem:[%s0 + $0x7e] sm:$0x3]
    %v80 = vld [vmem:[%s0 + $0x80] sm:$0x3]
    %v81 = vld [vmem:[%s0 + $0x82] sm:$0x3]
    %v82 = vld [vmem:[%s0 + $0x84] sm:$0x3]
    %v83 = vld [vmem:[%s0 + $0x86] sm:$0x3]
    %v84 = vld [vmem:[%s0 + $0x88] sm:$0x3]
    %v85 = vld [vmem:[%s0 + $0x8a] sm:$0x3]
    %v86 = vld [vmem:[%s0 + $0x8c] sm:$0x3]
    %v87 = vld [vmem:[%s0 + $0x8e] sm:$0x3]
    %v88 = vld [vmem:[%s0 + $0x90] sm:$0x3]
    %v89 = vld [vmem:[%s0 + $0x92] sm:$0x3]
    %v90 = vld [vmem:[%s0 + $0x94] sm:$0x3]
    %v91 = vld [vmem:[%s0 + $0x96] sm:$0x3]
    %v92 = vld [vmem:[%s0 + $0x98] sm:$0x3]
    %v93 = vld [vmem:[%s0 + $0x9a] sm:$0x3]
    %v94 = vld [vmem:[%s0 + $0x9c] sm:$0x3]
    %v95 = vld [vmem:[%s0 + $0x9e] sm:$0x3]
    %v96 = vld [vmem:[%s0 + $0xa0] sm:$0x3]
    %v97 = vld [vmem:[%s0 + $0xa2] sm:$0x3]
    %v98 = vld [vmem:[%s0 + $0xa4] sm:$0x3]
    %v99 = vld [vmem:[%s0 + $0xa6] sm:$0x3]
    %v100 = vld [vmem:[%s0 + $0xa8] sm:$0x3]
    %v101 = vld [vmem:[%s0 + $0xaa] sm:$0x3]
    %v102 = vld [vmem:[%s0 + $0xac] sm:$0x3]
    %v103 = vld [vmem:[%s0 + $0xae] sm:$0x3]
    %v104 = vld [vmem:[%s0 + $0xb0] sm:$0x3]
    %v105 = vld [vmem:[%s0 + $0xb2] sm:$0x3]
    %v106 = vld [vmem:[%s0 + $0xb4] sm:$0x3]
    %v107 = vld [vmem:[%s0 + $0xb6] sm:$0x3]
    %v108 = vld [vmem:[%s0 + $0xb8] sm:$0x3]
    %v109 = vld [vmem:[%s0 + $0xba] sm:$0x3]
    %v110 = vld [vmem:[%s0 + $0xbc] sm:$0x3]
    %v111 = vld [vmem:[%s0 + $0xbe] sm:$0x3]
    %v112 = vld [vmem:[%s0 + $0xc0] sm:$0x3]
    %v113 = vld [vmem:[%s0 + $0xc2] sm:$0x3]
    %v114 = vld [vmem:[%s0 + $0xc4] sm:$0x3]
    %v115 = vld [vmem:[%s0 + $0xc6] sm:$0x3]
    %v116 = vld [vmem:[%s0 + $0xc8] sm:$0x3]
    %v117 = vld [vmem:[%s0 + $0xca] sm:$0x3]
    %v118 = vld [vmem:[%s0 + $0xcc] sm:$0x3]
    %v119 = vld [vmem:[%s0 + $0xce] sm:$0x3]
    %v120 = vld [vmem:[%s0 + $0xd0] sm:$0x3]
    %v121 = vld [vmem:[%s0 + $0xd2] sm:$0x3]
    %v122 = vld [vmem:[%s0 + $0xd4] sm:$0x3]
    %v123 = vld [vmem:[%s0 + $0xd6] sm:$0x3]
    %v124 = vld [vmem:[%s0 + $0xd8] sm:$0x3]
    %v125 = vld [vmem:[%s0 + $0xda] sm:$0x3]
    %v126 = vld [vmem:[%s0 + $0xdc] sm:$0x3]
    %v127 = vld [vmem:[%s0 + $0xde] sm:$0x3]
    %v128 = vld [vmem:[%s0 + $0xe0] sm:$0x3]
    %v129 = vld [vmem:[%s0 + $0xe2] sm:$0x3]
    %v130 = vld [vmem:[%s0 + $0xe4] sm:$0x3]
    %v131 = vld [vmem:[%s0 + $0xe6] sm:$0x3]
    %v132 = vld [vmem:[%s0 + $0xe8] sm:$0x3]
    %v133 = vld [vmem:[%s0 + $0xea] sm:$0x3]
    %v134 = vld [vmem:[%s0 + $0xec] sm:$0x3]
    %v135 = vld [vmem:[%s0 + $0xee] sm:$0x3]
    %v136 = vld [vmem:[%s0 + $0xf0] sm:$0x3]
    %v137 = vld [vmem:[%s0 + $0xf2] sm:$0x3]
    %v138 = vld [vmem:[%s0 + $0xf4] sm:$0x3]
    %v139 = vld [vmem:[%s0 + $0xf6] sm:$0x3]
    %v140 = vld [vmem:[%s0 + $0xf8] sm:$0x3]
    %v141 = vld [vmem:[%s0 + $0xfa] sm:$0x3]
    %v142 = vld [vmem:[%s0 + $0xfc] sm:$0x3]
    %v143 = vld [vmem:[%s0 + $0xfe] sm:$0x3]
    %v144 = vld [vmem:[%s1] sm:$0xf]
    %v145 = vld [vmem:[%s1 + $0x4] sm:$0xf]
    %v146 = vld [vmem:[%s1 + $0x8] sm:$0xf]
    %v147 = vld [vmem:[%s1 + $0xc] sm:$0xf]
    %v148 = vld [vmem:[%s1 + $0x10] sm:$0xf]
    %v149 = vld [vmem:[%s1 + $0x14] sm:$0xf]
    %v150 = vld [vmem:[%s1 + $0x18] sm:$0xf]
    %v151 = vld [vmem:[%s1 + $0x1c] sm:$0xf]
    %v152 = vld [vmem:[%s1 + $0x20] sm:$0xf]
    %v153 = vld [vmem:[%s1 + $0x24] sm:$0xf]
    %v154 = vld [vmem:[%s1 + $0x28] sm:$0xf]
    %v155 = vld [vmem:[%s1 + $0x2c] sm:$0xf]
    %v156 = vld [vmem:[%s1 + $0x30] sm:$0xf]
    %v157 = vld [vmem:[%s1 + $0x34] sm:$0xf]
    %v158 = vld [vmem:[%s1 + $0x38] sm:$0xf]
    %v159 = vld [vmem:[%s1 + $0x3c] sm:$0xf]
    %v160 = vld [vmem:[%s1 + $0x40] sm:$0xf]
    %v161 = vld [vmem:[%s1 + $0x44] sm:$0xf]
    %v162 = vld [vmem:[%s1 + $0x48] sm:$0xf]
    %v163 = vld [vmem:[%s1 + $0x4c] sm:$0xf]
    %v164 = vld [vmem:[%s1 + $0x50] sm:$0xf]
    %v165 = vld [vmem:[%s1 + $0x54] sm:$0xf]
    %v166 = vld [vmem:[%s1 + $0x58] sm:$0xf]
    %v167 = vld [vmem:[%s1 + $0x5c] sm:$0xf]
    %v168 = vld [vmem:[%s1 + $0x60] sm:$0xf]
    %v169 = vld [vmem:[%s1 + $0x64] sm:$0xf]
    %v170 = vld [vmem:[%s1 + $0x68] sm:$0xf]
    %v171 = vld [vmem:[%s1 + $0x6c] sm:$0xf]
    %v172 = vld [vmem:[%s1 + $0x70] sm:$0xf]
    %v173 = vld [vmem:[%s1 + $0x74] sm:$0xf]
    %v174 = vld [vmem:[%s1 + $0x78] sm:$0xf]
    %v175 = vld [vmem:[%s1 + $0x7c] sm:$0xf]
    %v176 = vld [vmem:[%s2] sm:$0x1]
    %v178 = vlaneseq
    %v179 = vshrl.u32 %v178, 7
    %v180 = vsub.s32 0, %v179
    %v181 = vrot.slane %v176, %v180
    %v312 = vunpack.c.l.s4 1966171168
    %v313 = vunpack.c.0.s8 %v312
    %v314 = vlaneseq
    %v315 = vshrl.u32 %v314, 7
    %v316 = vsub.s32 %v313, %v315
    %v317 = vrot.slane %v16, %v316
    %v318 = vcombine.high %v317, %v317
    %v320 = vunpack.c.l.s4 1966171168
    %v321 = vunpack.c.0.s8 %v320
    %v322 = vlaneseq
    %v323 = vshrl.u32 %v322, 7
    %v324 = vsub.s32 %v321, %v323
    %v325 = vrot.slane %v317, %v324
    %v327 = vunpack.c.l.s4 1966171168
    %v328 = vunpack.c.0.s8 %v327
    %v329 = vlaneseq
    %v330 = vshrl.u32 %v329, 7
    %v331 = vsub.s32 %v328, %v330
    %v332 = vrot.slane %v318, %v331
    %v334 = vunpack.c.l.s4 1966171168
    %v335 = vunpack.c.0.s8 %v334
    %v336 = vlaneseq
    %v337 = vshrl.u32 %v336, 7
    %v338 = vsub.s32 %v335, %v337
    %v339 = vrot.slane %v17, %v338
    %v340 = vcombine.high %v339, %v339
    %v342 = vunpack.c.l.s4 1966171168
    %v343 = vunpack.c.0.s8 %v342
    %v344 = vlaneseq
    %v345 = vshrl.u32 %v344, 7
    %v346 = vsub.s32 %v343, %v345
    %v347 = vrot.slane %v339, %v346
    %v349 = vunpack.c.l.s4 1966171168
    %v350 = vunpack.c.0.s8 %v349
    %v351 = vlaneseq
    %v352 = vshrl.u32 %v351, 7
    %v353 = vsub.s32 %v350, %v352
    %v354 = vrot.slane %v340, %v353
    %v356 = vunpack.c.l.s4 1966171168
    %v357 = vunpack.c.0.s8 %v356
    %v358 = vlaneseq
    %v359 = vshrl.u32 %v358, 7
    %v360 = vsub.s32 %v357, %v359
    %v361 = vrot.slane %v18, %v360
    %v362 = vcombine.high %v361, %v361
    %v364 = vunpack.c.l.s4 1966171168
    %v365 = vunpack.c.0.s8 %v364
    %v366 = vlaneseq
    %v367 = vshrl.u32 %v366, 7
    %v368 = vsub.s32 %v365, %v367
    %v369 = vrot.slane %v361, %v368
    %v371 = vunpack.c.l.s4 1966171168
    %v372 = vunpack.c.0.s8 %v371
    %v373 = vlaneseq
    %v374 = vshrl.u32 %v373, 7
    %v375 = vsub.s32 %v372, %v374
    %v376 = vrot.slane %v362, %v375
    %v378 = vunpack.c.l.s4 1966171168
    %v379 = vunpack.c.0.s8 %v378
    %v380 = vlaneseq
    %v381 = vshrl.u32 %v380, 7
    %v382 = vsub.s32 %v379, %v381
    %v383 = vrot.slane %v19, %v382
    %v384 = vcombine.high %v383, %v383
    %v386 = vunpack.c.l.s4 1966171168
    %v387 = vunpack.c.0.s8 %v386
    %v388 = vlaneseq
    %v389 = vshrl.u32 %v388, 7
    %v390 = vsub.s32 %v387, %v389
    %v391 = vrot.slane %v383, %v390
    %v393 = vunpack.c.l.s4 1966171168
    %v394 = vunpack.c.0.s8 %v393
    %v395 = vlaneseq
    %v396 = vshrl.u32 %v395, 7
    %v397 = vsub.s32 %v394, %v396
    %v398 = vrot.slane %v384, %v397
    %v400 = vunpack.c.l.s4 1966171168
    %v401 = vunpack.c.0.s8 %v400
    %v402 = vlaneseq
    %v403 = vshrl.u32 %v402, 7
    %v404 = vsub.s32 %v401, %v403
    %v405 = vrot.slane %v20, %v404
    %v406 = vcombine.high %v405, %v405
    %v408 = vunpack.c.l.s4 1966171168
    %v409 = vunpack.c.0.s8 %v408
    %v410 = vlaneseq
    %v411 = vshrl.u32 %v410, 7
    %v412 = vsub.s32 %v409, %v411
    %v413 = vrot.slane %v405, %v412
    %v415 = vunpack.c.l.s4 1966171168
    %v416 = vunpack.c.0.s8 %v415
    %v417 = vlaneseq
    %v418 = vshrl.u32 %v417, 7
    %v419 = vsub.s32 %v416, %v418
    %v420 = vrot.slane %v406, %v419
    %v422 = vunpack.c.l.s4 1966171168
    %v423 = vunpack.c.0.s8 %v422
    %v424 = vlaneseq
    %v425 = vshrl.u32 %v424, 7
    %v426 = vsub.s32 %v423, %v425
    %v427 = vrot.slane %v21, %v426
    %v428 = vcombine.high %v427, %v427
    %v430 = vunpack.c.l.s4 1966171168
    %v431 = vunpack.c.0.s8 %v430
    %v432 = vlaneseq
    %v433 = vshrl.u32 %v432, 7
    %v434 = vsub.s32 %v431, %v433
    %v435 = vrot.slane %v427, %v434
    %v437 = vunpack.c.l.s4 1966171168
    %v438 = vunpack.c.0.s8 %v437
    %v439 = vlaneseq
    %v440 = vshrl.u32 %v439, 7
    %v441 = vsub.s32 %v438, %v440
    %v442 = vrot.slane %v428, %v441
    %v444 = vunpack.c.l.s4 1966171168
    %v445 = vunpack.c.0.s8 %v444
    %v446 = vlaneseq
    %v447 = vshrl.u32 %v446, 7
    %v448 = vsub.s32 %v445, %v447
    %v449 = vrot.slane %v22, %v448
    %v450 = vcombine.high %v449, %v449
    %v452 = vunpack.c.l.s4 1966171168
    %v453 = vunpack.c.0.s8 %v452
    %v454 = vlaneseq
    %v455 = vshrl.u32 %v454, 7
    %v456 = vsub.s32 %v453, %v455
    %v457 = vrot.slane %v449, %v456
    %v459 = vunpack.c.l.s4 1966171168
    %v460 = vunpack.c.0.s8 %v459
    %v461 = vlaneseq
    %v462 = vshrl.u32 %v461, 7
    %v463 = vsub.s32 %v460, %v462
    %v464 = vrot.slane %v450, %v463
    %v466 = vunpack.c.l.s4 1966171168
    %v467 = vunpack.c.0.s8 %v466
    %v468 = vlaneseq
    %v469 = vshrl.u32 %v468, 7
    %v470 = vsub.s32 %v467, %v469
    %v471 = vrot.slane %v23, %v470
    %v472 = vcombine.high %v471, %v471
    %v474 = vunpack.c.l.s4 1966171168
    %v475 = vunpack.c.0.s8 %v474
    %v476 = vlaneseq
    %v477 = vshrl.u32 %v476, 7
    %v478 = vsub.s32 %v475, %v477
    %v479 = vrot.slane %v471, %v478
    %v481 = vunpack.c.l.s4 1966171168
    %v482 = vunpack.c.0.s8 %v481
    %v483 = vlaneseq
    %v484 = vshrl.u32 %v483, 7
    %v485 = vsub.s32 %v482, %v484
    %v486 = vrot.slane %v472, %v485
    %v488 = vunpack.c.l.s4 1966171168
    %v489 = vunpack.c.0.s8 %v488
    %v490 = vlaneseq
    %v491 = vshrl.u32 %v490, 7
    %v492 = vsub.s32 %v489, %v491
    %v493 = vrot.slane %v24, %v492
    %v494 = vcombine.high %v493, %v493
    %v496 = vunpack.c.l.s4 1966171168
    %v497 = vunpack.c.0.s8 %v496
    %v498 = vlaneseq
    %v499 = vshrl.u32 %v498, 7
    %v500 = vsub.s32 %v497, %v499
    %v501 = vrot.slane %v493, %v500
    %v503 = vunpack.c.l.s4 1966171168
    %v504 = vunpack.c.0.s8 %v503
    %v505 = vlaneseq
    %v506 = vshrl.u32 %v505, 7
    %v507 = vsub.s32 %v504, %v506
    %v508 = vrot.slane %v494, %v507
    %v510 = vunpack.c.l.s4 1966171168
    %v511 = vunpack.c.0.s8 %v510
    %v512 = vlaneseq
    %v513 = vshrl.u32 %v512, 7
    %v514 = vsub.s32 %v511, %v513
    %v515 = vrot.slane %v25, %v514
    %v516 = vcombine.high %v515, %v515
    %v518 = vunpack.c.l.s4 1966171168
    %v519 = vunpack.c.0.s8 %v518
    %v520 = vlaneseq
    %v521 = vshrl.u32 %v520, 7
    %v522 = vsub.s32 %v519, %v521
    %v523 = vrot.slane %v515, %v522
    %v525 = vunpack.c.l.s4 1966171168
    %v526 = vunpack.c.0.s8 %v525
    %v527 = vlaneseq
    %v528 = vshrl.u32 %v527, 7
    %v529 = vsub.s32 %v526, %v528
    %v530 = vrot.slane %v516, %v529
    %v532 = vunpack.c.l.s4 1966171168
    %v533 = vunpack.c.0.s8 %v532
    %v534 = vlaneseq
    %v535 = vshrl.u32 %v534, 7
    %v536 = vsub.s32 %v533, %v535
    %v537 = vrot.slane %v26, %v536
    %v538 = vcombine.high %v537, %v537
    %v540 = vunpack.c.l.s4 1966171168
    %v541 = vunpack.c.0.s8 %v540
    %v542 = vlaneseq
    %v543 = vshrl.u32 %v542, 7
    %v544 = vsub.s32 %v541, %v543
    %v545 = vrot.slane %v537, %v544
    %v547 = vunpack.c.l.s4 1966171168
    %v548 = vunpack.c.0.s8 %v547
    %v549 = vlaneseq
    %v550 = vshrl.u32 %v549, 7
    %v551 = vsub.s32 %v548, %v550
    %v552 = vrot.slane %v538, %v551
    %v554 = vunpack.c.l.s4 1966171168
    %v555 = vunpack.c.0.s8 %v554
    %v556 = vlaneseq
    %v557 = vshrl.u32 %v556, 7
    %v558 = vsub.s32 %v555, %v557
    %v559 = vrot.slane %v27, %v558
    %v560 = vcombine.high %v559, %v559
    %v562 = vunpack.c.l.s4 1966171168
    %v563 = vunpack.c.0.s8 %v562
    %v564 = vlaneseq
    %v565 = vshrl.u32 %v564, 7
    %v566 = vsub.s32 %v563, %v565
    %v567 = vrot.slane %v559, %v566
    %v569 = vunpack.c.l.s4 1966171168
    %v570 = vunpack.c.0.s8 %v569
    %v571 = vlaneseq
    %v572 = vshrl.u32 %v571, 7
    %v573 = vsub.s32 %v570, %v572
    %v574 = vrot.slane %v560, %v573
    %v576 = vunpack.c.l.s4 1966171168
    %v577 = vunpack.c.0.s8 %v576
    %v578 = vlaneseq
    %v579 = vshrl.u32 %v578, 7
    %v580 = vsub.s32 %v577, %v579
    %v581 = vrot.slane %v28, %v580
    %v582 = vcombine.high %v581, %v581
    %v584 = vunpack.c.l.s4 1966171168
    %v585 = vunpack.c.0.s8 %v584
    %v586 = vlaneseq
    %v587 = vshrl.u32 %v586, 7
    %v588 = vsub.s32 %v585, %v587
    %v589 = vrot.slane %v581, %v588
    %v591 = vunpack.c.l.s4 1966171168
    %v592 = vunpack.c.0.s8 %v591
    %v593 = vlaneseq
    %v594 = vshrl.u32 %v593, 7
    %v595 = vsub.s32 %v592, %v594
    %v596 = vrot.slane %v582, %v595
    %v598 = vunpack.c.l.s4 1966171168
    %v599 = vunpack.c.0.s8 %v598
    %v600 = vlaneseq
    %v601 = vshrl.u32 %v600, 7
    %v602 = vsub.s32 %v599, %v601
    %v603 = vrot.slane %v29, %v602
    %v604 = vcombine.high %v603, %v603
    %v606 = vunpack.c.l.s4 1966171168
    %v607 = vunpack.c.0.s8 %v606
    %v608 = vlaneseq
    %v609 = vshrl.u32 %v608, 7
    %v610 = vsub.s32 %v607, %v609
    %v611 = vrot.slane %v603, %v610
    %v613 = vunpack.c.l.s4 1966171168
    %v614 = vunpack.c.0.s8 %v613
    %v615 = vlaneseq
    %v616 = vshrl.u32 %v615, 7
    %v617 = vsub.s32 %v614, %v616
    %v618 = vrot.slane %v604, %v617
    %v620 = vunpack.c.l.s4 1966171168
    %v621 = vunpack.c.0.s8 %v620
    %v622 = vlaneseq
    %v623 = vshrl.u32 %v622, 7
    %v624 = vsub.s32 %v621, %v623
    %v625 = vrot.slane %v30, %v624
    %v626 = vcombine.high %v625, %v625
    %v628 = vunpack.c.l.s4 1966171168
    %v629 = vunpack.c.0.s8 %v628
    %v630 = vlaneseq
    %v631 = vshrl.u32 %v630, 7
    %v632 = vsub.s32 %v629, %v631
    %v633 = vrot.slane %v625, %v632
    %v635 = vunpack.c.l.s4 1966171168
    %v636 = vunpack.c.0.s8 %v635
    %v637 = vlaneseq
    %v638 = vshrl.u32 %v637, 7
    %v639 = vsub.s32 %v636, %v638
    %v640 = vrot.slane %v626, %v639
    %v642 = vunpack.c.l.s4 1966171168
    %v643 = vunpack.c.0.s8 %v642
    %v644 = vlaneseq
    %v645 = vshrl.u32 %v644, 7
    %v646 = vsub.s32 %v643, %v645
    %v647 = vrot.slane %v31, %v646
    %v648 = vcombine.high %v647, %v647
    %v650 = vunpack.c.l.s4 1966171168
    %v651 = vunpack.c.0.s8 %v650
    %v652 = vlaneseq
    %v653 = vshrl.u32 %v652, 7
    %v654 = vsub.s32 %v651, %v653
    %v655 = vrot.slane %v647, %v654
    %v657 = vunpack.c.l.s4 1966171168
    %v658 = vunpack.c.0.s8 %v657
    %v659 = vlaneseq
    %v660 = vshrl.u32 %v659, 7
    %v661 = vsub.s32 %v658, %v660
    %v662 = vrot.slane %v648, %v661
    %v664 = vunpack.c.l.s4 1966171168
    %v665 = vunpack.c.0.s8 %v664
    %v666 = vlaneseq
    %v667 = vshrl.u32 %v666, 7
    %v668 = vsub.s32 %v665, %v667
    %v669 = vrot.slane %v32, %v668
    %v670 = vcombine.high %v669, %v669
    %v672 = vunpack.c.l.s4 1966171168
    %v673 = vunpack.c.0.s8 %v672
    %v674 = vlaneseq
    %v675 = vshrl.u32 %v674, 7
    %v676 = vsub.s32 %v673, %v675
    %v677 = vrot.slane %v669, %v676
    %v679 = vunpack.c.l.s4 1966171168
    %v680 = vunpack.c.0.s8 %v679
    %v681 = vlaneseq
    %v682 = vshrl.u32 %v681, 7
    %v683 = vsub.s32 %v680, %v682
    %v684 = vrot.slane %v670, %v683
    %v686 = vunpack.c.l.s4 1966171168
    %v687 = vunpack.c.0.s8 %v686
    %v688 = vlaneseq
    %v689 = vshrl.u32 %v688, 7
    %v690 = vsub.s32 %v687, %v689
    %v691 = vrot.slane %v33, %v690
    %v692 = vcombine.high %v691, %v691
    %v694 = vunpack.c.l.s4 1966171168
    %v695 = vunpack.c.0.s8 %v694
    %v696 = vlaneseq
    %v697 = vshrl.u32 %v696, 7
    %v698 = vsub.s32 %v695, %v697
    %v699 = vrot.slane %v691, %v698
    %v701 = vunpack.c.l.s4 1966171168
    %v702 = vunpack.c.0.s8 %v701
    %v703 = vlaneseq
    %v704 = vshrl.u32 %v703, 7
    %v705 = vsub.s32 %v702, %v704
    %v706 = vrot.slane %v692, %v705
    %v708 = vunpack.c.l.s4 1966171168
    %v709 = vunpack.c.0.s8 %v708
    %v710 = vlaneseq
    %v711 = vshrl.u32 %v710, 7
    %v712 = vsub.s32 %v709, %v711
    %v713 = vrot.slane %v34, %v712
    %v714 = vcombine.high %v713, %v713
    %v716 = vunpack.c.l.s4 1966171168
    %v717 = vunpack.c.0.s8 %v716
    %v718 = vlaneseq
    %v719 = vshrl.u32 %v718, 7
    %v720 = vsub.s32 %v717, %v719
    %v721 = vrot.slane %v713, %v720
    %v723 = vunpack.c.l.s4 1966171168
    %v724 = vunpack.c.0.s8 %v723
    %v725 = vlaneseq
    %v726 = vshrl.u32 %v725, 7
    %v727 = vsub.s32 %v724, %v726
    %v728 = vrot.slane %v714, %v727
    %v730 = vunpack.c.l.s4 1966171168
    %v731 = vunpack.c.0.s8 %v730
    %v732 = vlaneseq
    %v733 = vshrl.u32 %v732, 7
    %v734 = vsub.s32 %v731, %v733
    %v735 = vrot.slane %v35, %v734
    %v736 = vcombine.high %v735, %v735
    %v738 = vunpack.c.l.s4 1966171168
    %v739 = vunpack.c.0.s8 %v738
    %v740 = vlaneseq
    %v741 = vshrl.u32 %v740, 7
    %v742 = vsub.s32 %v739, %v741
    %v743 = vrot.slane %v735, %v742
    %v745 = vunpack.c.l.s4 1966171168
    %v746 = vunpack.c.0.s8 %v745
    %v747 = vlaneseq
    %v748 = vshrl.u32 %v747, 7
    %v749 = vsub.s32 %v746, %v748
    %v750 = vrot.slane %v736, %v749
    %v752 = vunpack.c.l.s4 1966171168
    %v753 = vunpack.c.0.s8 %v752
    %v754 = vlaneseq
    %v755 = vshrl.u32 %v754, 7
    %v756 = vsub.s32 %v753, %v755
    %v757 = vrot.slane %v36, %v756
    %v758 = vcombine.high %v757, %v757
    %v760 = vunpack.c.l.s4 1966171168
    %v761 = vunpack.c.0.s8 %v760
    %v762 = vlaneseq
    %v763 = vshrl.u32 %v762, 7
    %v764 = vsub.s32 %v761, %v763
    %v765 = vrot.slane %v757, %v764
    %v767 = vunpack.c.l.s4 1966171168
    %v768 = vunpack.c.0.s8 %v767
    %v769 = vlaneseq
    %v770 = vshrl.u32 %v769, 7
    %v771 = vsub.s32 %v768, %v770
    %v772 = vrot.slane %v758, %v771
    %v774 = vunpack.c.l.s4 1966171168
    %v775 = vunpack.c.0.s8 %v774
    %v776 = vlaneseq
    %v777 = vshrl.u32 %v776, 7
    %v778 = vsub.s32 %v775, %v777
    %v779 = vrot.slane %v37, %v778
    %v780 = vcombine.high %v779, %v779
    %v782 = vunpack.c.l.s4 1966171168
    %v783 = vunpack.c.0.s8 %v782
    %v784 = vlaneseq
    %v785 = vshrl.u32 %v784, 7
    %v786 = vsub.s32 %v783, %v785
    %v787 = vrot.slane %v779, %v786
    %v789 = vunpack.c.l.s4 1966171168
    %v790 = vunpack.c.0.s8 %v789
    %v791 = vlaneseq
    %v792 = vshrl.u32 %v791, 7
    %v793 = vsub.s32 %v790, %v792
    %v794 = vrot.slane %v780, %v793
    %v796 = vunpack.c.l.s4 1966171168
    %v797 = vunpack.c.0.s8 %v796
    %v798 = vlaneseq
    %v799 = vshrl.u32 %v798, 7
    %v800 = vsub.s32 %v797, %v799
    %v801 = vrot.slane %v38, %v800
    %v802 = vcombine.high %v801, %v801
    %v804 = vunpack.c.l.s4 1966171168
    %v805 = vunpack.c.0.s8 %v804
    %v806 = vlaneseq
    %v807 = vshrl.u32 %v806, 7
    %v808 = vsub.s32 %v805, %v807
    %v809 = vrot.slane %v801, %v808
    %v811 = vunpack.c.l.s4 1966171168
    %v812 = vunpack.c.0.s8 %v811
    %v813 = vlaneseq
    %v814 = vshrl.u32 %v813, 7
    %v815 = vsub.s32 %v812, %v814
    %v816 = vrot.slane %v802, %v815
    %v818 = vunpack.c.l.s4 1966171168
    %v819 = vunpack.c.0.s8 %v818
    %v820 = vlaneseq
    %v821 = vshrl.u32 %v820, 7
    %v822 = vsub.s32 %v819, %v821
    %v823 = vrot.slane %v39, %v822
    %v824 = vcombine.high %v823, %v823
    %v826 = vunpack.c.l.s4 1966171168
    %v827 = vunpack.c.0.s8 %v826
    %v828 = vlaneseq
    %v829 = vshrl.u32 %v828, 7
    %v830 = vsub.s32 %v827, %v829
    %v831 = vrot.slane %v823, %v830
    %v833 = vunpack.c.l.s4 1966171168
    %v834 = vunpack.c.0.s8 %v833
    %v835 = vlaneseq
    %v836 = vshrl.u32 %v835, 7
    %v837 = vsub.s32 %v834, %v836
    %v838 = vrot.slane %v824, %v837
    %v840 = vunpack.c.l.s4 1966171168
    %v841 = vunpack.c.0.s8 %v840
    %v842 = vlaneseq
    %v843 = vshrl.u32 %v842, 7
    %v844 = vsub.s32 %v841, %v843
    %v845 = vrot.slane %v40, %v844
    %v846 = vcombine.high %v845, %v845
    %v848 = vunpack.c.l.s4 1966171168
    %v849 = vunpack.c.0.s8 %v848
    %v850 = vlaneseq
    %v851 = vshrl.u32 %v850, 7
    %v852 = vsub.s32 %v849, %v851
    %v853 = vrot.slane %v845, %v852
    %v855 = vunpack.c.l.s4 1966171168
    %v856 = vunpack.c.0.s8 %v855
    %v857 = vlaneseq
    %v858 = vshrl.u32 %v857, 7
    %v859 = vsub.s32 %v856, %v858
    %v860 = vrot.slane %v846, %v859
    %v862 = vunpack.c.l.s4 1966171168
    %v863 = vunpack.c.0.s8 %v862
    %v864 = vlaneseq
    %v865 = vshrl.u32 %v864, 7
    %v866 = vsub.s32 %v863, %v865
    %v867 = vrot.slane %v41, %v866
    %v868 = vcombine.high %v867, %v867
    %v870 = vunpack.c.l.s4 1966171168
    %v871 = vunpack.c.0.s8 %v870
    %v872 = vlaneseq
    %v873 = vshrl.u32 %v872, 7
    %v874 = vsub.s32 %v871, %v873
    %v875 = vrot.slane %v867, %v874
    %v877 = vunpack.c.l.s4 1966171168
    %v878 = vunpack.c.0.s8 %v877
    %v879 = vlaneseq
    %v880 = vshrl.u32 %v879, 7
    %v881 = vsub.s32 %v878, %v880
    %v882 = vrot.slane %v868, %v881
    %v884 = vunpack.c.l.s4 1966171168
    %v885 = vunpack.c.0.s8 %v884
    %v886 = vlaneseq
    %v887 = vshrl.u32 %v886, 7
    %v888 = vsub.s32 %v885, %v887
    %v889 = vrot.slane %v42, %v888
    %v890 = vcombine.high %v889, %v889
    %v892 = vunpack.c.l.s4 1966171168
    %v893 = vunpack.c.0.s8 %v892
    %v894 = vlaneseq
    %v895 = vshrl.u32 %v894, 7
    %v896 = vsub.s32 %v893, %v895
    %v897 = vrot.slane %v889, %v896
    %v899 = vunpack.c.l.s4 1966171168
    %v900 = vunpack.c.0.s8 %v899
    %v901 = vlaneseq
    %v902 = vshrl.u32 %v901, 7
    %v903 = vsub.s32 %v900, %v902
    %v904 = vrot.slane %v890, %v903
    %v906 = vunpack.c.l.s4 1966171168
    %v907 = vunpack.c.0.s8 %v906
    %v908 = vlaneseq
    %v909 = vshrl.u32 %v908, 7
    %v910 = vsub.s32 %v907, %v909
    %v911 = vrot.slane %v43, %v910
    %v912 = vcombine.high %v911, %v911
    %v914 = vunpack.c.l.s4 1966171168
    %v915 = vunpack.c.0.s8 %v914
    %v916 = vlaneseq
    %v917 = vshrl.u32 %v916, 7
    %v918 = vsub.s32 %v915, %v917
    %v919 = vrot.slane %v911, %v918
    %v921 = vunpack.c.l.s4 1966171168
    %v922 = vunpack.c.0.s8 %v921
    %v923 = vlaneseq
    %v924 = vshrl.u32 %v923, 7
    %v925 = vsub.s32 %v922, %v924
    %v926 = vrot.slane %v912, %v925
    %v928 = vunpack.c.l.s4 1966171168
    %v929 = vunpack.c.0.s8 %v928
    %v930 = vlaneseq
    %v931 = vshrl.u32 %v930, 7
    %v932 = vsub.s32 %v929, %v931
    %v933 = vrot.slane %v44, %v932
    %v934 = vcombine.high %v933, %v933
    %v936 = vunpack.c.l.s4 1966171168
    %v937 = vunpack.c.0.s8 %v936
    %v938 = vlaneseq
    %v939 = vshrl.u32 %v938, 7
    %v940 = vsub.s32 %v937, %v939
    %v941 = vrot.slane %v933, %v940
    %v943 = vunpack.c.l.s4 1966171168
    %v944 = vunpack.c.0.s8 %v943
    %v945 = vlaneseq
    %v946 = vshrl.u32 %v945, 7
    %v947 = vsub.s32 %v944, %v946
    %v948 = vrot.slane %v934, %v947
    %v950 = vunpack.c.l.s4 1966171168
    %v951 = vunpack.c.0.s8 %v950
    %v952 = vlaneseq
    %v953 = vshrl.u32 %v952, 7
    %v954 = vsub.s32 %v951, %v953
    %v955 = vrot.slane %v45, %v954
    %v956 = vcombine.high %v955, %v955
    %v958 = vunpack.c.l.s4 1966171168
    %v959 = vunpack.c.0.s8 %v958
    %v960 = vlaneseq
    %v961 = vshrl.u32 %v960, 7
    %v962 = vsub.s32 %v959, %v961
    %v963 = vrot.slane %v955, %v962
    %v965 = vunpack.c.l.s4 1966171168
    %v966 = vunpack.c.0.s8 %v965
    %v967 = vlaneseq
    %v968 = vshrl.u32 %v967, 7
    %v969 = vsub.s32 %v966, %v968
    %v970 = vrot.slane %v956, %v969
    %v972 = vunpack.c.l.s4 1966171168
    %v973 = vunpack.c.0.s8 %v972
    %v974 = vlaneseq
    %v975 = vshrl.u32 %v974, 7
    %v976 = vsub.s32 %v973, %v975
    %v977 = vrot.slane %v46, %v976
    %v978 = vcombine.high %v977, %v977
    %v980 = vunpack.c.l.s4 1966171168
    %v981 = vunpack.c.0.s8 %v980
    %v982 = vlaneseq
    %v983 = vshrl.u32 %v982, 7
    %v984 = vsub.s32 %v981, %v983
    %v985 = vrot.slane %v977, %v984
    %v987 = vunpack.c.l.s4 1966171168
    %v988 = vunpack.c.0.s8 %v987
    %v989 = vlaneseq
    %v990 = vshrl.u32 %v989, 7
    %v991 = vsub.s32 %v988, %v990
    %v992 = vrot.slane %v978, %v991
    %v994 = vunpack.c.l.s4 1966171168
    %v995 = vunpack.c.0.s8 %v994
    %v996 = vlaneseq
    %v997 = vshrl.u32 %v996, 7
    %v998 = vsub.s32 %v995, %v997
    %v999 = vrot.slane %v47, %v998
    %v1000 = vcombine.high %v999, %v999
    %v1002 = vunpack.c.l.s4 1966171168
    %v1003 = vunpack.c.0.s8 %v1002
    %v1004 = vlaneseq
    %v1005 = vshrl.u32 %v1004, 7
    %v1006 = vsub.s32 %v1003, %v1005
    %v1007 = vrot.slane %v999, %v1006
    %v1009 = vunpack.c.l.s4 1966171168
    %v1010 = vunpack.c.0.s8 %v1009
    %v1011 = vlaneseq
    %v1012 = vshrl.u32 %v1011, 7
    %v1013 = vsub.s32 %v1010, %v1012
    %v1014 = vrot.slane %v1000, %v1013
    %v1016 = vunpack.c.l.s4 1966171168
    %v1017 = vunpack.c.0.s8 %v1016
    %v1018 = vlaneseq
    %v1019 = vshrl.u32 %v1018, 7
    %v1020 = vsub.s32 %v1017, %v1019
    %v1021 = vrot.slane %v48, %v1020
    %v1022 = vcombine.high %v1021, %v1021
    %v1024 = vunpack.c.l.s4 1966171168
    %v1025 = vunpack.c.0.s8 %v1024
    %v1026 = vlaneseq
    %v1027 = vshrl.u32 %v1026, 7
    %v1028 = vsub.s32 %v1025, %v1027
    %v1029 = vrot.slane %v1021, %v1028
    %v1031 = vunpack.c.l.s4 1966171168
    %v1032 = vunpack.c.0.s8 %v1031
    %v1033 = vlaneseq
    %v1034 = vshrl.u32 %v1033, 7
    %v1035 = vsub.s32 %v1032, %v1034
    %v1036 = vrot.slane %v1022, %v1035
    %v1038 = vunpack.c.l.s4 1966171168
    %v1039 = vunpack.c.0.s8 %v1038
    %v1040 = vlaneseq
    %v1041 = vshrl.u32 %v1040, 7
    %v1042 = vsub.s32 %v1039, %v1041
    %v1043 = vrot.slane %v49, %v1042
    %v1044 = vcombine.high %v1043, %v1043
    %v1046 = vunpack.c.l.s4 1966171168
    %v1047 = vunpack.c.0.s8 %v1046
    %v1048 = vlaneseq
    %v1049 = vshrl.u32 %v1048, 7
    %v1050 = vsub.s32 %v1047, %v1049
    %v1051 = vrot.slane %v1043, %v1050
    %v1053 = vunpack.c.l.s4 1966171168
    %v1054 = vunpack.c.0.s8 %v1053
    %v1055 = vlaneseq
    %v1056 = vshrl.u32 %v1055, 7
    %v1057 = vsub.s32 %v1054, %v1056
    %v1058 = vrot.slane %v1044, %v1057
    %v1060 = vunpack.c.l.s4 1966171168
    %v1061 = vunpack.c.0.s8 %v1060
    %v1062 = vlaneseq
    %v1063 = vshrl.u32 %v1062, 7
    %v1064 = vsub.s32 %v1061, %v1063
    %v1065 = vrot.slane %v50, %v1064
    %v1066 = vcombine.high %v1065, %v1065
    %v1068 = vunpack.c.l.s4 1966171168
    %v1069 = vunpack.c.0.s8 %v1068
    %v1070 = vlaneseq
    %v1071 = vshrl.u32 %v1070, 7
    %v1072 = vsub.s32 %v1069, %v1071
    %v1073 = vrot.slane %v1065, %v1072
    %v1075 = vunpack.c.l.s4 1966171168
    %v1076 = vunpack.c.0.s8 %v1075
    %v1077 = vlaneseq
    %v1078 = vshrl.u32 %v1077, 7
    %v1079 = vsub.s32 %v1076, %v1078
    %v1080 = vrot.slane %v1066, %v1079
    %v1082 = vunpack.c.l.s4 1966171168
    %v1083 = vunpack.c.0.s8 %v1082
    %v1084 = vlaneseq
    %v1085 = vshrl.u32 %v1084, 7
    %v1086 = vsub.s32 %v1083, %v1085
    %v1087 = vrot.slane %v51, %v1086
    %v1088 = vcombine.high %v1087, %v1087
    %v1090 = vunpack.c.l.s4 1966171168
    %v1091 = vunpack.c.0.s8 %v1090
    %v1092 = vlaneseq
    %v1093 = vshrl.u32 %v1092, 7
    %v1094 = vsub.s32 %v1091, %v1093
    %v1095 = vrot.slane %v1087, %v1094
    %v1097 = vunpack.c.l.s4 1966171168
    %v1098 = vunpack.c.0.s8 %v1097
    %v1099 = vlaneseq
    %v1100 = vshrl.u32 %v1099, 7
    %v1101 = vsub.s32 %v1098, %v1100
    %v1102 = vrot.slane %v1088, %v1101
    %v1104 = vunpack.c.l.s4 1966171168
    %v1105 = vunpack.c.0.s8 %v1104
    %v1106 = vlaneseq
    %v1107 = vshrl.u32 %v1106, 7
    %v1108 = vsub.s32 %v1105, %v1107
    %v1109 = vrot.slane %v52, %v1108
    %v1110 = vcombine.high %v1109, %v1109
    %v1112 = vunpack.c.l.s4 1966171168
    %v1113 = vunpack.c.0.s8 %v1112
    %v1114 = vlaneseq
    %v1115 = vshrl.u32 %v1114, 7
    %v1116 = vsub.s32 %v1113, %v1115
    %v1117 = vrot.slane %v1109, %v1116
    %v1119 = vunpack.c.l.s4 1966171168
    %v1120 = vunpack.c.0.s8 %v1119
    %v1121 = vlaneseq
    %v1122 = vshrl.u32 %v1121, 7
    %v1123 = vsub.s32 %v1120, %v1122
    %v1124 = vrot.slane %v1110, %v1123
    %v1126 = vunpack.c.l.s4 1966171168
    %v1127 = vunpack.c.0.s8 %v1126
    %v1128 = vlaneseq
    %v1129 = vshrl.u32 %v1128, 7
    %v1130 = vsub.s32 %v1127, %v1129
    %v1131 = vrot.slane %v53, %v1130
    %v1132 = vcombine.high %v1131, %v1131
    %v1134 = vunpack.c.l.s4 1966171168
    %v1135 = vunpack.c.0.s8 %v1134
    %v1136 = vlaneseq
    %v1137 = vshrl.u32 %v1136, 7
    %v1138 = vsub.s32 %v1135, %v1137
    %v1139 = vrot.slane %v1131, %v1138
    %v1141 = vunpack.c.l.s4 1966171168
    %v1142 = vunpack.c.0.s8 %v1141
    %v1143 = vlaneseq
    %v1144 = vshrl.u32 %v1143, 7
    %v1145 = vsub.s32 %v1142, %v1144
    %v1146 = vrot.slane %v1132, %v1145
    %v1148 = vunpack.c.l.s4 1966171168
    %v1149 = vunpack.c.0.s8 %v1148
    %v1150 = vlaneseq
    %v1151 = vshrl.u32 %v1150, 7
    %v1152 = vsub.s32 %v1149, %v1151
    %v1153 = vrot.slane %v54, %v1152
    %v1154 = vcombine.high %v1153, %v1153
    %v1156 = vunpack.c.l.s4 1966171168
    %v1157 = vunpack.c.0.s8 %v1156
    %v1158 = vlaneseq
    %v1159 = vshrl.u32 %v1158, 7
    %v1160 = vsub.s32 %v1157, %v1159
    %v1161 = vrot.slane %v1153, %v1160
    %v1163 = vunpack.c.l.s4 1966171168
    %v1164 = vunpack.c.0.s8 %v1163
    %v1165 = vlaneseq
    %v1166 = vshrl.u32 %v1165, 7
    %v1167 = vsub.s32 %v1164, %v1166
    %v1168 = vrot.slane %v1154, %v1167
    %v1170 = vunpack.c.l.s4 1966171168
    %v1171 = vunpack.c.0.s8 %v1170
    %v1172 = vlaneseq
    %v1173 = vshrl.u32 %v1172, 7
    %v1174 = vsub.s32 %v1171, %v1173
    %v1175 = vrot.slane %v55, %v1174
    %v1176 = vcombine.high %v1175, %v1175
    %v1178 = vunpack.c.l.s4 1966171168
    %v1179 = vunpack.c.0.s8 %v1178
    %v1180 = vlaneseq
    %v1181 = vshrl.u32 %v1180, 7
    %v1182 = vsub.s32 %v1179, %v1181
    %v1183 = vrot.slane %v1175, %v1182
    %v1185 = vunpack.c.l.s4 1966171168
    %v1186 = vunpack.c.0.s8 %v1185
    %v1187 = vlaneseq
    %v1188 = vshrl.u32 %v1187, 7
    %v1189 = vsub.s32 %v1186, %v1188
    %v1190 = vrot.slane %v1176, %v1189
    %v1192 = vunpack.c.l.s4 1966171168
    %v1193 = vunpack.c.0.s8 %v1192
    %v1194 = vlaneseq
    %v1195 = vshrl.u32 %v1194, 7
    %v1196 = vsub.s32 %v1193, %v1195
    %v1197 = vrot.slane %v56, %v1196
    %v1198 = vcombine.high %v1197, %v1197
    %v1200 = vunpack.c.l.s4 1966171168
    %v1201 = vunpack.c.0.s8 %v1200
    %v1202 = vlaneseq
    %v1203 = vshrl.u32 %v1202, 7
    %v1204 = vsub.s32 %v1201, %v1203
    %v1205 = vrot.slane %v1197, %v1204
    %v1207 = vunpack.c.l.s4 1966171168
    %v1208 = vunpack.c.0.s8 %v1207
    %v1209 = vlaneseq
    %v1210 = vshrl.u32 %v1209, 7
    %v1211 = vsub.s32 %v1208, %v1210
    %v1212 = vrot.slane %v1198, %v1211
    %v1214 = vunpack.c.l.s4 1966171168
    %v1215 = vunpack.c.0.s8 %v1214
    %v1216 = vlaneseq
    %v1217 = vshrl.u32 %v1216, 7
    %v1218 = vsub.s32 %v1215, %v1217
    %v1219 = vrot.slane %v57, %v1218
    %v1220 = vcombine.high %v1219, %v1219
    %v1222 = vunpack.c.l.s4 1966171168
    %v1223 = vunpack.c.0.s8 %v1222
    %v1224 = vlaneseq
    %v1225 = vshrl.u32 %v1224, 7
    %v1226 = vsub.s32 %v1223, %v1225
    %v1227 = vrot.slane %v1219, %v1226
    %v1229 = vunpack.c.l.s4 1966171168
    %v1230 = vunpack.c.0.s8 %v1229
    %v1231 = vlaneseq
    %v1232 = vshrl.u32 %v1231, 7
    %v1233 = vsub.s32 %v1230, %v1232
    %v1234 = vrot.slane %v1220, %v1233
    %v1236 = vunpack.c.l.s4 1966171168
    %v1237 = vunpack.c.0.s8 %v1236
    %v1238 = vlaneseq
    %v1239 = vshrl.u32 %v1238, 7
    %v1240 = vsub.s32 %v1237, %v1239
    %v1241 = vrot.slane %v58, %v1240
    %v1242 = vcombine.high %v1241, %v1241
    %v1244 = vunpack.c.l.s4 1966171168
    %v1245 = vunpack.c.0.s8 %v1244
    %v1246 = vlaneseq
    %v1247 = vshrl.u32 %v1246, 7
    %v1248 = vsub.s32 %v1245, %v1247
    %v1249 = vrot.slane %v1241, %v1248
    %v1251 = vunpack.c.l.s4 1966171168
    %v1252 = vunpack.c.0.s8 %v1251
    %v1253 = vlaneseq
    %v1254 = vshrl.u32 %v1253, 7
    %v1255 = vsub.s32 %v1252, %v1254
    %v1256 = vrot.slane %v1242, %v1255
    %v1258 = vunpack.c.l.s4 1966171168
    %v1259 = vunpack.c.0.s8 %v1258
    %v1260 = vlaneseq
    %v1261 = vshrl.u32 %v1260, 7
    %v1262 = vsub.s32 %v1259, %v1261
    %v1263 = vrot.slane %v59, %v1262
    %v1264 = vcombine.high %v1263, %v1263
    %v1266 = vunpack.c.l.s4 1966171168
    %v1267 = vunpack.c.0.s8 %v1266
    %v1268 = vlaneseq
    %v1269 = vshrl.u32 %v1268, 7
    %v1270 = vsub.s32 %v1267, %v1269
    %v1271 = vrot.slane %v1263, %v1270
    %v1273 = vunpack.c.l.s4 1966171168
    %v1274 = vunpack.c.0.s8 %v1273
    %v1275 = vlaneseq
    %v1276 = vshrl.u32 %v1275, 7
    %v1277 = vsub.s32 %v1274, %v1276
    %v1278 = vrot.slane %v1264, %v1277
    %v1280 = vunpack.c.l.s4 1966171168
    %v1281 = vunpack.c.0.s8 %v1280
    %v1282 = vlaneseq
    %v1283 = vshrl.u32 %v1282, 7
    %v1284 = vsub.s32 %v1281, %v1283
    %v1285 = vrot.slane %v60, %v1284
    %v1286 = vcombine.high %v1285, %v1285
    %v1288 = vunpack.c.l.s4 1966171168
    %v1289 = vunpack.c.0.s8 %v1288
    %v1290 = vlaneseq
    %v1291 = vshrl.u32 %v1290, 7
    %v1292 = vsub.s32 %v1289, %v1291
    %v1293 = vrot.slane %v1285, %v1292
    %v1295 = vunpack.c.l.s4 1966171168
    %v1296 = vunpack.c.0.s8 %v1295
    %v1297 = vlaneseq
    %v1298 = vshrl.u32 %v1297, 7
    %v1299 = vsub.s32 %v1296, %v1298
    %v1300 = vrot.slane %v1286, %v1299
    %v1302 = vunpack.c.l.s4 1966171168
    %v1303 = vunpack.c.0.s8 %v1302
    %v1304 = vlaneseq
    %v1305 = vshrl.u32 %v1304, 7
    %v1306 = vsub.s32 %v1303, %v1305
    %v1307 = vrot.slane %v61, %v1306
    %v1308 = vcombine.high %v1307, %v1307
    %v1310 = vunpack.c.l.s4 1966171168
    %v1311 = vunpack.c.0.s8 %v1310
    %v1312 = vlaneseq
    %v1313 = vshrl.u32 %v1312, 7
    %v1314 = vsub.s32 %v1311, %v1313
    %v1315 = vrot.slane %v1307, %v1314
    %v1317 = vunpack.c.l.s4 1966171168
    %v1318 = vunpack.c.0.s8 %v1317
    %v1319 = vlaneseq
    %v1320 = vshrl.u32 %v1319, 7
    %v1321 = vsub.s32 %v1318, %v1320
    %v1322 = vrot.slane %v1308, %v1321
    %v1324 = vunpack.c.l.s4 1966171168
    %v1325 = vunpack.c.0.s8 %v1324
    %v1326 = vlaneseq
    %v1327 = vshrl.u32 %v1326, 7
    %v1328 = vsub.s32 %v1325, %v1327
    %v1329 = vrot.slane %v62, %v1328
    %v1330 = vcombine.high %v1329, %v1329
    %v1332 = vunpack.c.l.s4 1966171168
    %v1333 = vunpack.c.0.s8 %v1332
    %v1334 = vlaneseq
    %v1335 = vshrl.u32 %v1334, 7
    %v1336 = vsub.s32 %v1333, %v1335
    %v1337 = vrot.slane %v1329, %v1336
    %v1339 = vunpack.c.l.s4 1966171168
    %v1340 = vunpack.c.0.s8 %v1339
    %v1341 = vlaneseq
    %v1342 = vshrl.u32 %v1341, 7
    %v1343 = vsub.s32 %v1340, %v1342
    %v1344 = vrot.slane %v1330, %v1343
    %v1346 = vunpack.c.l.s4 1966171168
    %v1347 = vunpack.c.0.s8 %v1346
    %v1348 = vlaneseq
    %v1349 = vshrl.u32 %v1348, 7
    %v1350 = vsub.s32 %v1347, %v1349
    %v1351 = vrot.slane %v63, %v1350
    %v1352 = vcombine.high %v1351, %v1351
    %v1354 = vunpack.c.l.s4 1966171168
    %v1355 = vunpack.c.0.s8 %v1354
    %v1356 = vlaneseq
    %v1357 = vshrl.u32 %v1356, 7
    %v1358 = vsub.s32 %v1355, %v1357
    %v1359 = vrot.slane %v1351, %v1358
    %v1361 = vunpack.c.l.s4 1966171168
    %v1362 = vunpack.c.0.s8 %v1361
    %v1363 = vlaneseq
    %v1364 = vshrl.u32 %v1363, 7
    %v1365 = vsub.s32 %v1362, %v1364
    %v1366 = vrot.slane %v1352, %v1365
    %v1368 = vunpack.c.l.s4 1966171168
    %v1369 = vunpack.c.0.s8 %v1368
    %v1370 = vlaneseq
    %v1371 = vshrl.u32 %v1370, 7
    %v1372 = vsub.s32 %v1369, %v1371
    %v1373 = vrot.slane %v64, %v1372
    %v1374 = vcombine.high %v1373, %v1373
    %v1376 = vunpack.c.l.s4 1966171168
    %v1377 = vunpack.c.0.s8 %v1376
    %v1378 = vlaneseq
    %v1379 = vshrl.u32 %v1378, 7
    %v1380 = vsub.s32 %v1377, %v1379
    %v1381 = vrot.slane %v1373, %v1380
    %v1383 = vunpack.c.l.s4 1966171168
    %v1384 = vunpack.c.0.s8 %v1383
    %v1385 = vlaneseq
    %v1386 = vshrl.u32 %v1385, 7
    %v1387 = vsub.s32 %v1384, %v1386
    %v1388 = vrot.slane %v1374, %v1387
    %v1390 = vunpack.c.l.s4 1966171168
    %v1391 = vunpack.c.0.s8 %v1390
    %v1392 = vlaneseq
    %v1393 = vshrl.u32 %v1392, 7
    %v1394 = vsub.s32 %v1391, %v1393
    %v1395 = vrot.slane %v65, %v1394
    %v1396 = vcombine.high %v1395, %v1395
    %v1398 = vunpack.c.l.s4 1966171168
    %v1399 = vunpack.c.0.s8 %v1398
    %v1400 = vlaneseq
    %v1401 = vshrl.u32 %v1400, 7
    %v1402 = vsub.s32 %v1399, %v1401
    %v1403 = vrot.slane %v1395, %v1402
    %v1405 = vunpack.c.l.s4 1966171168
    %v1406 = vunpack.c.0.s8 %v1405
    %v1407 = vlaneseq
    %v1408 = vshrl.u32 %v1407, 7
    %v1409 = vsub.s32 %v1406, %v1408
    %v1410 = vrot.slane %v1396, %v1409
    %v1412 = vunpack.c.l.s4 1966171168
    %v1413 = vunpack.c.0.s8 %v1412
    %v1414 = vlaneseq
    %v1415 = vshrl.u32 %v1414, 7
    %v1416 = vsub.s32 %v1413, %v1415
    %v1417 = vrot.slane %v66, %v1416
    %v1418 = vcombine.high %v1417, %v1417
    %v1420 = vunpack.c.l.s4 1966171168
    %v1421 = vunpack.c.0.s8 %v1420
    %v1422 = vlaneseq
    %v1423 = vshrl.u32 %v1422, 7
    %v1424 = vsub.s32 %v1421, %v1423
    %v1425 = vrot.slane %v1417, %v1424
    %v1427 = vunpack.c.l.s4 1966171168
    %v1428 = vunpack.c.0.s8 %v1427
    %v1429 = vlaneseq
    %v1430 = vshrl.u32 %v1429, 7
    %v1431 = vsub.s32 %v1428, %v1430
    %v1432 = vrot.slane %v1418, %v1431
    %v1434 = vunpack.c.l.s4 1966171168
    %v1435 = vunpack.c.0.s8 %v1434
    %v1436 = vlaneseq
    %v1437 = vshrl.u32 %v1436, 7
    %v1438 = vsub.s32 %v1435, %v1437
    %v1439 = vrot.slane %v67, %v1438
    %v1440 = vcombine.high %v1439, %v1439
    %v1442 = vunpack.c.l.s4 1966171168
    %v1443 = vunpack.c.0.s8 %v1442
    %v1444 = vlaneseq
    %v1445 = vshrl.u32 %v1444, 7
    %v1446 = vsub.s32 %v1443, %v1445
    %v1447 = vrot.slane %v1439, %v1446
    %v1449 = vunpack.c.l.s4 1966171168
    %v1450 = vunpack.c.0.s8 %v1449
    %v1451 = vlaneseq
    %v1452 = vshrl.u32 %v1451, 7
    %v1453 = vsub.s32 %v1450, %v1452
    %v1454 = vrot.slane %v1440, %v1453
    %v1456 = vunpack.c.l.s4 1966171168
    %v1457 = vunpack.c.0.s8 %v1456
    %v1458 = vlaneseq
    %v1459 = vshrl.u32 %v1458, 7
    %v1460 = vsub.s32 %v1457, %v1459
    %v1461 = vrot.slane %v68, %v1460
    %v1462 = vcombine.high %v1461, %v1461
    %v1464 = vunpack.c.l.s4 1966171168
    %v1465 = vunpack.c.0.s8 %v1464
    %v1466 = vlaneseq
    %v1467 = vshrl.u32 %v1466, 7
    %v1468 = vsub.s32 %v1465, %v1467
    %v1469 = vrot.slane %v1461, %v1468
    %v1471 = vunpack.c.l.s4 1966171168
    %v1472 = vunpack.c.0.s8 %v1471
    %v1473 = vlaneseq
    %v1474 = vshrl.u32 %v1473, 7
    %v1475 = vsub.s32 %v1472, %v1474
    %v1476 = vrot.slane %v1462, %v1475
    %v1478 = vunpack.c.l.s4 1966171168
    %v1479 = vunpack.c.0.s8 %v1478
    %v1480 = vlaneseq
    %v1481 = vshrl.u32 %v1480, 7
    %v1482 = vsub.s32 %v1479, %v1481
    %v1483 = vrot.slane %v69, %v1482
    %v1484 = vcombine.high %v1483, %v1483
    %v1486 = vunpack.c.l.s4 1966171168
    %v1487 = vunpack.c.0.s8 %v1486
    %v1488 = vlaneseq
    %v1489 = vshrl.u32 %v1488, 7
    %v1490 = vsub.s32 %v1487, %v1489
    %v1491 = vrot.slane %v1483, %v1490
    %v1493 = vunpack.c.l.s4 1966171168
    %v1494 = vunpack.c.0.s8 %v1493
    %v1495 = vlaneseq
    %v1496 = vshrl.u32 %v1495, 7
    %v1497 = vsub.s32 %v1494, %v1496
    %v1498 = vrot.slane %v1484, %v1497
    %v1500 = vunpack.c.l.s4 1966171168
    %v1501 = vunpack.c.0.s8 %v1500
    %v1502 = vlaneseq
    %v1503 = vshrl.u32 %v1502, 7
    %v1504 = vsub.s32 %v1501, %v1503
    %v1505 = vrot.slane %v70, %v1504
    %v1506 = vcombine.high %v1505, %v1505
    %v1508 = vunpack.c.l.s4 1966171168
    %v1509 = vunpack.c.0.s8 %v1508
    %v1510 = vlaneseq
    %v1511 = vshrl.u32 %v1510, 7
    %v1512 = vsub.s32 %v1509, %v1511
    %v1513 = vrot.slane %v1505, %v1512
    %v1515 = vunpack.c.l.s4 1966171168
    %v1516 = vunpack.c.0.s8 %v1515
    %v1517 = vlaneseq
    %v1518 = vshrl.u32 %v1517, 7
    %v1519 = vsub.s32 %v1516, %v1518
    %v1520 = vrot.slane %v1506, %v1519
    %v1522 = vunpack.c.l.s4 1966171168
    %v1523 = vunpack.c.0.s8 %v1522
    %v1524 = vlaneseq
    %v1525 = vshrl.u32 %v1524, 7
    %v1526 = vsub.s32 %v1523, %v1525
    %v1527 = vrot.slane %v71, %v1526
    %v1528 = vcombine.high %v1527, %v1527
    %v1530 = vunpack.c.l.s4 1966171168
    %v1531 = vunpack.c.0.s8 %v1530
    %v1532 = vlaneseq
    %v1533 = vshrl.u32 %v1532, 7
    %v1534 = vsub.s32 %v1531, %v1533
    %v1535 = vrot.slane %v1527, %v1534
    %v1537 = vunpack.c.l.s4 1966171168
    %v1538 = vunpack.c.0.s8 %v1537
    %v1539 = vlaneseq
    %v1540 = vshrl.u32 %v1539, 7
    %v1541 = vsub.s32 %v1538, %v1540
    %v1542 = vrot.slane %v1528, %v1541
    %v1544 = vunpack.c.l.s4 1966171168
    %v1545 = vunpack.c.0.s8 %v1544
    %v1546 = vlaneseq
    %v1547 = vshrl.u32 %v1546, 7
    %v1548 = vsub.s32 %v1545, %v1547
    %v1549 = vrot.slane %v72, %v1548
    %v1550 = vcombine.high %v1549, %v1549
    %v1552 = vunpack.c.l.s4 1966171168
    %v1553 = vunpack.c.0.s8 %v1552
    %v1554 = vlaneseq
    %v1555 = vshrl.u32 %v1554, 7
    %v1556 = vsub.s32 %v1553, %v1555
    %v1557 = vrot.slane %v1549, %v1556
    %v1559 = vunpack.c.l.s4 1966171168
    %v1560 = vunpack.c.0.s8 %v1559
    %v1561 = vlaneseq
    %v1562 = vshrl.u32 %v1561, 7
    %v1563 = vsub.s32 %v1560, %v1562
    %v1564 = vrot.slane %v1550, %v1563
    %v1566 = vunpack.c.l.s4 1966171168
    %v1567 = vunpack.c.0.s8 %v1566
    %v1568 = vlaneseq
    %v1569 = vshrl.u32 %v1568, 7
    %v1570 = vsub.s32 %v1567, %v1569
    %v1571 = vrot.slane %v73, %v1570
    %v1572 = vcombine.high %v1571, %v1571
    %v1574 = vunpack.c.l.s4 1966171168
    %v1575 = vunpack.c.0.s8 %v1574
    %v1576 = vlaneseq
    %v1577 = vshrl.u32 %v1576, 7
    %v1578 = vsub.s32 %v1575, %v1577
    %v1579 = vrot.slane %v1571, %v1578
    %v1581 = vunpack.c.l.s4 1966171168
    %v1582 = vunpack.c.0.s8 %v1581
    %v1583 = vlaneseq
    %v1584 = vshrl.u32 %v1583, 7
    %v1585 = vsub.s32 %v1582, %v1584
    %v1586 = vrot.slane %v1572, %v1585
    %v1588 = vunpack.c.l.s4 1966171168
    %v1589 = vunpack.c.0.s8 %v1588
    %v1590 = vlaneseq
    %v1591 = vshrl.u32 %v1590, 7
    %v1592 = vsub.s32 %v1589, %v1591
    %v1593 = vrot.slane %v74, %v1592
    %v1594 = vcombine.high %v1593, %v1593
    %v1596 = vunpack.c.l.s4 1966171168
    %v1597 = vunpack.c.0.s8 %v1596
    %v1598 = vlaneseq
    %v1599 = vshrl.u32 %v1598, 7
    %v1600 = vsub.s32 %v1597, %v1599
    %v1601 = vrot.slane %v1593, %v1600
    %v1603 = vunpack.c.l.s4 1966171168
    %v1604 = vunpack.c.0.s8 %v1603
    %v1605 = vlaneseq
    %v1606 = vshrl.u32 %v1605, 7
    %v1607 = vsub.s32 %v1604, %v1606
    %v1608 = vrot.slane %v1594, %v1607
    %v1610 = vunpack.c.l.s4 1966171168
    %v1611 = vunpack.c.0.s8 %v1610
    %v1612 = vlaneseq
    %v1613 = vshrl.u32 %v1612, 7
    %v1614 = vsub.s32 %v1611, %v1613
    %v1615 = vrot.slane %v75, %v1614
    %v1616 = vcombine.high %v1615, %v1615
    %v1618 = vunpack.c.l.s4 1966171168
    %v1619 = vunpack.c.0.s8 %v1618
    %v1620 = vlaneseq
    %v1621 = vshrl.u32 %v1620, 7
    %v1622 = vsub.s32 %v1619, %v1621
    %v1623 = vrot.slane %v1615, %v1622
    %v1625 = vunpack.c.l.s4 1966171168
    %v1626 = vunpack.c.0.s8 %v1625
    %v1627 = vlaneseq
    %v1628 = vshrl.u32 %v1627, 7
    %v1629 = vsub.s32 %v1626, %v1628
    %v1630 = vrot.slane %v1616, %v1629
    %v1632 = vunpack.c.l.s4 1966171168
    %v1633 = vunpack.c.0.s8 %v1632
    %v1634 = vlaneseq
    %v1635 = vshrl.u32 %v1634, 7
    %v1636 = vsub.s32 %v1633, %v1635
    %v1637 = vrot.slane %v76, %v1636
    %v1638 = vcombine.high %v1637, %v1637
    %v1640 = vunpack.c.l.s4 1966171168
    %v1641 = vunpack.c.0.s8 %v1640
    %v1642 = vlaneseq
    %v1643 = vshrl.u32 %v1642, 7
    %v1644 = vsub.s32 %v1641, %v1643
    %v1645 = vrot.slane %v1637, %v1644
    %v1647 = vunpack.c.l.s4 1966171168
    %v1648 = vunpack.c.0.s8 %v1647
    %v1649 = vlaneseq
    %v1650 = vshrl.u32 %v1649, 7
    %v1651 = vsub.s32 %v1648, %v1650
    %v1652 = vrot.slane %v1638, %v1651
    %v1654 = vunpack.c.l.s4 1966171168
    %v1655 = vunpack.c.0.s8 %v1654
    %v1656 = vlaneseq
    %v1657 = vshrl.u32 %v1656, 7
    %v1658 = vsub.s32 %v1655, %v1657
    %v1659 = vrot.slane %v77, %v1658
    %v1660 = vcombine.high %v1659, %v1659
    %v1662 = vunpack.c.l.s4 1966171168
    %v1663 = vunpack.c.0.s8 %v1662
    %v1664 = vlaneseq
    %v1665 = vshrl.u32 %v1664, 7
    %v1666 = vsub.s32 %v1663, %v1665
    %v1667 = vrot.slane %v1659, %v1666
    %v1669 = vunpack.c.l.s4 1966171168
    %v1670 = vunpack.c.0.s8 %v1669
    %v1671 = vlaneseq
    %v1672 = vshrl.u32 %v1671, 7
    %v1673 = vsub.s32 %v1670, %v1672
    %v1674 = vrot.slane %v1660, %v1673
    %v1676 = vunpack.c.l.s4 1966171168
    %v1677 = vunpack.c.0.s8 %v1676
    %v1678 = vlaneseq
    %v1679 = vshrl.u32 %v1678, 7
    %v1680 = vsub.s32 %v1677, %v1679
    %v1681 = vrot.slane %v78, %v1680
    %v1682 = vcombine.high %v1681, %v1681
    %v1684 = vunpack.c.l.s4 1966171168
    %v1685 = vunpack.c.0.s8 %v1684
    %v1686 = vlaneseq
    %v1687 = vshrl.u32 %v1686, 7
    %v1688 = vsub.s32 %v1685, %v1687
    %v1689 = vrot.slane %v1681, %v1688
    %v1691 = vunpack.c.l.s4 1966171168
    %v1692 = vunpack.c.0.s8 %v1691
    %v1693 = vlaneseq
    %v1694 = vshrl.u32 %v1693, 7
    %v1695 = vsub.s32 %v1692, %v1694
    %v1696 = vrot.slane %v1682, %v1695
    %v1698 = vunpack.c.l.s4 1966171168
    %v1699 = vunpack.c.0.s8 %v1698
    %v1700 = vlaneseq
    %v1701 = vshrl.u32 %v1700, 7
    %v1702 = vsub.s32 %v1699, %v1701
    %v1703 = vrot.slane %v79, %v1702
    %v1704 = vcombine.high %v1703, %v1703
    %v1706 = vunpack.c.l.s4 1966171168
    %v1707 = vunpack.c.0.s8 %v1706
    %v1708 = vlaneseq
    %v1709 = vshrl.u32 %v1708, 7
    %v1710 = vsub.s32 %v1707, %v1709
    %v1711 = vrot.slane %v1703, %v1710
    %v1713 = vunpack.c.l.s4 1966171168
    %v1714 = vunpack.c.0.s8 %v1713
    %v1715 = vlaneseq
    %v1716 = vshrl.u32 %v1715, 7
    %v1717 = vsub.s32 %v1714, %v1716
    %v1718 = vrot.slane %v1704, %v1717
    %v1720 = vunpack.c.l.s4 1966171168
    %v1721 = vunpack.c.0.s8 %v1720
    %v1722 = vlaneseq
    %v1723 = vshrl.u32 %v1722, 7
    %v1724 = vsub.s32 %v1721, %v1723
    %v1725 = vrot.slane %v80, %v1724
    %v1726 = vcombine.high %v1725, %v1725
    %v1728 = vunpack.c.l.s4 1966171168
    %v1729 = vunpack.c.0.s8 %v1728
    %v1730 = vlaneseq
    %v1731 = vshrl.u32 %v1730, 7
    %v1732 = vsub.s32 %v1729, %v1731
    %v1733 = vrot.slane %v1725, %v1732
    %v1735 = vunpack.c.l.s4 1966171168
    %v1736 = vunpack.c.0.s8 %v1735
    %v1737 = vlaneseq
    %v1738 = vshrl.u32 %v1737, 7
    %v1739 = vsub.s32 %v1736, %v1738
    %v1740 = vrot.slane %v1726, %v1739
    %v1742 = vunpack.c.l.s4 1966171168
    %v1743 = vunpack.c.0.s8 %v1742
    %v1744 = vlaneseq
    %v1745 = vshrl.u32 %v1744, 7
    %v1746 = vsub.s32 %v1743, %v1745
    %v1747 = vrot.slane %v81, %v1746
    %v1748 = vcombine.high %v1747, %v1747
    %v1750 = vunpack.c.l.s4 1966171168
    %v1751 = vunpack.c.0.s8 %v1750
    %v1752 = vlaneseq
    %v1753 = vshrl.u32 %v1752, 7
    %v1754 = vsub.s32 %v1751, %v1753
    %v1755 = vrot.slane %v1747, %v1754
    %v1757 = vunpack.c.l.s4 1966171168
    %v1758 = vunpack.c.0.s8 %v1757
    %v1759 = vlaneseq
    %v1760 = vshrl.u32 %v1759, 7
    %v1761 = vsub.s32 %v1758, %v1760
    %v1762 = vrot.slane %v1748, %v1761
    %v1764 = vunpack.c.l.s4 1966171168
    %v1765 = vunpack.c.0.s8 %v1764
    %v1766 = vlaneseq
    %v1767 = vshrl.u32 %v1766, 7
    %v1768 = vsub.s32 %v1765, %v1767
    %v1769 = vrot.slane %v82, %v1768
    %v1770 = vcombine.high %v1769, %v1769
    %v1772 = vunpack.c.l.s4 1966171168
    %v1773 = vunpack.c.0.s8 %v1772
    %v1774 = vlaneseq
    %v1775 = vshrl.u32 %v1774, 7
    %v1776 = vsub.s32 %v1773, %v1775
    %v1777 = vrot.slane %v1769, %v1776
    %v1779 = vunpack.c.l.s4 1966171168
    %v1780 = vunpack.c.0.s8 %v1779
    %v1781 = vlaneseq
    %v1782 = vshrl.u32 %v1781, 7
    %v1783 = vsub.s32 %v1780, %v1782
    %v1784 = vrot.slane %v1770, %v1783
    %v1786 = vunpack.c.l.s4 1966171168
    %v1787 = vunpack.c.0.s8 %v1786
    %v1788 = vlaneseq
    %v1789 = vshrl.u32 %v1788, 7
    %v1790 = vsub.s32 %v1787, %v1789
    %v1791 = vrot.slane %v83, %v1790
    %v1792 = vcombine.high %v1791, %v1791
    %v1794 = vunpack.c.l.s4 1966171168
    %v1795 = vunpack.c.0.s8 %v1794
    %v1796 = vlaneseq
    %v1797 = vshrl.u32 %v1796, 7
    %v1798 = vsub.s32 %v1795, %v1797
    %v1799 = vrot.slane %v1791, %v1798
    %v1801 = vunpack.c.l.s4 1966171168
    %v1802 = vunpack.c.0.s8 %v1801
    %v1803 = vlaneseq
    %v1804 = vshrl.u32 %v1803, 7
    %v1805 = vsub.s32 %v1802, %v1804
    %v1806 = vrot.slane %v1792, %v1805
    %v1808 = vunpack.c.l.s4 1966171168
    %v1809 = vunpack.c.0.s8 %v1808
    %v1810 = vlaneseq
    %v1811 = vshrl.u32 %v1810, 7
    %v1812 = vsub.s32 %v1809, %v1811
    %v1813 = vrot.slane %v84, %v1812
    %v1814 = vcombine.high %v1813, %v1813
    %v1816 = vunpack.c.l.s4 1966171168
    %v1817 = vunpack.c.0.s8 %v1816
    %v1818 = vlaneseq
    %v1819 = vshrl.u32 %v1818, 7
    %v1820 = vsub.s32 %v1817, %v1819
    %v1821 = vrot.slane %v1813, %v1820
    %v1823 = vunpack.c.l.s4 1966171168
    %v1824 = vunpack.c.0.s8 %v1823
    %v1825 = vlaneseq
    %v1826 = vshrl.u32 %v1825, 7
    %v1827 = vsub.s32 %v1824, %v1826
    %v1828 = vrot.slane %v1814, %v1827
    %v1830 = vunpack.c.l.s4 1966171168
    %v1831 = vunpack.c.0.s8 %v1830
    %v1832 = vlaneseq
    %v1833 = vshrl.u32 %v1832, 7
    %v1834 = vsub.s32 %v1831, %v1833
    %v1835 = vrot.slane %v85, %v1834
    %v1836 = vcombine.high %v1835, %v1835
    %v1838 = vunpack.c.l.s4 1966171168
    %v1839 = vunpack.c.0.s8 %v1838
    %v1840 = vlaneseq
    %v1841 = vshrl.u32 %v1840, 7
    %v1842 = vsub.s32 %v1839, %v1841
    %v1843 = vrot.slane %v1835, %v1842
    %v1845 = vunpack.c.l.s4 1966171168
    %v1846 = vunpack.c.0.s8 %v1845
    %v1847 = vlaneseq
    %v1848 = vshrl.u32 %v1847, 7
    %v1849 = vsub.s32 %v1846, %v1848
    %v1850 = vrot.slane %v1836, %v1849
    %v1852 = vunpack.c.l.s4 1966171168
    %v1853 = vunpack.c.0.s8 %v1852
    %v1854 = vlaneseq
    %v1855 = vshrl.u32 %v1854, 7
    %v1856 = vsub.s32 %v1853, %v1855
    %v1857 = vrot.slane %v86, %v1856
    %v1858 = vcombine.high %v1857, %v1857
    %v1860 = vunpack.c.l.s4 1966171168
    %v1861 = vunpack.c.0.s8 %v1860
    %v1862 = vlaneseq
    %v1863 = vshrl.u32 %v1862, 7
    %v1864 = vsub.s32 %v1861, %v1863
    %v1865 = vrot.slane %v1857, %v1864
    %v1867 = vunpack.c.l.s4 1966171168
    %v1868 = vunpack.c.0.s8 %v1867
    %v1869 = vlaneseq
    %v1870 = vshrl.u32 %v1869, 7
    %v1871 = vsub.s32 %v1868, %v1870
    %v1872 = vrot.slane %v1858, %v1871
    %v1874 = vunpack.c.l.s4 1966171168
    %v1875 = vunpack.c.0.s8 %v1874
    %v1876 = vlaneseq
    %v1877 = vshrl.u32 %v1876, 7
    %v1878 = vsub.s32 %v1875, %v1877
    %v1879 = vrot.slane %v87, %v1878
    %v1880 = vcombine.high %v1879, %v1879
    %v1882 = vunpack.c.l.s4 1966171168
    %v1883 = vunpack.c.0.s8 %v1882
    %v1884 = vlaneseq
    %v1885 = vshrl.u32 %v1884, 7
    %v1886 = vsub.s32 %v1883, %v1885
    %v1887 = vrot.slane %v1879, %v1886
    %v1889 = vunpack.c.l.s4 1966171168
    %v1890 = vunpack.c.0.s8 %v1889
    %v1891 = vlaneseq
    %v1892 = vshrl.u32 %v1891, 7
    %v1893 = vsub.s32 %v1890, %v1892
    %v1894 = vrot.slane %v1880, %v1893
    %v1896 = vunpack.c.l.s4 1966171168
    %v1897 = vunpack.c.0.s8 %v1896
    %v1898 = vlaneseq
    %v1899 = vshrl.u32 %v1898, 7
    %v1900 = vsub.s32 %v1897, %v1899
    %v1901 = vrot.slane %v88, %v1900
    %v1902 = vcombine.high %v1901, %v1901
    %v1904 = vunpack.c.l.s4 1966171168
    %v1905 = vunpack.c.0.s8 %v1904
    %v1906 = vlaneseq
    %v1907 = vshrl.u32 %v1906, 7
    %v1908 = vsub.s32 %v1905, %v1907
    %v1909 = vrot.slane %v1901, %v1908
    %v1911 = vunpack.c.l.s4 1966171168
    %v1912 = vunpack.c.0.s8 %v1911
    %v1913 = vlaneseq
    %v1914 = vshrl.u32 %v1913, 7
    %v1915 = vsub.s32 %v1912, %v1914
    %v1916 = vrot.slane %v1902, %v1915
    %v1918 = vunpack.c.l.s4 1966171168
    %v1919 = vunpack.c.0.s8 %v1918
    %v1920 = vlaneseq
    %v1921 = vshrl.u32 %v1920, 7
    %v1922 = vsub.s32 %v1919, %v1921
    %v1923 = vrot.slane %v89, %v1922
    %v1924 = vcombine.high %v1923, %v1923
    %v1926 = vunpack.c.l.s4 1966171168
    %v1927 = vunpack.c.0.s8 %v1926
    %v1928 = vlaneseq
    %v1929 = vshrl.u32 %v1928, 7
    %v1930 = vsub.s32 %v1927, %v1929
    %v1931 = vrot.slane %v1923, %v1930
    %v1933 = vunpack.c.l.s4 1966171168
    %v1934 = vunpack.c.0.s8 %v1933
    %v1935 = vlaneseq
    %v1936 = vshrl.u32 %v1935, 7
    %v1937 = vsub.s32 %v1934, %v1936
    %v1938 = vrot.slane %v1924, %v1937
    %v1940 = vunpack.c.l.s4 1966171168
    %v1941 = vunpack.c.0.s8 %v1940
    %v1942 = vlaneseq
    %v1943 = vshrl.u32 %v1942, 7
    %v1944 = vsub.s32 %v1941, %v1943
    %v1945 = vrot.slane %v90, %v1944
    %v1946 = vcombine.high %v1945, %v1945
    %v1948 = vunpack.c.l.s4 1966171168
    %v1949 = vunpack.c.0.s8 %v1948
    %v1950 = vlaneseq
    %v1951 = vshrl.u32 %v1950, 7
    %v1952 = vsub.s32 %v1949, %v1951
    %v1953 = vrot.slane %v1945, %v1952
    %v1955 = vunpack.c.l.s4 1966171168
    %v1956 = vunpack.c.0.s8 %v1955
    %v1957 = vlaneseq
    %v1958 = vshrl.u32 %v1957, 7
    %v1959 = vsub.s32 %v1956, %v1958
    %v1960 = vrot.slane %v1946, %v1959
    %v1962 = vunpack.c.l.s4 1966171168
    %v1963 = vunpack.c.0.s8 %v1962
    %v1964 = vlaneseq
    %v1965 = vshrl.u32 %v1964, 7
    %v1966 = vsub.s32 %v1963, %v1965
    %v1967 = vrot.slane %v91, %v1966
    %v1968 = vcombine.high %v1967, %v1967
    %v1970 = vunpack.c.l.s4 1966171168
    %v1971 = vunpack.c.0.s8 %v1970
    %v1972 = vlaneseq
    %v1973 = vshrl.u32 %v1972, 7
    %v1974 = vsub.s32 %v1971, %v1973
    %v1975 = vrot.slane %v1967, %v1974
    %v1977 = vunpack.c.l.s4 1966171168
    %v1978 = vunpack.c.0.s8 %v1977
    %v1979 = vlaneseq
    %v1980 = vshrl.u32 %v1979, 7
    %v1981 = vsub.s32 %v1978, %v1980
    %v1982 = vrot.slane %v1968, %v1981
    %v1984 = vunpack.c.l.s4 1966171168
    %v1985 = vunpack.c.0.s8 %v1984
    %v1986 = vlaneseq
    %v1987 = vshrl.u32 %v1986, 7
    %v1988 = vsub.s32 %v1985, %v1987
    %v1989 = vrot.slane %v92, %v1988
    %v1990 = vcombine.high %v1989, %v1989
    %v1992 = vunpack.c.l.s4 1966171168
    %v1993 = vunpack.c.0.s8 %v1992
    %v1994 = vlaneseq
    %v1995 = vshrl.u32 %v1994, 7
    %v1996 = vsub.s32 %v1993, %v1995
    %v1997 = vrot.slane %v1989, %v1996
    %v1999 = vunpack.c.l.s4 1966171168
    %v2000 = vunpack.c.0.s8 %v1999
    %v2001 = vlaneseq
    %v2002 = vshrl.u32 %v2001, 7
    %v2003 = vsub.s32 %v2000, %v2002
    %v2004 = vrot.slane %v1990, %v2003
    %v2006 = vunpack.c.l.s4 1966171168
    %v2007 = vunpack.c.0.s8 %v2006
    %v2008 = vlaneseq
    %v2009 = vshrl.u32 %v2008, 7
    %v2010 = vsub.s32 %v2007, %v2009
    %v2011 = vrot.slane %v93, %v2010
    %v2012 = vcombine.high %v2011, %v2011
    %v2014 = vunpack.c.l.s4 1966171168
    %v2015 = vunpack.c.0.s8 %v2014
    %v2016 = vlaneseq
    %v2017 = vshrl.u32 %v2016, 7
    %v2018 = vsub.s32 %v2015, %v2017
    %v2019 = vrot.slane %v2011, %v2018
    %v2021 = vunpack.c.l.s4 1966171168
    %v2022 = vunpack.c.0.s8 %v2021
    %v2023 = vlaneseq
    %v2024 = vshrl.u32 %v2023, 7
    %v2025 = vsub.s32 %v2022, %v2024
    %v2026 = vrot.slane %v2012, %v2025
    %v2028 = vunpack.c.l.s4 1966171168
    %v2029 = vunpack.c.0.s8 %v2028
    %v2030 = vlaneseq
    %v2031 = vshrl.u32 %v2030, 7
    %v2032 = vsub.s32 %v2029, %v2031
    %v2033 = vrot.slane %v94, %v2032
    %v2034 = vcombine.high %v2033, %v2033
    %v2036 = vunpack.c.l.s4 1966171168
    %v2037 = vunpack.c.0.s8 %v2036
    %v2038 = vlaneseq
    %v2039 = vshrl.u32 %v2038, 7
    %v2040 = vsub.s32 %v2037, %v2039
    %v2041 = vrot.slane %v2033, %v2040
    %v2043 = vunpack.c.l.s4 1966171168
    %v2044 = vunpack.c.0.s8 %v2043
    %v2045 = vlaneseq
    %v2046 = vshrl.u32 %v2045, 7
    %v2047 = vsub.s32 %v2044, %v2046
    %v2048 = vrot.slane %v2034, %v2047
    %v2050 = vunpack.c.l.s4 1966171168
    %v2051 = vunpack.c.0.s8 %v2050
    %v2052 = vlaneseq
    %v2053 = vshrl.u32 %v2052, 7
    %v2054 = vsub.s32 %v2051, %v2053
    %v2055 = vrot.slane %v95, %v2054
    %v2056 = vcombine.high %v2055, %v2055
    %v2058 = vunpack.c.l.s4 1966171168
    %v2059 = vunpack.c.0.s8 %v2058
    %v2060 = vlaneseq
    %v2061 = vshrl.u32 %v2060, 7
    %v2062 = vsub.s32 %v2059, %v2061
    %v2063 = vrot.slane %v2055, %v2062
    %v2065 = vunpack.c.l.s4 1966171168
    %v2066 = vunpack.c.0.s8 %v2065
    %v2067 = vlaneseq
    %v2068 = vshrl.u32 %v2067, 7
    %v2069 = vsub.s32 %v2066, %v2068
    %v2070 = vrot.slane %v2056, %v2069
    %v2072 = vunpack.c.l.s4 1966171168
    %v2073 = vunpack.c.0.s8 %v2072
    %v2074 = vlaneseq
    %v2075 = vshrl.u32 %v2074, 7
    %v2076 = vsub.s32 %v2073, %v2075
    %v2077 = vrot.slane %v96, %v2076
    %v2078 = vcombine.high %v2077, %v2077
    %v2080 = vunpack.c.l.s4 1966171168
    %v2081 = vunpack.c.0.s8 %v2080
    %v2082 = vlaneseq
    %v2083 = vshrl.u32 %v2082, 7
    %v2084 = vsub.s32 %v2081, %v2083
    %v2085 = vrot.slane %v2077, %v2084
    %v2087 = vunpack.c.l.s4 1966171168
    %v2088 = vunpack.c.0.s8 %v2087
    %v2089 = vlaneseq
    %v2090 = vshrl.u32 %v2089, 7
    %v2091 = vsub.s32 %v2088, %v2090
    %v2092 = vrot.slane %v2078, %v2091
    %v2094 = vunpack.c.l.s4 1966171168
    %v2095 = vunpack.c.0.s8 %v2094
    %v2096 = vlaneseq
    %v2097 = vshrl.u32 %v2096, 7
    %v2098 = vsub.s32 %v2095, %v2097
    %v2099 = vrot.slane %v97, %v2098
    %v2100 = vcombine.high %v2099, %v2099
    %v2102 = vunpack.c.l.s4 1966171168
    %v2103 = vunpack.c.0.s8 %v2102
    %v2104 = vlaneseq
    %v2105 = vshrl.u32 %v2104, 7
    %v2106 = vsub.s32 %v2103, %v2105
    %v2107 = vrot.slane %v2099, %v2106
    %v2109 = vunpack.c.l.s4 1966171168
    %v2110 = vunpack.c.0.s8 %v2109
    %v2111 = vlaneseq
    %v2112 = vshrl.u32 %v2111, 7
    %v2113 = vsub.s32 %v2110, %v2112
    %v2114 = vrot.slane %v2100, %v2113
    %v2116 = vunpack.c.l.s4 1966171168
    %v2117 = vunpack.c.0.s8 %v2116
    %v2118 = vlaneseq
    %v2119 = vshrl.u32 %v2118, 7
    %v2120 = vsub.s32 %v2117, %v2119
    %v2121 = vrot.slane %v98, %v2120
    %v2122 = vcombine.high %v2121, %v2121
    %v2124 = vunpack.c.l.s4 1966171168
    %v2125 = vunpack.c.0.s8 %v2124
    %v2126 = vlaneseq
    %v2127 = vshrl.u32 %v2126, 7
    %v2128 = vsub.s32 %v2125, %v2127
    %v2129 = vrot.slane %v2121, %v2128
    %v2131 = vunpack.c.l.s4 1966171168
    %v2132 = vunpack.c.0.s8 %v2131
    %v2133 = vlaneseq
    %v2134 = vshrl.u32 %v2133, 7
    %v2135 = vsub.s32 %v2132, %v2134
    %v2136 = vrot.slane %v2122, %v2135
    %v2138 = vunpack.c.l.s4 1966171168
    %v2139 = vunpack.c.0.s8 %v2138
    %v2140 = vlaneseq
    %v2141 = vshrl.u32 %v2140, 7
    %v2142 = vsub.s32 %v2139, %v2141
    %v2143 = vrot.slane %v99, %v2142
    %v2144 = vcombine.high %v2143, %v2143
    %v2146 = vunpack.c.l.s4 1966171168
    %v2147 = vunpack.c.0.s8 %v2146
    %v2148 = vlaneseq
    %v2149 = vshrl.u32 %v2148, 7
    %v2150 = vsub.s32 %v2147, %v2149
    %v2151 = vrot.slane %v2143, %v2150
    %v2153 = vunpack.c.l.s4 1966171168
    %v2154 = vunpack.c.0.s8 %v2153
    %v2155 = vlaneseq
    %v2156 = vshrl.u32 %v2155, 7
    %v2157 = vsub.s32 %v2154, %v2156
    %v2158 = vrot.slane %v2144, %v2157
    %v2160 = vunpack.c.l.s4 1966171168
    %v2161 = vunpack.c.0.s8 %v2160
    %v2162 = vlaneseq
    %v2163 = vshrl.u32 %v2162, 7
    %v2164 = vsub.s32 %v2161, %v2163
    %v2165 = vrot.slane %v100, %v2164
    %v2166 = vcombine.high %v2165, %v2165
    %v2168 = vunpack.c.l.s4 1966171168
    %v2169 = vunpack.c.0.s8 %v2168
    %v2170 = vlaneseq
    %v2171 = vshrl.u32 %v2170, 7
    %v2172 = vsub.s32 %v2169, %v2171
    %v2173 = vrot.slane %v2165, %v2172
    %v2175 = vunpack.c.l.s4 1966171168
    %v2176 = vunpack.c.0.s8 %v2175
    %v2177 = vlaneseq
    %v2178 = vshrl.u32 %v2177, 7
    %v2179 = vsub.s32 %v2176, %v2178
    %v2180 = vrot.slane %v2166, %v2179
    %v2182 = vunpack.c.l.s4 1966171168
    %v2183 = vunpack.c.0.s8 %v2182
    %v2184 = vlaneseq
    %v2185 = vshrl.u32 %v2184, 7
    %v2186 = vsub.s32 %v2183, %v2185
    %v2187 = vrot.slane %v101, %v2186
    %v2188 = vcombine.high %v2187, %v2187
    %v2190 = vunpack.c.l.s4 1966171168
    %v2191 = vunpack.c.0.s8 %v2190
    %v2192 = vlaneseq
    %v2193 = vshrl.u32 %v2192, 7
    %v2194 = vsub.s32 %v2191, %v2193
    %v2195 = vrot.slane %v2187, %v2194
    %v2197 = vunpack.c.l.s4 1966171168
    %v2198 = vunpack.c.0.s8 %v2197
    %v2199 = vlaneseq
    %v2200 = vshrl.u32 %v2199, 7
    %v2201 = vsub.s32 %v2198, %v2200
    %v2202 = vrot.slane %v2188, %v2201
    %v2204 = vunpack.c.l.s4 1966171168
    %v2205 = vunpack.c.0.s8 %v2204
    %v2206 = vlaneseq
    %v2207 = vshrl.u32 %v2206, 7
    %v2208 = vsub.s32 %v2205, %v2207
    %v2209 = vrot.slane %v102, %v2208
    %v2210 = vcombine.high %v2209, %v2209
    %v2212 = vunpack.c.l.s4 1966171168
    %v2213 = vunpack.c.0.s8 %v2212
    %v2214 = vlaneseq
    %v2215 = vshrl.u32 %v2214, 7
    %v2216 = vsub.s32 %v2213, %v2215
    %v2217 = vrot.slane %v2209, %v2216
    %v2219 = vunpack.c.l.s4 1966171168
    %v2220 = vunpack.c.0.s8 %v2219
    %v2221 = vlaneseq
    %v2222 = vshrl.u32 %v2221, 7
    %v2223 = vsub.s32 %v2220, %v2222
    %v2224 = vrot.slane %v2210, %v2223
    %v2226 = vunpack.c.l.s4 1966171168
    %v2227 = vunpack.c.0.s8 %v2226
    %v2228 = vlaneseq
    %v2229 = vshrl.u32 %v2228, 7
    %v2230 = vsub.s32 %v2227, %v2229
    %v2231 = vrot.slane %v103, %v2230
    %v2232 = vcombine.high %v2231, %v2231
    %v2234 = vunpack.c.l.s4 1966171168
    %v2235 = vunpack.c.0.s8 %v2234
    %v2236 = vlaneseq
    %v2237 = vshrl.u32 %v2236, 7
    %v2238 = vsub.s32 %v2235, %v2237
    %v2239 = vrot.slane %v2231, %v2238
    %v2241 = vunpack.c.l.s4 1966171168
    %v2242 = vunpack.c.0.s8 %v2241
    %v2243 = vlaneseq
    %v2244 = vshrl.u32 %v2243, 7
    %v2245 = vsub.s32 %v2242, %v2244
    %v2246 = vrot.slane %v2232, %v2245
    %v2248 = vunpack.c.l.s4 1966171168
    %v2249 = vunpack.c.0.s8 %v2248
    %v2250 = vlaneseq
    %v2251 = vshrl.u32 %v2250, 7
    %v2252 = vsub.s32 %v2249, %v2251
    %v2253 = vrot.slane %v104, %v2252
    %v2254 = vcombine.high %v2253, %v2253
    %v2256 = vunpack.c.l.s4 1966171168
    %v2257 = vunpack.c.0.s8 %v2256
    %v2258 = vlaneseq
    %v2259 = vshrl.u32 %v2258, 7
    %v2260 = vsub.s32 %v2257, %v2259
    %v2261 = vrot.slane %v2253, %v2260
    %v2263 = vunpack.c.l.s4 1966171168
    %v2264 = vunpack.c.0.s8 %v2263
    %v2265 = vlaneseq
    %v2266 = vshrl.u32 %v2265, 7
    %v2267 = vsub.s32 %v2264, %v2266
    %v2268 = vrot.slane %v2254, %v2267
    %v2270 = vunpack.c.l.s4 1966171168
    %v2271 = vunpack.c.0.s8 %v2270
    %v2272 = vlaneseq
    %v2273 = vshrl.u32 %v2272, 7
    %v2274 = vsub.s32 %v2271, %v2273
    %v2275 = vrot.slane %v105, %v2274
    %v2276 = vcombine.high %v2275, %v2275
    %v2278 = vunpack.c.l.s4 1966171168
    %v2279 = vunpack.c.0.s8 %v2278
    %v2280 = vlaneseq
    %v2281 = vshrl.u32 %v2280, 7
    %v2282 = vsub.s32 %v2279, %v2281
    %v2283 = vrot.slane %v2275, %v2282
    %v2285 = vunpack.c.l.s4 1966171168
    %v2286 = vunpack.c.0.s8 %v2285
    %v2287 = vlaneseq
    %v2288 = vshrl.u32 %v2287, 7
    %v2289 = vsub.s32 %v2286, %v2288
    %v2290 = vrot.slane %v2276, %v2289
    %v2292 = vunpack.c.l.s4 1966171168
    %v2293 = vunpack.c.0.s8 %v2292
    %v2294 = vlaneseq
    %v2295 = vshrl.u32 %v2294, 7
    %v2296 = vsub.s32 %v2293, %v2295
    %v2297 = vrot.slane %v106, %v2296
    %v2298 = vcombine.high %v2297, %v2297
    %v2300 = vunpack.c.l.s4 1966171168
    %v2301 = vunpack.c.0.s8 %v2300
    %v2302 = vlaneseq
    %v2303 = vshrl.u32 %v2302, 7
    %v2304 = vsub.s32 %v2301, %v2303
    %v2305 = vrot.slane %v2297, %v2304
    %v2307 = vunpack.c.l.s4 1966171168
    %v2308 = vunpack.c.0.s8 %v2307
    %v2309 = vlaneseq
    %v2310 = vshrl.u32 %v2309, 7
    %v2311 = vsub.s32 %v2308, %v2310
    %v2312 = vrot.slane %v2298, %v2311
    %v2314 = vunpack.c.l.s4 1966171168
    %v2315 = vunpack.c.0.s8 %v2314
    %v2316 = vlaneseq
    %v2317 = vshrl.u32 %v2316, 7
    %v2318 = vsub.s32 %v2315, %v2317
    %v2319 = vrot.slane %v107, %v2318
    %v2320 = vcombine.high %v2319, %v2319
    %v2322 = vunpack.c.l.s4 1966171168
    %v2323 = vunpack.c.0.s8 %v2322
    %v2324 = vlaneseq
    %v2325 = vshrl.u32 %v2324, 7
    %v2326 = vsub.s32 %v2323, %v2325
    %v2327 = vrot.slane %v2319, %v2326
    %v2329 = vunpack.c.l.s4 1966171168
    %v2330 = vunpack.c.0.s8 %v2329
    %v2331 = vlaneseq
    %v2332 = vshrl.u32 %v2331, 7
    %v2333 = vsub.s32 %v2330, %v2332
    %v2334 = vrot.slane %v2320, %v2333
    %v2336 = vunpack.c.l.s4 1966171168
    %v2337 = vunpack.c.0.s8 %v2336
    %v2338 = vlaneseq
    %v2339 = vshrl.u32 %v2338, 7
    %v2340 = vsub.s32 %v2337, %v2339
    %v2341 = vrot.slane %v108, %v2340
    %v2342 = vcombine.high %v2341, %v2341
    %v2344 = vunpack.c.l.s4 1966171168
    %v2345 = vunpack.c.0.s8 %v2344
    %v2346 = vlaneseq
    %v2347 = vshrl.u32 %v2346, 7
    %v2348 = vsub.s32 %v2345, %v2347
    %v2349 = vrot.slane %v2341, %v2348
    %v2351 = vunpack.c.l.s4 1966171168
    %v2352 = vunpack.c.0.s8 %v2351
    %v2353 = vlaneseq
    %v2354 = vshrl.u32 %v2353, 7
    %v2355 = vsub.s32 %v2352, %v2354
    %v2356 = vrot.slane %v2342, %v2355
    %v2358 = vunpack.c.l.s4 1966171168
    %v2359 = vunpack.c.0.s8 %v2358
    %v2360 = vlaneseq
    %v2361 = vshrl.u32 %v2360, 7
    %v2362 = vsub.s32 %v2359, %v2361
    %v2363 = vrot.slane %v109, %v2362
    %v2364 = vcombine.high %v2363, %v2363
    %v2366 = vunpack.c.l.s4 1966171168
    %v2367 = vunpack.c.0.s8 %v2366
    %v2368 = vlaneseq
    %v2369 = vshrl.u32 %v2368, 7
    %v2370 = vsub.s32 %v2367, %v2369
    %v2371 = vrot.slane %v2363, %v2370
    %v2373 = vunpack.c.l.s4 1966171168
    %v2374 = vunpack.c.0.s8 %v2373
    %v2375 = vlaneseq
    %v2376 = vshrl.u32 %v2375, 7
    %v2377 = vsub.s32 %v2374, %v2376
    %v2378 = vrot.slane %v2364, %v2377
    %v2380 = vunpack.c.l.s4 1966171168
    %v2381 = vunpack.c.0.s8 %v2380
    %v2382 = vlaneseq
    %v2383 = vshrl.u32 %v2382, 7
    %v2384 = vsub.s32 %v2381, %v2383
    %v2385 = vrot.slane %v110, %v2384
    %v2386 = vcombine.high %v2385, %v2385
    %v2388 = vunpack.c.l.s4 1966171168
    %v2389 = vunpack.c.0.s8 %v2388
    %v2390 = vlaneseq
    %v2391 = vshrl.u32 %v2390, 7
    %v2392 = vsub.s32 %v2389, %v2391
    %v2393 = vrot.slane %v2385, %v2392
    %v2395 = vunpack.c.l.s4 1966171168
    %v2396 = vunpack.c.0.s8 %v2395
    %v2397 = vlaneseq
    %v2398 = vshrl.u32 %v2397, 7
    %v2399 = vsub.s32 %v2396, %v2398
    %v2400 = vrot.slane %v2386, %v2399
    %v2402 = vunpack.c.l.s4 1966171168
    %v2403 = vunpack.c.0.s8 %v2402
    %v2404 = vlaneseq
    %v2405 = vshrl.u32 %v2404, 7
    %v2406 = vsub.s32 %v2403, %v2405
    %v2407 = vrot.slane %v111, %v2406
    %v2408 = vcombine.high %v2407, %v2407
    %v2410 = vunpack.c.l.s4 1966171168
    %v2411 = vunpack.c.0.s8 %v2410
    %v2412 = vlaneseq
    %v2413 = vshrl.u32 %v2412, 7
    %v2414 = vsub.s32 %v2411, %v2413
    %v2415 = vrot.slane %v2407, %v2414
    %v2417 = vunpack.c.l.s4 1966171168
    %v2418 = vunpack.c.0.s8 %v2417
    %v2419 = vlaneseq
    %v2420 = vshrl.u32 %v2419, 7
    %v2421 = vsub.s32 %v2418, %v2420
    %v2422 = vrot.slane %v2408, %v2421
    %v2424 = vunpack.c.l.s4 1966171168
    %v2425 = vunpack.c.0.s8 %v2424
    %v2426 = vlaneseq
    %v2427 = vshrl.u32 %v2426, 7
    %v2428 = vsub.s32 %v2425, %v2427
    %v2429 = vrot.slane %v112, %v2428
    %v2430 = vcombine.high %v2429, %v2429
    %v2432 = vunpack.c.l.s4 1966171168
    %v2433 = vunpack.c.0.s8 %v2432
    %v2434 = vlaneseq
    %v2435 = vshrl.u32 %v2434, 7
    %v2436 = vsub.s32 %v2433, %v2435
    %v2437 = vrot.slane %v2429, %v2436
    %v2439 = vunpack.c.l.s4 1966171168
    %v2440 = vunpack.c.0.s8 %v2439
    %v2441 = vlaneseq
    %v2442 = vshrl.u32 %v2441, 7
    %v2443 = vsub.s32 %v2440, %v2442
    %v2444 = vrot.slane %v2430, %v2443
    %v2446 = vunpack.c.l.s4 1966171168
    %v2447 = vunpack.c.0.s8 %v2446
    %v2448 = vlaneseq
    %v2449 = vshrl.u32 %v2448, 7
    %v2450 = vsub.s32 %v2447, %v2449
    %v2451 = vrot.slane %v113, %v2450
    %v2452 = vcombine.high %v2451, %v2451
    %v2454 = vunpack.c.l.s4 1966171168
    %v2455 = vunpack.c.0.s8 %v2454
    %v2456 = vlaneseq
    %v2457 = vshrl.u32 %v2456, 7
    %v2458 = vsub.s32 %v2455, %v2457
    %v2459 = vrot.slane %v2451, %v2458
    %v2461 = vunpack.c.l.s4 1966171168
    %v2462 = vunpack.c.0.s8 %v2461
    %v2463 = vlaneseq
    %v2464 = vshrl.u32 %v2463, 7
    %v2465 = vsub.s32 %v2462, %v2464
    %v2466 = vrot.slane %v2452, %v2465
    %v2468 = vunpack.c.l.s4 1966171168
    %v2469 = vunpack.c.0.s8 %v2468
    %v2470 = vlaneseq
    %v2471 = vshrl.u32 %v2470, 7
    %v2472 = vsub.s32 %v2469, %v2471
    %v2473 = vrot.slane %v114, %v2472
    %v2474 = vcombine.high %v2473, %v2473
    %v2476 = vunpack.c.l.s4 1966171168
    %v2477 = vunpack.c.0.s8 %v2476
    %v2478 = vlaneseq
    %v2479 = vshrl.u32 %v2478, 7
    %v2480 = vsub.s32 %v2477, %v2479
    %v2481 = vrot.slane %v2473, %v2480
    %v2483 = vunpack.c.l.s4 1966171168
    %v2484 = vunpack.c.0.s8 %v2483
    %v2485 = vlaneseq
    %v2486 = vshrl.u32 %v2485, 7
    %v2487 = vsub.s32 %v2484, %v2486
    %v2488 = vrot.slane %v2474, %v2487
    %v2490 = vunpack.c.l.s4 1966171168
    %v2491 = vunpack.c.0.s8 %v2490
    %v2492 = vlaneseq
    %v2493 = vshrl.u32 %v2492, 7
    %v2494 = vsub.s32 %v2491, %v2493
    %v2495 = vrot.slane %v115, %v2494
    %v2496 = vcombine.high %v2495, %v2495
    %v2498 = vunpack.c.l.s4 1966171168
    %v2499 = vunpack.c.0.s8 %v2498
    %v2500 = vlaneseq
    %v2501 = vshrl.u32 %v2500, 7
    %v2502 = vsub.s32 %v2499, %v2501
    %v2503 = vrot.slane %v2495, %v2502
    %v2505 = vunpack.c.l.s4 1966171168
    %v2506 = vunpack.c.0.s8 %v2505
    %v2507 = vlaneseq
    %v2508 = vshrl.u32 %v2507, 7
    %v2509 = vsub.s32 %v2506, %v2508
    %v2510 = vrot.slane %v2496, %v2509
    %v2512 = vunpack.c.l.s4 1966171168
    %v2513 = vunpack.c.0.s8 %v2512
    %v2514 = vlaneseq
    %v2515 = vshrl.u32 %v2514, 7
    %v2516 = vsub.s32 %v2513, %v2515
    %v2517 = vrot.slane %v116, %v2516
    %v2518 = vcombine.high %v2517, %v2517
    %v2520 = vunpack.c.l.s4 1966171168
    %v2521 = vunpack.c.0.s8 %v2520
    %v2522 = vlaneseq
    %v2523 = vshrl.u32 %v2522, 7
    %v2524 = vsub.s32 %v2521, %v2523
    %v2525 = vrot.slane %v2517, %v2524
    %v2527 = vunpack.c.l.s4 1966171168
    %v2528 = vunpack.c.0.s8 %v2527
    %v2529 = vlaneseq
    %v2530 = vshrl.u32 %v2529, 7
    %v2531 = vsub.s32 %v2528, %v2530
    %v2532 = vrot.slane %v2518, %v2531
    %v2534 = vunpack.c.l.s4 1966171168
    %v2535 = vunpack.c.0.s8 %v2534
    %v2536 = vlaneseq
    %v2537 = vshrl.u32 %v2536, 7
    %v2538 = vsub.s32 %v2535, %v2537
    %v2539 = vrot.slane %v117, %v2538
    %v2540 = vcombine.high %v2539, %v2539
    %v2542 = vunpack.c.l.s4 1966171168
    %v2543 = vunpack.c.0.s8 %v2542
    %v2544 = vlaneseq
    %v2545 = vshrl.u32 %v2544, 7
    %v2546 = vsub.s32 %v2543, %v2545
    %v2547 = vrot.slane %v2539, %v2546
    %v2549 = vunpack.c.l.s4 1966171168
    %v2550 = vunpack.c.0.s8 %v2549
    %v2551 = vlaneseq
    %v2552 = vshrl.u32 %v2551, 7
    %v2553 = vsub.s32 %v2550, %v2552
    %v2554 = vrot.slane %v2540, %v2553
    %v2556 = vunpack.c.l.s4 1966171168
    %v2557 = vunpack.c.0.s8 %v2556
    %v2558 = vlaneseq
    %v2559 = vshrl.u32 %v2558, 7
    %v2560 = vsub.s32 %v2557, %v2559
    %v2561 = vrot.slane %v118, %v2560
    %v2562 = vcombine.high %v2561, %v2561
    %v2564 = vunpack.c.l.s4 1966171168
    %v2565 = vunpack.c.0.s8 %v2564
    %v2566 = vlaneseq
    %v2567 = vshrl.u32 %v2566, 7
    %v2568 = vsub.s32 %v2565, %v2567
    %v2569 = vrot.slane %v2561, %v2568
    %v2571 = vunpack.c.l.s4 1966171168
    %v2572 = vunpack.c.0.s8 %v2571
    %v2573 = vlaneseq
    %v2574 = vshrl.u32 %v2573, 7
    %v2575 = vsub.s32 %v2572, %v2574
    %v2576 = vrot.slane %v2562, %v2575
    %v2578 = vunpack.c.l.s4 1966171168
    %v2579 = vunpack.c.0.s8 %v2578
    %v2580 = vlaneseq
    %v2581 = vshrl.u32 %v2580, 7
    %v2582 = vsub.s32 %v2579, %v2581
    %v2583 = vrot.slane %v119, %v2582
    %v2584 = vcombine.high %v2583, %v2583
    %v2586 = vunpack.c.l.s4 1966171168
    %v2587 = vunpack.c.0.s8 %v2586
    %v2588 = vlaneseq
    %v2589 = vshrl.u32 %v2588, 7
    %v2590 = vsub.s32 %v2587, %v2589
    %v2591 = vrot.slane %v2583, %v2590
    %v2593 = vunpack.c.l.s4 1966171168
    %v2594 = vunpack.c.0.s8 %v2593
    %v2595 = vlaneseq
    %v2596 = vshrl.u32 %v2595, 7
    %v2597 = vsub.s32 %v2594, %v2596
    %v2598 = vrot.slane %v2584, %v2597
    %v2600 = vunpack.c.l.s4 1966171168
    %v2601 = vunpack.c.0.s8 %v2600
    %v2602 = vlaneseq
    %v2603 = vshrl.u32 %v2602, 7
    %v2604 = vsub.s32 %v2601, %v2603
    %v2605 = vrot.slane %v120, %v2604
    %v2606 = vcombine.high %v2605, %v2605
    %v2608 = vunpack.c.l.s4 1966171168
    %v2609 = vunpack.c.0.s8 %v2608
    %v2610 = vlaneseq
    %v2611 = vshrl.u32 %v2610, 7
    %v2612 = vsub.s32 %v2609, %v2611
    %v2613 = vrot.slane %v2605, %v2612
    %v2615 = vunpack.c.l.s4 1966171168
    %v2616 = vunpack.c.0.s8 %v2615
    %v2617 = vlaneseq
    %v2618 = vshrl.u32 %v2617, 7
    %v2619 = vsub.s32 %v2616, %v2618
    %v2620 = vrot.slane %v2606, %v2619
    %v2622 = vunpack.c.l.s4 1966171168
    %v2623 = vunpack.c.0.s8 %v2622
    %v2624 = vlaneseq
    %v2625 = vshrl.u32 %v2624, 7
    %v2626 = vsub.s32 %v2623, %v2625
    %v2627 = vrot.slane %v121, %v2626
    %v2628 = vcombine.high %v2627, %v2627
    %v2630 = vunpack.c.l.s4 1966171168
    %v2631 = vunpack.c.0.s8 %v2630
    %v2632 = vlaneseq
    %v2633 = vshrl.u32 %v2632, 7
    %v2634 = vsub.s32 %v2631, %v2633
    %v2635 = vrot.slane %v2627, %v2634
    %v2637 = vunpack.c.l.s4 1966171168
    %v2638 = vunpack.c.0.s8 %v2637
    %v2639 = vlaneseq
    %v2640 = vshrl.u32 %v2639, 7
    %v2641 = vsub.s32 %v2638, %v2640
    %v2642 = vrot.slane %v2628, %v2641
    %v2644 = vunpack.c.l.s4 1966171168
    %v2645 = vunpack.c.0.s8 %v2644
    %v2646 = vlaneseq
    %v2647 = vshrl.u32 %v2646, 7
    %v2648 = vsub.s32 %v2645, %v2647
    %v2649 = vrot.slane %v122, %v2648
    %v2650 = vcombine.high %v2649, %v2649
    %v2652 = vunpack.c.l.s4 1966171168
    %v2653 = vunpack.c.0.s8 %v2652
    %v2654 = vlaneseq
    %v2655 = vshrl.u32 %v2654, 7
    %v2656 = vsub.s32 %v2653, %v2655
    %v2657 = vrot.slane %v2649, %v2656
    %v2659 = vunpack.c.l.s4 1966171168
    %v2660 = vunpack.c.0.s8 %v2659
    %v2661 = vlaneseq
    %v2662 = vshrl.u32 %v2661, 7
    %v2663 = vsub.s32 %v2660, %v2662
    %v2664 = vrot.slane %v2650, %v2663
    %v2666 = vunpack.c.l.s4 1966171168
    %v2667 = vunpack.c.0.s8 %v2666
    %v2668 = vlaneseq
    %v2669 = vshrl.u32 %v2668, 7
    %v2670 = vsub.s32 %v2667, %v2669
    %v2671 = vrot.slane %v123, %v2670
    %v2672 = vcombine.high %v2671, %v2671
    %v2674 = vunpack.c.l.s4 1966171168
    %v2675 = vunpack.c.0.s8 %v2674
    %v2676 = vlaneseq
    %v2677 = vshrl.u32 %v2676, 7
    %v2678 = vsub.s32 %v2675, %v2677
    %v2679 = vrot.slane %v2671, %v2678
    %v2681 = vunpack.c.l.s4 1966171168
    %v2682 = vunpack.c.0.s8 %v2681
    %v2683 = vlaneseq
    %v2684 = vshrl.u32 %v2683, 7
    %v2685 = vsub.s32 %v2682, %v2684
    %v2686 = vrot.slane %v2672, %v2685
    %v2688 = vunpack.c.l.s4 1966171168
    %v2689 = vunpack.c.0.s8 %v2688
    %v2690 = vlaneseq
    %v2691 = vshrl.u32 %v2690, 7
    %v2692 = vsub.s32 %v2689, %v2691
    %v2693 = vrot.slane %v124, %v2692
    %v2694 = vcombine.high %v2693, %v2693
    %v2696 = vunpack.c.l.s4 1966171168
    %v2697 = vunpack.c.0.s8 %v2696
    %v2698 = vlaneseq
    %v2699 = vshrl.u32 %v2698, 7
    %v2700 = vsub.s32 %v2697, %v2699
    %v2701 = vrot.slane %v2693, %v2700
    %v2703 = vunpack.c.l.s4 1966171168
    %v2704 = vunpack.c.0.s8 %v2703
    %v2705 = vlaneseq
    %v2706 = vshrl.u32 %v2705, 7
    %v2707 = vsub.s32 %v2704, %v2706
    %v2708 = vrot.slane %v2694, %v2707
    %v2710 = vunpack.c.l.s4 1966171168
    %v2711 = vunpack.c.0.s8 %v2710
    %v2712 = vlaneseq
    %v2713 = vshrl.u32 %v2712, 7
    %v2714 = vsub.s32 %v2711, %v2713
    %v2715 = vrot.slane %v125, %v2714
    %v2716 = vcombine.high %v2715, %v2715
    %v2718 = vunpack.c.l.s4 1966171168
    %v2719 = vunpack.c.0.s8 %v2718
    %v2720 = vlaneseq
    %v2721 = vshrl.u32 %v2720, 7
    %v2722 = vsub.s32 %v2719, %v2721
    %v2723 = vrot.slane %v2715, %v2722
    %v2725 = vunpack.c.l.s4 1966171168
    %v2726 = vunpack.c.0.s8 %v2725
    %v2727 = vlaneseq
    %v2728 = vshrl.u32 %v2727, 7
    %v2729 = vsub.s32 %v2726, %v2728
    %v2730 = vrot.slane %v2716, %v2729
    %v2732 = vunpack.c.l.s4 1966171168
    %v2733 = vunpack.c.0.s8 %v2732
    %v2734 = vlaneseq
    %v2735 = vshrl.u32 %v2734, 7
    %v2736 = vsub.s32 %v2733, %v2735
    %v2737 = vrot.slane %v126, %v2736
    %v2738 = vcombine.high %v2737, %v2737
    %v2740 = vunpack.c.l.s4 1966171168
    %v2741 = vunpack.c.0.s8 %v2740
    %v2742 = vlaneseq
    %v2743 = vshrl.u32 %v2742, 7
    %v2744 = vsub.s32 %v2741, %v2743
    %v2745 = vrot.slane %v2737, %v2744
    %v2747 = vunpack.c.l.s4 1966171168
    %v2748 = vunpack.c.0.s8 %v2747
    %v2749 = vlaneseq
    %v2750 = vshrl.u32 %v2749, 7
    %v2751 = vsub.s32 %v2748, %v2750
    %v2752 = vrot.slane %v2738, %v2751
    %v2754 = vunpack.c.l.s4 1966171168
    %v2755 = vunpack.c.0.s8 %v2754
    %v2756 = vlaneseq
    %v2757 = vshrl.u32 %v2756, 7
    %v2758 = vsub.s32 %v2755, %v2757
    %v2759 = vrot.slane %v127, %v2758
    %v2760 = vcombine.high %v2759, %v2759
    %v2762 = vunpack.c.l.s4 1966171168
    %v2763 = vunpack.c.0.s8 %v2762
    %v2764 = vlaneseq
    %v2765 = vshrl.u32 %v2764, 7
    %v2766 = vsub.s32 %v2763, %v2765
    %v2767 = vrot.slane %v2759, %v2766
    %v2769 = vunpack.c.l.s4 1966171168
    %v2770 = vunpack.c.0.s8 %v2769
    %v2771 = vlaneseq
    %v2772 = vshrl.u32 %v2771, 7
    %v2773 = vsub.s32 %v2770, %v2772
    %v2774 = vrot.slane %v2760, %v2773
    %v2776 = vunpack.c.l.s4 1966171168
    %v2777 = vunpack.c.0.s8 %v2776
    %v2778 = vlaneseq
    %v2779 = vshrl.u32 %v2778, 7
    %v2780 = vsub.s32 %v2777, %v2779
    %v2781 = vrot.slane %v128, %v2780
    %v2782 = vcombine.high %v2781, %v2781
    %v2784 = vunpack.c.l.s4 1966171168
    %v2785 = vunpack.c.0.s8 %v2784
    %v2786 = vlaneseq
    %v2787 = vshrl.u32 %v2786, 7
    %v2788 = vsub.s32 %v2785, %v2787
    %v2789 = vrot.slane %v2781, %v2788
    %v2791 = vunpack.c.l.s4 1966171168
    %v2792 = vunpack.c.0.s8 %v2791
    %v2793 = vlaneseq
    %v2794 = vshrl.u32 %v2793, 7
    %v2795 = vsub.s32 %v2792, %v2794
    %v2796 = vrot.slane %v2782, %v2795
    %v2798 = vunpack.c.l.s4 1966171168
    %v2799 = vunpack.c.0.s8 %v2798
    %v2800 = vlaneseq
    %v2801 = vshrl.u32 %v2800, 7
    %v2802 = vsub.s32 %v2799, %v2801
    %v2803 = vrot.slane %v129, %v2802
    %v2804 = vcombine.high %v2803, %v2803
    %v2806 = vunpack.c.l.s4 1966171168
    %v2807 = vunpack.c.0.s8 %v2806
    %v2808 = vlaneseq
    %v2809 = vshrl.u32 %v2808, 7
    %v2810 = vsub.s32 %v2807, %v2809
    %v2811 = vrot.slane %v2803, %v2810
    %v2813 = vunpack.c.l.s4 1966171168
    %v2814 = vunpack.c.0.s8 %v2813
    %v2815 = vlaneseq
    %v2816 = vshrl.u32 %v2815, 7
    %v2817 = vsub.s32 %v2814, %v2816
    %v2818 = vrot.slane %v2804, %v2817
    %v2820 = vunpack.c.l.s4 1966171168
    %v2821 = vunpack.c.0.s8 %v2820
    %v2822 = vlaneseq
    %v2823 = vshrl.u32 %v2822, 7
    %v2824 = vsub.s32 %v2821, %v2823
    %v2825 = vrot.slane %v130, %v2824
    %v2826 = vcombine.high %v2825, %v2825
    %v2828 = vunpack.c.l.s4 1966171168
    %v2829 = vunpack.c.0.s8 %v2828
    %v2830 = vlaneseq
    %v2831 = vshrl.u32 %v2830, 7
    %v2832 = vsub.s32 %v2829, %v2831
    %v2833 = vrot.slane %v2825, %v2832
    %v2835 = vunpack.c.l.s4 1966171168
    %v2836 = vunpack.c.0.s8 %v2835
    %v2837 = vlaneseq
    %v2838 = vshrl.u32 %v2837, 7
    %v2839 = vsub.s32 %v2836, %v2838
    %v2840 = vrot.slane %v2826, %v2839
    %v2842 = vunpack.c.l.s4 1966171168
    %v2843 = vunpack.c.0.s8 %v2842
    %v2844 = vlaneseq
    %v2845 = vshrl.u32 %v2844, 7
    %v2846 = vsub.s32 %v2843, %v2845
    %v2847 = vrot.slane %v131, %v2846
    %v2848 = vcombine.high %v2847, %v2847
    %v2850 = vunpack.c.l.s4 1966171168
    %v2851 = vunpack.c.0.s8 %v2850
    %v2852 = vlaneseq
    %v2853 = vshrl.u32 %v2852, 7
    %v2854 = vsub.s32 %v2851, %v2853
    %v2855 = vrot.slane %v2847, %v2854
    %v2857 = vunpack.c.l.s4 1966171168
    %v2858 = vunpack.c.0.s8 %v2857
    %v2859 = vlaneseq
    %v2860 = vshrl.u32 %v2859, 7
    %v2861 = vsub.s32 %v2858, %v2860
    %v2862 = vrot.slane %v2848, %v2861
    %v2864 = vunpack.c.l.s4 1966171168
    %v2865 = vunpack.c.0.s8 %v2864
    %v2866 = vlaneseq
    %v2867 = vshrl.u32 %v2866, 7
    %v2868 = vsub.s32 %v2865, %v2867
    %v2869 = vrot.slane %v132, %v2868
    %v2870 = vcombine.high %v2869, %v2869
    %v2872 = vunpack.c.l.s4 1966171168
    %v2873 = vunpack.c.0.s8 %v2872
    %v2874 = vlaneseq
    %v2875 = vshrl.u32 %v2874, 7
    %v2876 = vsub.s32 %v2873, %v2875
    %v2877 = vrot.slane %v2869, %v2876
    %v2879 = vunpack.c.l.s4 1966171168
    %v2880 = vunpack.c.0.s8 %v2879
    %v2881 = vlaneseq
    %v2882 = vshrl.u32 %v2881, 7
    %v2883 = vsub.s32 %v2880, %v2882
    %v2884 = vrot.slane %v2870, %v2883
    %v2886 = vunpack.c.l.s4 1966171168
    %v2887 = vunpack.c.0.s8 %v2886
    %v2888 = vlaneseq
    %v2889 = vshrl.u32 %v2888, 7
    %v2890 = vsub.s32 %v2887, %v2889
    %v2891 = vrot.slane %v133, %v2890
    %v2892 = vcombine.high %v2891, %v2891
    %v2894 = vunpack.c.l.s4 1966171168
    %v2895 = vunpack.c.0.s8 %v2894
    %v2896 = vlaneseq
    %v2897 = vshrl.u32 %v2896, 7
    %v2898 = vsub.s32 %v2895, %v2897
    %v2899 = vrot.slane %v2891, %v2898
    %v2901 = vunpack.c.l.s4 1966171168
    %v2902 = vunpack.c.0.s8 %v2901
    %v2903 = vlaneseq
    %v2904 = vshrl.u32 %v2903, 7
    %v2905 = vsub.s32 %v2902, %v2904
    %v2906 = vrot.slane %v2892, %v2905
    %v2908 = vunpack.c.l.s4 1966171168
    %v2909 = vunpack.c.0.s8 %v2908
    %v2910 = vlaneseq
    %v2911 = vshrl.u32 %v2910, 7
    %v2912 = vsub.s32 %v2909, %v2911
    %v2913 = vrot.slane %v134, %v2912
    %v2914 = vcombine.high %v2913, %v2913
    %v2916 = vunpack.c.l.s4 1966171168
    %v2917 = vunpack.c.0.s8 %v2916
    %v2918 = vlaneseq
    %v2919 = vshrl.u32 %v2918, 7
    %v2920 = vsub.s32 %v2917, %v2919
    %v2921 = vrot.slane %v2913, %v2920
    %v2923 = vunpack.c.l.s4 1966171168
    %v2924 = vunpack.c.0.s8 %v2923
    %v2925 = vlaneseq
    %v2926 = vshrl.u32 %v2925, 7
    %v2927 = vsub.s32 %v2924, %v2926
    %v2928 = vrot.slane %v2914, %v2927
    %v2930 = vunpack.c.l.s4 1966171168
    %v2931 = vunpack.c.0.s8 %v2930
    %v2932 = vlaneseq
    %v2933 = vshrl.u32 %v2932, 7
    %v2934 = vsub.s32 %v2931, %v2933
    %v2935 = vrot.slane %v135, %v2934
    %v2936 = vcombine.high %v2935, %v2935
    %v2938 = vunpack.c.l.s4 1966171168
    %v2939 = vunpack.c.0.s8 %v2938
    %v2940 = vlaneseq
    %v2941 = vshrl.u32 %v2940, 7
    %v2942 = vsub.s32 %v2939, %v2941
    %v2943 = vrot.slane %v2935, %v2942
    %v2945 = vunpack.c.l.s4 1966171168
    %v2946 = vunpack.c.0.s8 %v2945
    %v2947 = vlaneseq
    %v2948 = vshrl.u32 %v2947, 7
    %v2949 = vsub.s32 %v2946, %v2948
    %v2950 = vrot.slane %v2936, %v2949
    %v2952 = vunpack.c.l.s4 1966171168
    %v2953 = vunpack.c.0.s8 %v2952
    %v2954 = vlaneseq
    %v2955 = vshrl.u32 %v2954, 7
    %v2956 = vsub.s32 %v2953, %v2955
    %v2957 = vrot.slane %v136, %v2956
    %v2958 = vcombine.high %v2957, %v2957
    %v2960 = vunpack.c.l.s4 1966171168
    %v2961 = vunpack.c.0.s8 %v2960
    %v2962 = vlaneseq
    %v2963 = vshrl.u32 %v2962, 7
    %v2964 = vsub.s32 %v2961, %v2963
    %v2965 = vrot.slane %v2957, %v2964
    %v2967 = vunpack.c.l.s4 1966171168
    %v2968 = vunpack.c.0.s8 %v2967
    %v2969 = vlaneseq
    %v2970 = vshrl.u32 %v2969, 7
    %v2971 = vsub.s32 %v2968, %v2970
    %v2972 = vrot.slane %v2958, %v2971
    %v2974 = vunpack.c.l.s4 1966171168
    %v2975 = vunpack.c.0.s8 %v2974
    %v2976 = vlaneseq
    %v2977 = vshrl.u32 %v2976, 7
    %v2978 = vsub.s32 %v2975, %v2977
    %v2979 = vrot.slane %v137, %v2978
    %v2980 = vcombine.high %v2979, %v2979
    %v2982 = vunpack.c.l.s4 1966171168
    %v2983 = vunpack.c.0.s8 %v2982
    %v2984 = vlaneseq
    %v2985 = vshrl.u32 %v2984, 7
    %v2986 = vsub.s32 %v2983, %v2985
    %v2987 = vrot.slane %v2979, %v2986
    %v2989 = vunpack.c.l.s4 1966171168
    %v2990 = vunpack.c.0.s8 %v2989
    %v2991 = vlaneseq
    %v2992 = vshrl.u32 %v2991, 7
    %v2993 = vsub.s32 %v2990, %v2992
    %v2994 = vrot.slane %v2980, %v2993
    %v2996 = vunpack.c.l.s4 1966171168
    %v2997 = vunpack.c.0.s8 %v2996
    %v2998 = vlaneseq
    %v2999 = vshrl.u32 %v2998, 7
    %v3000 = vsub.s32 %v2997, %v2999
    %v3001 = vrot.slane %v138, %v3000
    %v3002 = vcombine.high %v3001, %v3001
    %v3004 = vunpack.c.l.s4 1966171168
    %v3005 = vunpack.c.0.s8 %v3004
    %v3006 = vlaneseq
    %v3007 = vshrl.u32 %v3006, 7
    %v3008 = vsub.s32 %v3005, %v3007
    %v3009 = vrot.slane %v3001, %v3008
    %v3011 = vunpack.c.l.s4 1966171168
    %v3012 = vunpack.c.0.s8 %v3011
    %v3013 = vlaneseq
    %v3014 = vshrl.u32 %v3013, 7
    %v3015 = vsub.s32 %v3012, %v3014
    %v3016 = vrot.slane %v3002, %v3015
    %v3018 = vunpack.c.l.s4 1966171168
    %v3019 = vunpack.c.0.s8 %v3018
    %v3020 = vlaneseq
    %v3021 = vshrl.u32 %v3020, 7
    %v3022 = vsub.s32 %v3019, %v3021
    %v3023 = vrot.slane %v139, %v3022
    %v3024 = vcombine.high %v3023, %v3023
    %v3026 = vunpack.c.l.s4 1966171168
    %v3027 = vunpack.c.0.s8 %v3026
    %v3028 = vlaneseq
    %v3029 = vshrl.u32 %v3028, 7
    %v3030 = vsub.s32 %v3027, %v3029
    %v3031 = vrot.slane %v3023, %v3030
    %v3033 = vunpack.c.l.s4 1966171168
    %v3034 = vunpack.c.0.s8 %v3033
    %v3035 = vlaneseq
    %v3036 = vshrl.u32 %v3035, 7
    %v3037 = vsub.s32 %v3034, %v3036
    %v3038 = vrot.slane %v3024, %v3037
    %v3040 = vunpack.c.l.s4 1966171168
    %v3041 = vunpack.c.0.s8 %v3040
    %v3042 = vlaneseq
    %v3043 = vshrl.u32 %v3042, 7
    %v3044 = vsub.s32 %v3041, %v3043
    %v3045 = vrot.slane %v140, %v3044
    %v3046 = vcombine.high %v3045, %v3045
    %v3048 = vunpack.c.l.s4 1966171168
    %v3049 = vunpack.c.0.s8 %v3048
    %v3050 = vlaneseq
    %v3051 = vshrl.u32 %v3050, 7
    %v3052 = vsub.s32 %v3049, %v3051
    %v3053 = vrot.slane %v3045, %v3052
    %v3055 = vunpack.c.l.s4 1966171168
    %v3056 = vunpack.c.0.s8 %v3055
    %v3057 = vlaneseq
    %v3058 = vshrl.u32 %v3057, 7
    %v3059 = vsub.s32 %v3056, %v3058
    %v3060 = vrot.slane %v3046, %v3059
    %v3062 = vunpack.c.l.s4 1966171168
    %v3063 = vunpack.c.0.s8 %v3062
    %v3064 = vlaneseq
    %v3065 = vshrl.u32 %v3064, 7
    %v3066 = vsub.s32 %v3063, %v3065
    %v3067 = vrot.slane %v141, %v3066
    %v3068 = vcombine.high %v3067, %v3067
    %v3070 = vunpack.c.l.s4 1966171168
    %v3071 = vunpack.c.0.s8 %v3070
    %v3072 = vlaneseq
    %v3073 = vshrl.u32 %v3072, 7
    %v3074 = vsub.s32 %v3071, %v3073
    %v3075 = vrot.slane %v3067, %v3074
    %v3077 = vunpack.c.l.s4 1966171168
    %v3078 = vunpack.c.0.s8 %v3077
    %v3079 = vlaneseq
    %v3080 = vshrl.u32 %v3079, 7
    %v3081 = vsub.s32 %v3078, %v3080
    %v3082 = vrot.slane %v3068, %v3081
    %v3084 = vunpack.c.l.s4 1966171168
    %v3085 = vunpack.c.0.s8 %v3084
    %v3086 = vlaneseq
    %v3087 = vshrl.u32 %v3086, 7
    %v3088 = vsub.s32 %v3085, %v3087
    %v3089 = vrot.slane %v142, %v3088
    %v3090 = vcombine.high %v3089, %v3089
    %v3092 = vunpack.c.l.s4 1966171168
    %v3093 = vunpack.c.0.s8 %v3092
    %v3094 = vlaneseq
    %v3095 = vshrl.u32 %v3094, 7
    %v3096 = vsub.s32 %v3093, %v3095
    %v3097 = vrot.slane %v3089, %v3096
    %v3099 = vunpack.c.l.s4 1966171168
    %v3100 = vunpack.c.0.s8 %v3099
    %v3101 = vlaneseq
    %v3102 = vshrl.u32 %v3101, 7
    %v3103 = vsub.s32 %v3100, %v3102
    %v3104 = vrot.slane %v3090, %v3103
    %v3106 = vunpack.c.l.s4 1966171168
    %v3107 = vunpack.c.0.s8 %v3106
    %v3108 = vlaneseq
    %v3109 = vshrl.u32 %v3108, 7
    %v3110 = vsub.s32 %v3107, %v3109
    %v3111 = vrot.slane %v143, %v3110
    %v3112 = vcombine.high %v3111, %v3111
    %v3114 = vunpack.c.l.s4 1966171168
    %v3115 = vunpack.c.0.s8 %v3114
    %v3116 = vlaneseq
    %v3117 = vshrl.u32 %v3116, 7
    %v3118 = vsub.s32 %v3115, %v3117
    %v3119 = vrot.slane %v3111, %v3118
    %v3121 = vunpack.c.l.s4 1966171168
    %v3122 = vunpack.c.0.s8 %v3121
    %v3123 = vlaneseq
    %v3124 = vshrl.u32 %v3123, 7
    %v3125 = vsub.s32 %v3122, %v3124
    %v3126 = vrot.slane %v3112, %v3125
    %v3127 = vunpack.c.l.b16 %v325
    %v3128 = vunpack.c.l.b16 %v332
    %v3129 = vunpack.c.l.b16 %v347
    %v3130 = vunpack.c.l.b16 %v354
    %v3131 = vunpack.c.l.b16 %v369
    %v3132 = vunpack.c.l.b16 %v376
    %v3133 = vunpack.c.l.b16 %v391
    %v3134 = vunpack.c.l.b16 %v398
    %v3135 = vunpack.c.l.b16 %v413
    %v3136 = vunpack.c.l.b16 %v420
    %v3137 = vunpack.c.l.b16 %v435
    %v3138 = vunpack.c.l.b16 %v442
    %v3139 = vunpack.c.l.b16 %v457
    %v3140 = vunpack.c.l.b16 %v464
    %v3141 = vunpack.c.l.b16 %v479
    %v3142 = vunpack.c.l.b16 %v486
    %v3143 = vunpack.c.l.b16 %v501
    %v3144 = vunpack.c.l.b16 %v508
    %v3145 = vunpack.c.l.b16 %v523
    %v3146 = vunpack.c.l.b16 %v530
    %v3147 = vunpack.c.l.b16 %v545
    %v3148 = vunpack.c.l.b16 %v552
    %v3149 = vunpack.c.l.b16 %v567
    %v3150 = vunpack.c.l.b16 %v574
    %v3151 = vunpack.c.l.b16 %v589
    %v3152 = vunpack.c.l.b16 %v596
    %v3153 = vunpack.c.l.b16 %v611
    %v3154 = vunpack.c.l.b16 %v618
    %v3155 = vunpack.c.l.b16 %v633
    %v3156 = vunpack.c.l.b16 %v640
    %v3157 = vunpack.c.l.b16 %v655
    %v3158 = vunpack.c.l.b16 %v662
    %v3159 = vunpack.c.l.b16 %v677
    %v3160 = vunpack.c.l.b16 %v684
    %v3161 = vunpack.c.l.b16 %v699
    %v3162 = vunpack.c.l.b16 %v706
    %v3163 = vunpack.c.l.b16 %v721
    %v3164 = vunpack.c.l.b16 %v728
    %v3165 = vunpack.c.l.b16 %v743
    %v3166 = vunpack.c.l.b16 %v750
    %v3167 = vunpack.c.l.b16 %v765
    %v3168 = vunpack.c.l.b16 %v772
    %v3169 = vunpack.c.l.b16 %v787
    %v3170 = vunpack.c.l.b16 %v794
    %v3171 = vunpack.c.l.b16 %v809
    %v3172 = vunpack.c.l.b16 %v816
    %v3173 = vunpack.c.l.b16 %v831
    %v3174 = vunpack.c.l.b16 %v838
    %v3175 = vunpack.c.l.b16 %v853
    %v3176 = vunpack.c.l.b16 %v860
    %v3177 = vunpack.c.l.b16 %v875
    %v3178 = vunpack.c.l.b16 %v882
    %v3179 = vunpack.c.l.b16 %v897
    %v3180 = vunpack.c.l.b16 %v904
    %v3181 = vunpack.c.l.b16 %v919
    %v3182 = vunpack.c.l.b16 %v926
    %v3183 = vunpack.c.l.b16 %v941
    %v3184 = vunpack.c.l.b16 %v948
    %v3185 = vunpack.c.l.b16 %v963
    %v3186 = vunpack.c.l.b16 %v970
    %v3187 = vunpack.c.l.b16 %v985
    %v3188 = vunpack.c.l.b16 %v992
    %v3189 = vunpack.c.l.b16 %v1007
    %v3190 = vunpack.c.l.b16 %v1014
    %v3191 = vunpack.c.l.b16 %v1029
    %v3192 = vunpack.c.l.b16 %v1036
    %v3193 = vunpack.c.l.b16 %v1051
    %v3194 = vunpack.c.l.b16 %v1058
    %v3195 = vunpack.c.l.b16 %v1073
    %v3196 = vunpack.c.l.b16 %v1080
    %v3197 = vunpack.c.l.b16 %v1095
    %v3198 = vunpack.c.l.b16 %v1102
    %v3199 = vunpack.c.l.b16 %v1117
    %v3200 = vunpack.c.l.b16 %v1124
    %v3201 = vunpack.c.l.b16 %v1139
    %v3202 = vunpack.c.l.b16 %v1146
    %v3203 = vunpack.c.l.b16 %v1161
    %v3204 = vunpack.c.l.b16 %v1168
    %v3205 = vunpack.c.l.b16 %v1183
    %v3206 = vunpack.c.l.b16 %v1190
    %v3207 = vunpack.c.l.b16 %v1205
    %v3208 = vunpack.c.l.b16 %v1212
    %v3209 = vunpack.c.l.b16 %v1227
    %v3210 = vunpack.c.l.b16 %v1234
    %v3211 = vunpack.c.l.b16 %v1249
    %v3212 = vunpack.c.l.b16 %v1256
    %v3213 = vunpack.c.l.b16 %v1271
    %v3214 = vunpack.c.l.b16 %v1278
    %v3215 = vunpack.c.l.b16 %v1293
    %v3216 = vunpack.c.l.b16 %v1300
    %v3217 = vunpack.c.l.b16 %v1315
    %v3218 = vunpack.c.l.b16 %v1322
    %v3219 = vunpack.c.l.b16 %v1337
    %v3220 = vunpack.c.l.b16 %v1344
    %v3221 = vunpack.c.l.b16 %v1359
    %v3222 = vunpack.c.l.b16 %v1366
    %v3223 = vunpack.c.l.b16 %v1381
    %v3224 = vunpack.c.l.b16 %v1388
    %v3225 = vunpack.c.l.b16 %v1403
    %v3226 = vunpack.c.l.b16 %v1410
    %v3227 = vunpack.c.l.b16 %v1425
    %v3228 = vunpack.c.l.b16 %v1432
    %v3229 = vunpack.c.l.b16 %v1447
    %v3230 = vunpack.c.l.b16 %v1454
    %v3231 = vunpack.c.l.b16 %v1469
    %v3232 = vunpack.c.l.b16 %v1476
    %v3233 = vunpack.c.l.b16 %v1491
    %v3234 = vunpack.c.l.b16 %v1498
    %v3235 = vunpack.c.l.b16 %v1513
    %v3236 = vunpack.c.l.b16 %v1520
    %v3237 = vunpack.c.l.b16 %v1535
    %v3238 = vunpack.c.l.b16 %v1542
    %v3239 = vunpack.c.l.b16 %v1557
    %v3240 = vunpack.c.l.b16 %v1564
    %v3241 = vunpack.c.l.b16 %v1579
    %v3242 = vunpack.c.l.b16 %v1586
    %v3243 = vunpack.c.l.b16 %v1601
    %v3244 = vunpack.c.l.b16 %v1608
    %v3245 = vunpack.c.l.b16 %v1623
    %v3246 = vunpack.c.l.b16 %v1630
    %v3247 = vunpack.c.l.b16 %v1645
    %v3248 = vunpack.c.l.b16 %v1652
    %v3249 = vunpack.c.l.b16 %v1667
    %v3250 = vunpack.c.l.b16 %v1674
    %v3251 = vunpack.c.l.b16 %v1689
    %v3252 = vunpack.c.l.b16 %v1696
    %v3253 = vunpack.c.l.b16 %v1711
    %v3254 = vunpack.c.l.b16 %v1718
    %v3255 = vunpack.c.l.b16 %v1733
    %v3256 = vunpack.c.l.b16 %v1740
    %v3257 = vunpack.c.l.b16 %v1755
    %v3258 = vunpack.c.l.b16 %v1762
    %v3259 = vunpack.c.l.b16 %v1777
    %v3260 = vunpack.c.l.b16 %v1784
    %v3261 = vunpack.c.l.b16 %v1799
    %v3262 = vunpack.c.l.b16 %v1806
    %v3263 = vunpack.c.l.b16 %v1821
    %v3264 = vunpack.c.l.b16 %v1828
    %v3265 = vunpack.c.l.b16 %v1843
    %v3266 = vunpack.c.l.b16 %v1850
    %v3267 = vunpack.c.l.b16 %v1865
    %v3268 = vunpack.c.l.b16 %v1872
    %v3269 = vunpack.c.l.b16 %v1887
    %v3270 = vunpack.c.l.b16 %v1894
    %v3271 = vunpack.c.l.b16 %v1909
    %v3272 = vunpack.c.l.b16 %v1916
    %v3273 = vunpack.c.l.b16 %v1931
    %v3274 = vunpack.c.l.b16 %v1938
    %v3275 = vunpack.c.l.b16 %v1953
    %v3276 = vunpack.c.l.b16 %v1960
    %v3277 = vunpack.c.l.b16 %v1975
    %v3278 = vunpack.c.l.b16 %v1982
    %v3279 = vunpack.c.l.b16 %v1997
    %v3280 = vunpack.c.l.b16 %v2004
    %v3281 = vunpack.c.l.b16 %v2019
    %v3282 = vunpack.c.l.b16 %v2026
    %v3283 = vunpack.c.l.b16 %v2041
    %v3284 = vunpack.c.l.b16 %v2048
    %v3285 = vunpack.c.l.b16 %v2063
    %v3286 = vunpack.c.l.b16 %v2070
    %v3287 = vunpack.c.l.b16 %v2085
    %v3288 = vunpack.c.l.b16 %v2092
    %v3289 = vunpack.c.l.b16 %v2107
    %v3290 = vunpack.c.l.b16 %v2114
    %v3291 = vunpack.c.l.b16 %v2129
    %v3292 = vunpack.c.l.b16 %v2136
    %v3293 = vunpack.c.l.b16 %v2151
    %v3294 = vunpack.c.l.b16 %v2158
    %v3295 = vunpack.c.l.b16 %v2173
    %v3296 = vunpack.c.l.b16 %v2180
    %v3297 = vunpack.c.l.b16 %v2195
    %v3298 = vunpack.c.l.b16 %v2202
    %v3299 = vunpack.c.l.b16 %v2217
    %v3300 = vunpack.c.l.b16 %v2224
    %v3301 = vunpack.c.l.b16 %v2239
    %v3302 = vunpack.c.l.b16 %v2246
    %v3303 = vunpack.c.l.b16 %v2261
    %v3304 = vunpack.c.l.b16 %v2268
    %v3305 = vunpack.c.l.b16 %v2283
    %v3306 = vunpack.c.l.b16 %v2290
    %v3307 = vunpack.c.l.b16 %v2305
    %v3308 = vunpack.c.l.b16 %v2312
    %v3309 = vunpack.c.l.b16 %v2327
    %v3310 = vunpack.c.l.b16 %v2334
    %v3311 = vunpack.c.l.b16 %v2349
    %v3312 = vunpack.c.l.b16 %v2356
    %v3313 = vunpack.c.l.b16 %v2371
    %v3314 = vunpack.c.l.b16 %v2378
    %v3315 = vunpack.c.l.b16 %v2393
    %v3316 = vunpack.c.l.b16 %v2400
    %v3317 = vunpack.c.l.b16 %v2415
    %v3318 = vunpack.c.l.b16 %v2422
    %v3319 = vunpack.c.l.b16 %v2437
    %v3320 = vunpack.c.l.b16 %v2444
    %v3321 = vunpack.c.l.b16 %v2459
    %v3322 = vunpack.c.l.b16 %v2466
    %v3323 = vunpack.c.l.b16 %v2481
    %v3324 = vunpack.c.l.b16 %v2488
    %v3325 = vunpack.c.l.b16 %v2503
    %v3326 = vunpack.c.l.b16 %v2510
    %v3327 = vunpack.c.l.b16 %v2525
    %v3328 = vunpack.c.l.b16 %v2532
    %v3329 = vunpack.c.l.b16 %v2547
    %v3330 = vunpack.c.l.b16 %v2554
    %v3331 = vunpack.c.l.b16 %v2569
    %v3332 = vunpack.c.l.b16 %v2576
    %v3333 = vunpack.c.l.b16 %v2591
    %v3334 = vunpack.c.l.b16 %v2598
    %v3335 = vunpack.c.l.b16 %v2613
    %v3336 = vunpack.c.l.b16 %v2620
    %v3337 = vunpack.c.l.b16 %v2635
    %v3338 = vunpack.c.l.b16 %v2642
    %v3339 = vunpack.c.l.b16 %v2657
    %v3340 = vunpack.c.l.b16 %v2664
    %v3341 = vunpack.c.l.b16 %v2679
    %v3342 = vunpack.c.l.b16 %v2686
    %v3343 = vunpack.c.l.b16 %v2701
    %v3344 = vunpack.c.l.b16 %v2708
    %v3345 = vunpack.c.l.b16 %v2723
    %v3346 = vunpack.c.l.b16 %v2730
    %v3347 = vunpack.c.l.b16 %v2745
    %v3348 = vunpack.c.l.b16 %v2752
    %v3349 = vunpack.c.l.b16 %v2767
    %v3350 = vunpack.c.l.b16 %v2774
    %v3351 = vunpack.c.l.b16 %v2789
    %v3352 = vunpack.c.l.b16 %v2796
    %v3353 = vunpack.c.l.b16 %v2811
    %v3354 = vunpack.c.l.b16 %v2818
    %v3355 = vunpack.c.l.b16 %v2833
    %v3356 = vunpack.c.l.b16 %v2840
    %v3357 = vunpack.c.l.b16 %v2855
    %v3358 = vunpack.c.l.b16 %v2862
    %v3359 = vunpack.c.l.b16 %v2877
    %v3360 = vunpack.c.l.b16 %v2884
    %v3361 = vunpack.c.l.b16 %v2899
    %v3362 = vunpack.c.l.b16 %v2906
    %v3363 = vunpack.c.l.b16 %v2921
    %v3364 = vunpack.c.l.b16 %v2928
    %v3365 = vunpack.c.l.b16 %v2943
    %v3366 = vunpack.c.l.b16 %v2950
    %v3367 = vunpack.c.l.b16 %v2965
    %v3368 = vunpack.c.l.b16 %v2972
    %v3369 = vunpack.c.l.b16 %v2987
    %v3370 = vunpack.c.l.b16 %v2994
    %v3371 = vunpack.c.l.b16 %v3009
    %v3372 = vunpack.c.l.b16 %v3016
    %v3373 = vunpack.c.l.b16 %v3031
    %v3374 = vunpack.c.l.b16 %v3038
    %v3375 = vunpack.c.l.b16 %v3053
    %v3376 = vunpack.c.l.b16 %v3060
    %v3377 = vunpack.c.l.b16 %v3075
    %v3378 = vunpack.c.l.b16 %v3082
    %v3379 = vunpack.c.l.b16 %v3097
    %v3380 = vunpack.c.l.b16 %v3104
    %v3381 = vunpack.c.l.b16 %v3119
    %v3382 = vunpack.c.l.b16 %v3126
    %v3383 = vrot.slane %v3129, 7
    %vm3384 = vcmask 1041409
    %v3385 = vsel %vm3384, %v3383, %v3127
    %v3386 = vrot.slane %v3131, 6
    %vm3387 = vcmask 1042434
    %v3388 = vsel %vm3387, %v3386, %v3385
    %v3389 = vrot.slane %v3133, 5
    %vm3390 = vcmask 1043459
    %v3391 = vsel %vm3390, %v3389, %v3388
    %v3392 = vrot.slane %v3135, 4
    %vm3393 = vcmask 1044484
    %v3394 = vsel %vm3393, %v3392, %v3391
    %v3395 = vrot.slane %v3137, 3
    %vm3396 = vcmask 1045509
    %v3397 = vsel %vm3396, %v3395, %v3394
    %v3398 = vrot.slane %v3139, 2
    %vm3399 = vcmask 1046534
    %v3400 = vsel %vm3399, %v3398, %v3397
    %v3401 = vrot.slane %v3141, 1
    %vm3402 = vcmask 1047559
    %v3403 = vsel %vm3402, %v3401, %v3400
    %v3404 = vrot.slane %v3130, 7
    %v3405 = vsel %vm3384, %v3404, %v3128
    %v3406 = vrot.slane %v3132, 6
    %v3407 = vsel %vm3387, %v3406, %v3405
    %v3408 = vrot.slane %v3134, 5
    %v3409 = vsel %vm3390, %v3408, %v3407
    %v3410 = vrot.slane %v3136, 4
    %v3411 = vsel %vm3393, %v3410, %v3409
    %v3412 = vrot.slane %v3138, 3
    %v3413 = vsel %vm3396, %v3412, %v3411
    %v3414 = vrot.slane %v3140, 2
    %v3415 = vsel %vm3399, %v3414, %v3413
    %v3416 = vrot.slane %v3142, 1
    %v3417 = vsel %vm3402, %v3416, %v3415
    %v3418 = vrot.slane %v3145, 7
    %v3419 = vsel %vm3384, %v3418, %v3143
    %v3420 = vrot.slane %v3147, 6
    %v3421 = vsel %vm3387, %v3420, %v3419
    %v3422 = vrot.slane %v3149, 5
    %v3423 = vsel %vm3390, %v3422, %v3421
    %v3424 = vrot.slane %v3151, 4
    %v3425 = vsel %vm3393, %v3424, %v3423
    %v3426 = vrot.slane %v3153, 3
    %v3427 = vsel %vm3396, %v3426, %v3425
    %v3428 = vrot.slane %v3155, 2
    %v3429 = vsel %vm3399, %v3428, %v3427
    %v3430 = vrot.slane %v3157, 1
    %v3431 = vsel %vm3402, %v3430, %v3429
    %v3432 = vrot.slane %v3146, 7
    %v3433 = vsel %vm3384, %v3432, %v3144
    %v3434 = vrot.slane %v3148, 6
    %v3435 = vsel %vm3387, %v3434, %v3433
    %v3436 = vrot.slane %v3150, 5
    %v3437 = vsel %vm3390, %v3436, %v3435
    %v3438 = vrot.slane %v3152, 4
    %v3439 = vsel %vm3393, %v3438, %v3437
    %v3440 = vrot.slane %v3154, 3
    %v3441 = vsel %vm3396, %v3440, %v3439
    %v3442 = vrot.slane %v3156, 2
    %v3443 = vsel %vm3399, %v3442, %v3441
    %v3444 = vrot.slane %v3158, 1
    %v3445 = vsel %vm3402, %v3444, %v3443
    %v3446 = vrot.slane %v3161, 7
    %v3447 = vsel %vm3384, %v3446, %v3159
    %v3448 = vrot.slane %v3163, 6
    %v3449 = vsel %vm3387, %v3448, %v3447
    %v3450 = vrot.slane %v3165, 5
    %v3451 = vsel %vm3390, %v3450, %v3449
    %v3452 = vrot.slane %v3167, 4
    %v3453 = vsel %vm3393, %v3452, %v3451
    %v3454 = vrot.slane %v3169, 3
    %v3455 = vsel %vm3396, %v3454, %v3453
    %v3456 = vrot.slane %v3171, 2
    %v3457 = vsel %vm3399, %v3456, %v3455
    %v3458 = vrot.slane %v3173, 1
    %v3459 = vsel %vm3402, %v3458, %v3457
    %v3460 = vrot.slane %v3162, 7
    %v3461 = vsel %vm3384, %v3460, %v3160
    %v3462 = vrot.slane %v3164, 6
    %v3463 = vsel %vm3387, %v3462, %v3461
    %v3464 = vrot.slane %v3166, 5
    %v3465 = vsel %vm3390, %v3464, %v3463
    %v3466 = vrot.slane %v3168, 4
    %v3467 = vsel %vm3393, %v3466, %v3465
    %v3468 = vrot.slane %v3170, 3
    %v3469 = vsel %vm3396, %v3468, %v3467
    %v3470 = vrot.slane %v3172, 2
    %v3471 = vsel %vm3399, %v3470, %v3469
    %v3472 = vrot.slane %v3174, 1
    %v3473 = vsel %vm3402, %v3472, %v3471
    %v3474 = vrot.slane %v3177, 7
    %v3475 = vsel %vm3384, %v3474, %v3175
    %v3476 = vrot.slane %v3179, 6
    %v3477 = vsel %vm3387, %v3476, %v3475
    %v3478 = vrot.slane %v3181, 5
    %v3479 = vsel %vm3390, %v3478, %v3477
    %v3480 = vrot.slane %v3183, 4
    %v3481 = vsel %vm3393, %v3480, %v3479
    %v3482 = vrot.slane %v3185, 3
    %v3483 = vsel %vm3396, %v3482, %v3481
    %v3484 = vrot.slane %v3187, 2
    %v3485 = vsel %vm3399, %v3484, %v3483
    %v3486 = vrot.slane %v3189, 1
    %v3487 = vsel %vm3402, %v3486, %v3485
    %v3488 = vrot.slane %v3178, 7
    %v3489 = vsel %vm3384, %v3488, %v3176
    %v3490 = vrot.slane %v3180, 6
    %v3491 = vsel %vm3387, %v3490, %v3489
    %v3492 = vrot.slane %v3182, 5
    %v3493 = vsel %vm3390, %v3492, %v3491
    %v3494 = vrot.slane %v3184, 4
    %v3495 = vsel %vm3393, %v3494, %v3493
    %v3496 = vrot.slane %v3186, 3
    %v3497 = vsel %vm3396, %v3496, %v3495
    %v3498 = vrot.slane %v3188, 2
    %v3499 = vsel %vm3399, %v3498, %v3497
    %v3500 = vrot.slane %v3190, 1
    %v3501 = vsel %vm3402, %v3500, %v3499
    %v3502 = vrot.slane %v3193, 7
    %v3503 = vsel %vm3384, %v3502, %v3191
    %v3504 = vrot.slane %v3195, 6
    %v3505 = vsel %vm3387, %v3504, %v3503
    %v3506 = vrot.slane %v3197, 5
    %v3507 = vsel %vm3390, %v3506, %v3505
    %v3508 = vrot.slane %v3199, 4
    %v3509 = vsel %vm3393, %v3508, %v3507
    %v3510 = vrot.slane %v3201, 3
    %v3511 = vsel %vm3396, %v3510, %v3509
    %v3512 = vrot.slane %v3203, 2
    %v3513 = vsel %vm3399, %v3512, %v3511
    %v3514 = vrot.slane %v3205, 1
    %v3515 = vsel %vm3402, %v3514, %v3513
    %v3516 = vrot.slane %v3194, 7
    %v3517 = vsel %vm3384, %v3516, %v3192
    %v3518 = vrot.slane %v3196, 6
    %v3519 = vsel %vm3387, %v3518, %v3517
    %v3520 = vrot.slane %v3198, 5
    %v3521 = vsel %vm3390, %v3520, %v3519
    %v3522 = vrot.slane %v3200, 4
    %v3523 = vsel %vm3393, %v3522, %v3521
    %v3524 = vrot.slane %v3202, 3
    %v3525 = vsel %vm3396, %v3524, %v3523
    %v3526 = vrot.slane %v3204, 2
    %v3527 = vsel %vm3399, %v3526, %v3525
    %v3528 = vrot.slane %v3206, 1
    %v3529 = vsel %vm3402, %v3528, %v3527
    %v3530 = vrot.slane %v3209, 7
    %v3531 = vsel %vm3384, %v3530, %v3207
    %v3532 = vrot.slane %v3211, 6
    %v3533 = vsel %vm3387, %v3532, %v3531
    %v3534 = vrot.slane %v3213, 5
    %v3535 = vsel %vm3390, %v3534, %v3533
    %v3536 = vrot.slane %v3215, 4
    %v3537 = vsel %vm3393, %v3536, %v3535
    %v3538 = vrot.slane %v3217, 3
    %v3539 = vsel %vm3396, %v3538, %v3537
    %v3540 = vrot.slane %v3219, 2
    %v3541 = vsel %vm3399, %v3540, %v3539
    %v3542 = vrot.slane %v3221, 1
    %v3543 = vsel %vm3402, %v3542, %v3541
    %v3544 = vrot.slane %v3210, 7
    %v3545 = vsel %vm3384, %v3544, %v3208
    %v3546 = vrot.slane %v3212, 6
    %v3547 = vsel %vm3387, %v3546, %v3545
    %v3548 = vrot.slane %v3214, 5
    %v3549 = vsel %vm3390, %v3548, %v3547
    %v3550 = vrot.slane %v3216, 4
    %v3551 = vsel %vm3393, %v3550, %v3549
    %v3552 = vrot.slane %v3218, 3
    %v3553 = vsel %vm3396, %v3552, %v3551
    %v3554 = vrot.slane %v3220, 2
    %v3555 = vsel %vm3399, %v3554, %v3553
    %v3556 = vrot.slane %v3222, 1
    %v3557 = vsel %vm3402, %v3556, %v3555
    %v3558 = vrot.slane %v3225, 7
    %v3559 = vsel %vm3384, %v3558, %v3223
    %v3560 = vrot.slane %v3227, 6
    %v3561 = vsel %vm3387, %v3560, %v3559
    %v3562 = vrot.slane %v3229, 5
    %v3563 = vsel %vm3390, %v3562, %v3561
    %v3564 = vrot.slane %v3231, 4
    %v3565 = vsel %vm3393, %v3564, %v3563
    %v3566 = vrot.slane %v3233, 3
    %v3567 = vsel %vm3396, %v3566, %v3565
    %v3568 = vrot.slane %v3235, 2
    %v3569 = vsel %vm3399, %v3568, %v3567
    %v3570 = vrot.slane %v3237, 1
    %v3571 = vsel %vm3402, %v3570, %v3569
    %v3572 = vrot.slane %v3226, 7
    %v3573 = vsel %vm3384, %v3572, %v3224
    %v3574 = vrot.slane %v3228, 6
    %v3575 = vsel %vm3387, %v3574, %v3573
    %v3576 = vrot.slane %v3230, 5
    %v3577 = vsel %vm3390, %v3576, %v3575
    %v3578 = vrot.slane %v3232, 4
    %v3579 = vsel %vm3393, %v3578, %v3577
    %v3580 = vrot.slane %v3234, 3
    %v3581 = vsel %vm3396, %v3580, %v3579
    %v3582 = vrot.slane %v3236, 2
    %v3583 = vsel %vm3399, %v3582, %v3581
    %v3584 = vrot.slane %v3238, 1
    %v3585 = vsel %vm3402, %v3584, %v3583
    %v3586 = vrot.slane %v3241, 7
    %v3587 = vsel %vm3384, %v3586, %v3239
    %v3588 = vrot.slane %v3243, 6
    %v3589 = vsel %vm3387, %v3588, %v3587
    %v3590 = vrot.slane %v3245, 5
    %v3591 = vsel %vm3390, %v3590, %v3589
    %v3592 = vrot.slane %v3247, 4
    %v3593 = vsel %vm3393, %v3592, %v3591
    %v3594 = vrot.slane %v3249, 3
    %v3595 = vsel %vm3396, %v3594, %v3593
    %v3596 = vrot.slane %v3251, 2
    %v3597 = vsel %vm3399, %v3596, %v3595
    %v3598 = vrot.slane %v3253, 1
    %v3599 = vsel %vm3402, %v3598, %v3597
    %v3600 = vrot.slane %v3242, 7
    %v3601 = vsel %vm3384, %v3600, %v3240
    %v3602 = vrot.slane %v3244, 6
    %v3603 = vsel %vm3387, %v3602, %v3601
    %v3604 = vrot.slane %v3246, 5
    %v3605 = vsel %vm3390, %v3604, %v3603
    %v3606 = vrot.slane %v3248, 4
    %v3607 = vsel %vm3393, %v3606, %v3605
    %v3608 = vrot.slane %v3250, 3
    %v3609 = vsel %vm3396, %v3608, %v3607
    %v3610 = vrot.slane %v3252, 2
    %v3611 = vsel %vm3399, %v3610, %v3609
    %v3612 = vrot.slane %v3254, 1
    %v3613 = vsel %vm3402, %v3612, %v3611
    %v3614 = vrot.slane %v3257, 7
    %v3615 = vsel %vm3384, %v3614, %v3255
    %v3616 = vrot.slane %v3259, 6
    %v3617 = vsel %vm3387, %v3616, %v3615
    %v3618 = vrot.slane %v3261, 5
    %v3619 = vsel %vm3390, %v3618, %v3617
    %v3620 = vrot.slane %v3263, 4
    %v3621 = vsel %vm3393, %v3620, %v3619
    %v3622 = vrot.slane %v3265, 3
    %v3623 = vsel %vm3396, %v3622, %v3621
    %v3624 = vrot.slane %v3267, 2
    %v3625 = vsel %vm3399, %v3624, %v3623
    %v3626 = vrot.slane %v3269, 1
    %v3627 = vsel %vm3402, %v3626, %v3625
    %v3628 = vrot.slane %v3258, 7
    %v3629 = vsel %vm3384, %v3628, %v3256
    %v3630 = vrot.slane %v3260, 6
    %v3631 = vsel %vm3387, %v3630, %v3629
    %v3632 = vrot.slane %v3262, 5
    %v3633 = vsel %vm3390, %v3632, %v3631
    %v3634 = vrot.slane %v3264, 4
    %v3635 = vsel %vm3393, %v3634, %v3633
    %v3636 = vrot.slane %v3266, 3
    %v3637 = vsel %vm3396, %v3636, %v3635
    %v3638 = vrot.slane %v3268, 2
    %v3639 = vsel %vm3399, %v3638, %v3637
    %v3640 = vrot.slane %v3270, 1
    %v3641 = vsel %vm3402, %v3640, %v3639
    %v3642 = vrot.slane %v3273, 7
    %v3643 = vsel %vm3384, %v3642, %v3271
    %v3644 = vrot.slane %v3275, 6
    %v3645 = vsel %vm3387, %v3644, %v3643
    %v3646 = vrot.slane %v3277, 5
    %v3647 = vsel %vm3390, %v3646, %v3645
    %v3648 = vrot.slane %v3279, 4
    %v3649 = vsel %vm3393, %v3648, %v3647
    %v3650 = vrot.slane %v3281, 3
    %v3651 = vsel %vm3396, %v3650, %v3649
    %v3652 = vrot.slane %v3283, 2
    %v3653 = vsel %vm3399, %v3652, %v3651
    %v3654 = vrot.slane %v3285, 1
    %v3655 = vsel %vm3402, %v3654, %v3653
    %v3656 = vrot.slane %v3274, 7
    %v3657 = vsel %vm3384, %v3656, %v3272
    %v3658 = vrot.slane %v3276, 6
    %v3659 = vsel %vm3387, %v3658, %v3657
    %v3660 = vrot.slane %v3278, 5
    %v3661 = vsel %vm3390, %v3660, %v3659
    %v3662 = vrot.slane %v3280, 4
    %v3663 = vsel %vm3393, %v3662, %v3661
    %v3664 = vrot.slane %v3282, 3
    %v3665 = vsel %vm3396, %v3664, %v3663
    %v3666 = vrot.slane %v3284, 2
    %v3667 = vsel %vm3399, %v3666, %v3665
    %v3668 = vrot.slane %v3286, 1
    %v3669 = vsel %vm3402, %v3668, %v3667
    %v3670 = vrot.slane %v3289, 7
    %v3671 = vsel %vm3384, %v3670, %v3287
    %v3672 = vrot.slane %v3291, 6
    %v3673 = vsel %vm3387, %v3672, %v3671
    %v3674 = vrot.slane %v3293, 5
    %v3675 = vsel %vm3390, %v3674, %v3673
    %v3676 = vrot.slane %v3295, 4
    %v3677 = vsel %vm3393, %v3676, %v3675
    %v3678 = vrot.slane %v3297, 3
    %v3679 = vsel %vm3396, %v3678, %v3677
    %v3680 = vrot.slane %v3299, 2
    %v3681 = vsel %vm3399, %v3680, %v3679
    %v3682 = vrot.slane %v3301, 1
    %v3683 = vsel %vm3402, %v3682, %v3681
    %v3684 = vrot.slane %v3290, 7
    %v3685 = vsel %vm3384, %v3684, %v3288
    %v3686 = vrot.slane %v3292, 6
    %v3687 = vsel %vm3387, %v3686, %v3685
    %v3688 = vrot.slane %v3294, 5
    %v3689 = vsel %vm3390, %v3688, %v3687
    %v3690 = vrot.slane %v3296, 4
    %v3691 = vsel %vm3393, %v3690, %v3689
    %v3692 = vrot.slane %v3298, 3
    %v3693 = vsel %vm3396, %v3692, %v3691
    %v3694 = vrot.slane %v3300, 2
    %v3695 = vsel %vm3399, %v3694, %v3693
    %v3696 = vrot.slane %v3302, 1
    %v3697 = vsel %vm3402, %v3696, %v3695
    %v3698 = vrot.slane %v3305, 7
    %v3699 = vsel %vm3384, %v3698, %v3303
    %v3700 = vrot.slane %v3307, 6
    %v3701 = vsel %vm3387, %v3700, %v3699
    %v3702 = vrot.slane %v3309, 5
    %v3703 = vsel %vm3390, %v3702, %v3701
    %v3704 = vrot.slane %v3311, 4
    %v3705 = vsel %vm3393, %v3704, %v3703
    %v3706 = vrot.slane %v3313, 3
    %v3707 = vsel %vm3396, %v3706, %v3705
    %v3708 = vrot.slane %v3315, 2
    %v3709 = vsel %vm3399, %v3708, %v3707
    %v3710 = vrot.slane %v3317, 1
    %v3711 = vsel %vm3402, %v3710, %v3709
    %v3712 = vrot.slane %v3306, 7
    %v3713 = vsel %vm3384, %v3712, %v3304
    %v3714 = vrot.slane %v3308, 6
    %v3715 = vsel %vm3387, %v3714, %v3713
    %v3716 = vrot.slane %v3310, 5
    %v3717 = vsel %vm3390, %v3716, %v3715
    %v3718 = vrot.slane %v3312, 4
    %v3719 = vsel %vm3393, %v3718, %v3717
    %v3720 = vrot.slane %v3314, 3
    %v3721 = vsel %vm3396, %v3720, %v3719
    %v3722 = vrot.slane %v3316, 2
    %v3723 = vsel %vm3399, %v3722, %v3721
    %v3724 = vrot.slane %v3318, 1
    %v3725 = vsel %vm3402, %v3724, %v3723
    %v3726 = vrot.slane %v3321, 7
    %v3727 = vsel %vm3384, %v3726, %v3319
    %v3728 = vrot.slane %v3323, 6
    %v3729 = vsel %vm3387, %v3728, %v3727
    %v3730 = vrot.slane %v3325, 5
    %v3731 = vsel %vm3390, %v3730, %v3729
    %v3732 = vrot.slane %v3327, 4
    %v3733 = vsel %vm3393, %v3732, %v3731
    %v3734 = vrot.slane %v3329, 3
    %v3735 = vsel %vm3396, %v3734, %v3733
    %v3736 = vrot.slane %v3331, 2
    %v3737 = vsel %vm3399, %v3736, %v3735
    %v3738 = vrot.slane %v3333, 1
    %v3739 = vsel %vm3402, %v3738, %v3737
    %v3740 = vrot.slane %v3322, 7
    %v3741 = vsel %vm3384, %v3740, %v3320
    %v3742 = vrot.slane %v3324, 6
    %v3743 = vsel %vm3387, %v3742, %v3741
    %v3744 = vrot.slane %v3326, 5
    %v3745 = vsel %vm3390, %v3744, %v3743
    %v3746 = vrot.slane %v3328, 4
    %v3747 = vsel %vm3393, %v3746, %v3745
    %v3748 = vrot.slane %v3330, 3
    %v3749 = vsel %vm3396, %v3748, %v3747
    %v3750 = vrot.slane %v3332, 2
    %v3751 = vsel %vm3399, %v3750, %v3749
    %v3752 = vrot.slane %v3334, 1
    %v3753 = vsel %vm3402, %v3752, %v3751
    %v3754 = vrot.slane %v3337, 7
    %v3755 = vsel %vm3384, %v3754, %v3335
    %v3756 = vrot.slane %v3339, 6
    %v3757 = vsel %vm3387, %v3756, %v3755
    %v3758 = vrot.slane %v3341, 5
    %v3759 = vsel %vm3390, %v3758, %v3757
    %v3760 = vrot.slane %v3343, 4
    %v3761 = vsel %vm3393, %v3760, %v3759
    %v3762 = vrot.slane %v3345, 3
    %v3763 = vsel %vm3396, %v3762, %v3761
    %v3764 = vrot.slane %v3347, 2
    %v3765 = vsel %vm3399, %v3764, %v3763
    %v3766 = vrot.slane %v3349, 1
    %v3767 = vsel %vm3402, %v3766, %v3765
    %v3768 = vrot.slane %v3338, 7
    %v3769 = vsel %vm3384, %v3768, %v3336
    %v3770 = vrot.slane %v3340, 6
    %v3771 = vsel %vm3387, %v3770, %v3769
    %v3772 = vrot.slane %v3342, 5
    %v3773 = vsel %vm3390, %v3772, %v3771
    %v3774 = vrot.slane %v3344, 4
    %v3775 = vsel %vm3393, %v3774, %v3773
    %v3776 = vrot.slane %v3346, 3
    %v3777 = vsel %vm3396, %v3776, %v3775
    %v3778 = vrot.slane %v3348, 2
    %v3779 = vsel %vm3399, %v3778, %v3777
    %v3780 = vrot.slane %v3350, 1
    %v3781 = vsel %vm3402, %v3780, %v3779
    %v3782 = vrot.slane %v3353, 7
    %v3783 = vsel %vm3384, %v3782, %v3351
    %v3784 = vrot.slane %v3355, 6
    %v3785 = vsel %vm3387, %v3784, %v3783
    %v3786 = vrot.slane %v3357, 5
    %v3787 = vsel %vm3390, %v3786, %v3785
    %v3788 = vrot.slane %v3359, 4
    %v3789 = vsel %vm3393, %v3788, %v3787
    %v3790 = vrot.slane %v3361, 3
    %v3791 = vsel %vm3396, %v3790, %v3789
    %v3792 = vrot.slane %v3363, 2
    %v3793 = vsel %vm3399, %v3792, %v3791
    %v3794 = vrot.slane %v3365, 1
    %v3795 = vsel %vm3402, %v3794, %v3793
    %v3796 = vrot.slane %v3354, 7
    %v3797 = vsel %vm3384, %v3796, %v3352
    %v3798 = vrot.slane %v3356, 6
    %v3799 = vsel %vm3387, %v3798, %v3797
    %v3800 = vrot.slane %v3358, 5
    %v3801 = vsel %vm3390, %v3800, %v3799
    %v3802 = vrot.slane %v3360, 4
    %v3803 = vsel %vm3393, %v3802, %v3801
    %v3804 = vrot.slane %v3362, 3
    %v3805 = vsel %vm3396, %v3804, %v3803
    %v3806 = vrot.slane %v3364, 2
    %v3807 = vsel %vm3399, %v3806, %v3805
    %v3808 = vrot.slane %v3366, 1
    %v3809 = vsel %vm3402, %v3808, %v3807
    %v3810 = vrot.slane %v3369, 7
    %v3811 = vsel %vm3384, %v3810, %v3367
    %v3812 = vrot.slane %v3371, 6
    %v3813 = vsel %vm3387, %v3812, %v3811
    %v3814 = vrot.slane %v3373, 5
    %v3815 = vsel %vm3390, %v3814, %v3813
    %v3816 = vrot.slane %v3375, 4
    %v3817 = vsel %vm3393, %v3816, %v3815
    %v3818 = vrot.slane %v3377, 3
    %v3819 = vsel %vm3396, %v3818, %v3817
    %v3820 = vrot.slane %v3379, 2
    %v3821 = vsel %vm3399, %v3820, %v3819
    %v3822 = vrot.slane %v3381, 1
    %v3823 = vsel %vm3402, %v3822, %v3821
    %v3824 = vrot.slane %v3370, 7
    %v3825 = vsel %vm3384, %v3824, %v3368
    %v3826 = vrot.slane %v3372, 6
    %v3827 = vsel %vm3387, %v3826, %v3825
    %v3828 = vrot.slane %v3374, 5
    %v3829 = vsel %vm3390, %v3828, %v3827
    %v3830 = vrot.slane %v3376, 4
    %v3831 = vsel %vm3393, %v3830, %v3829
    %v3832 = vrot.slane %v3378, 3
    %v3833 = vsel %vm3396, %v3832, %v3831
    %v3834 = vrot.slane %v3380, 2
    %v3835 = vsel %vm3399, %v3834, %v3833
    %v3836 = vrot.slane %v3382, 1
    %v3837 = vsel %vm3402, %v3836, %v3835
    %v3838 = vpack.c.b16 %v3431, %v3403
    %v3839 = vpack.c.b16 %v3445, %v3417
    %v3840 = vpack.c.b16 %v3487, %v3459
    %v3841 = vpack.c.b16 %v3501, %v3473
    %v3842 = vpack.c.b16 %v3543, %v3515
    %v3843 = vpack.c.b16 %v3557, %v3529
    %v3844 = vpack.c.b16 %v3599, %v3571
    %v3845 = vpack.c.b16 %v3613, %v3585
    %v3846 = vpack.c.b16 %v3655, %v3627
    %v3847 = vpack.c.b16 %v3669, %v3641
    %v3848 = vpack.c.b16 %v3711, %v3683
    %v3849 = vpack.c.b16 %v3725, %v3697
    %v3850 = vpack.c.b16 %v3767, %v3739
    %v3851 = vpack.c.b16 %v3781, %v3753
    %v3852 = vpack.c.b16 %v3823, %v3795
    %v3853 = vpack.c.b16 %v3837, %v3809
    %v3902 = vunpack.c.l.b16 %v144
    %v3903 = vunpack.c.l.b16 %v145
    %v3904 = vunpack.c.l.b16 %v146
    %v3905 = vunpack.c.l.b16 %v147
    %v3906 = vunpack.c.l.b16 %v148
    %v3907 = vunpack.c.l.b16 %v149
    %v3908 = vunpack.c.l.b16 %v150
    %v3909 = vunpack.c.l.b16 %v151
    %v3910 = vunpack.c.l.b16 %v152
    %v3911 = vunpack.c.l.b16 %v153
    %v3912 = vunpack.c.l.b16 %v154
    %v3913 = vunpack.c.l.b16 %v155
    %v3914 = vunpack.c.l.b16 %v156
    %v3915 = vunpack.c.l.b16 %v157
    %v3916 = vunpack.c.l.b16 %v158
    %v3917 = vunpack.c.l.b16 %v159
    %v3918 = vunpack.c.l.b16 %v160
    %v3919 = vunpack.c.l.b16 %v161
    %v3920 = vunpack.c.l.b16 %v162
    %v3921 = vunpack.c.l.b16 %v163
    %v3922 = vunpack.c.l.b16 %v164
    %v3923 = vunpack.c.l.b16 %v165
    %v3924 = vunpack.c.l.b16 %v166
    %v3925 = vunpack.c.l.b16 %v167
    %v3926 = vunpack.c.l.b16 %v168
    %v3927 = vunpack.c.l.b16 %v169
    %v3928 = vunpack.c.l.b16 %v170
    %v3929 = vunpack.c.l.b16 %v171
    %v3930 = vunpack.c.l.b16 %v172
    %v3931 = vunpack.c.l.b16 %v173
    %v3932 = vunpack.c.l.b16 %v174
    %v3933 = vunpack.c.l.b16 %v175
    %v3934 = vpack.c.b16 %v3903, %v3902
    %v3935 = vpack.c.b16 %v3905, %v3904
    %v3936 = vpack.c.b16 %v3907, %v3906
    %v3937 = vpack.c.b16 %v3909, %v3908
    %v3938 = vpack.c.b16 %v3911, %v3910
    %v3939 = vpack.c.b16 %v3913, %v3912
    %v3940 = vpack.c.b16 %v3915, %v3914
    %v3941 = vpack.c.b16 %v3917, %v3916
    %v3942 = vpack.c.b16 %v3919, %v3918
    %v3943 = vpack.c.b16 %v3921, %v3920
    %v3944 = vpack.c.b16 %v3923, %v3922
    %v3945 = vpack.c.b16 %v3925, %v3924
    %v3946 = vpack.c.b16 %v3927, %v3926
    %v3947 = vpack.c.b16 %v3929, %v3928
    %v3948 = vpack.c.b16 %v3931, %v3930
    %v3949 = vpack.c.b16 %v3933, %v3932
    %3966 = vmatprep.subr.bf16.mxu0 0
    %3967 = vmatpush1.bf16.msra.mxu0 %v3934
    %3968 = vmatprep.subr.bf16.mxu0 0
    %3969 = vmatpush1.bf16.msra.mxu0 %v3935
    %3970 = vmatprep.subr.bf16.mxu0 0
    %3971 = vmatpush1.bf16.msra.mxu0 %v3936
    %3972 = vmatprep.subr.bf16.mxu0 0
    %3973 = vmatpush1.bf16.msra.mxu0 %v3937
    %3974 = vmatprep.subr.bf16.mxu0 0
    %3975 = vmatpush1.bf16.msra.mxu0 %v3938
    %3976 = vmatprep.subr.bf16.mxu0 0
    %3977 = vmatpush1.bf16.msra.mxu0 %v3939
    %3978 = vmatprep.subr.bf16.mxu0 0
    %3979 = vmatpush1.bf16.msra.mxu0 %v3940
    %3980 = vmatprep.subr.bf16.mxu0 0
    %3981 = vmatpush1.bf16.msra.mxu0 %v3941
    %3982 = vmatprep.subr.bf16.mxu0 0
    %3983 = vmatpush1.bf16.msra.mxu0 %v3942
    %3984 = vmatprep.subr.bf16.mxu0 0
    %3985 = vmatpush1.bf16.msra.mxu0 %v3943
    %3986 = vmatprep.subr.bf16.mxu0 0
    %3987 = vmatpush1.bf16.msra.mxu0 %v3944
    %3988 = vmatprep.subr.bf16.mxu0 0
    %3989 = vmatpush1.bf16.msra.mxu0 %v3945
    %3990 = vmatprep.subr.bf16.mxu0 0
    %3991 = vmatpush1.bf16.msra.mxu0 %v3946
    %3992 = vmatprep.subr.bf16.mxu0 0
    %3993 = vmatpush1.bf16.msra.mxu0 %v3947
    %3994 = vmatprep.subr.bf16.mxu0 0
    %3995 = vmatpush1.bf16.msra.mxu0 %v3948
    %3996 = vmatprep.subr.bf16.mxu0 0
    %3997 = vmatpush1.bf16.msra.mxu0 %v3949
    %3998 = vmatprep.mubr.bf16.mxu0 %v3839
    %3999 = vmatmul.mubr.bf16.gmra.mrb[0].mxu0 %v3838
    %v4000 = vpop.f32.mrb[0].mxu0
    %v4001 = vadd.f32 %v181, %v4000
    %v4002 = vpop.f32.mrb[0].mxu0
    %v4003 = vpop.f32.mrb[0].mxu0
    %v4004 = vadd.f32 %v181, %v4003
    %v4005 = vpop.f32.mrb[0].mxu0
    %4006 = vmatprep.mubr.bf16.mxu0 %v3841
    %4007 = vmatmul.mubr.bf16.gmra.mrb[0].mxu0 %v3840
    %v4008 = vpop.f32.mrb[0].mxu0
    %v4009 = vadd.f32 %v181, %v4008
    %v4010 = vpop.f32.mrb[0].mxu0
    %v4011 = vpop.f32.mrb[0].mxu0
    %v4012 = vadd.f32 %v181, %v4011
    %v4013 = vpop.f32.mrb[0].mxu0
    %4014 = vmatprep.mubr.bf16.mxu0 %v3843
    %4015 = vmatmul.mubr.bf16.gmra.mrb[0].mxu0 %v3842
    %v4016 = vpop.f32.mrb[0].mxu0
    %v4017 = vadd.f32 %v181, %v4016
    %v4018 = vpop.f32.mrb[0].mxu0
    %v4019 = vpop.f32.mrb[0].mxu0
    %v4020 = vadd.f32 %v181, %v4019
    %v4021 = vpop.f32.mrb[0].mxu0
    %4022 = vmatprep.mubr.bf16.mxu0 %v3845
    %4023 = vmatmul.mubr.bf16.gmra.mrb[0].mxu0 %v3844
    %v4024 = vpop.f32.mrb[0].mxu0
    %v4025 = vadd.f32 %v181, %v4024
    %v4026 = vpop.f32.mrb[0].mxu0
    %v4027 = vpop.f32.mrb[0].mxu0
    %v4028 = vadd.f32 %v181, %v4027
    %v4029 = vpop.f32.mrb[0].mxu0
    %4030 = vmatprep.mubr.bf16.mxu0 %v3847
    %4031 = vmatmul.mubr.bf16.gmra.mrb[0].mxu0 %v3846
    %v4032 = vpop.f32.mrb[0].mxu0
    %v4033 = vadd.f32 %v181, %v4032
    %v4034 = vpop.f32.mrb[0].mxu0
    %v4035 = vpop.f32.mrb[0].mxu0
    %v4036 = vadd.f32 %v181, %v4035
    %v4037 = vpop.f32.mrb[0].mxu0
    %4038 = vmatprep.mubr.bf16.mxu0 %v3849
    %4039 = vmatmul.mubr.bf16.gmra.mrb[0].mxu0 %v3848
    %v4040 = vpop.f32.mrb[0].mxu0
    %v4041 = vadd.f32 %v181, %v4040
    %v4042 = vpop.f32.mrb[0].mxu0
    %v4043 = vpop.f32.mrb[0].mxu0
    %v4044 = vadd.f32 %v181, %v4043
    %v4045 = vpop.f32.mrb[0].mxu0
    %4046 = vmatprep.mubr.bf16.mxu0 %v3851
    %4047 = vmatmul.mubr.bf16.gmra.mrb[0].mxu0 %v3850
    %v4048 = vpop.f32.mrb[0].mxu0
    %v4049 = vadd.f32 %v181, %v4048
    %v4050 = vpop.f32.mrb[0].mxu0
    %v4051 = vpop.f32.mrb[0].mxu0
    %v4052 = vadd.f32 %v181, %v4051
    %v4053 = vpop.f32.mrb[0].mxu0
    %4054 = vmatprep.mubr.bf16.mxu0 %v3853
    %4055 = vmatmul.mubr.bf16.gmra.mrb[0].mxu0 %v3852
    %v4056 = vpop.f32.mrb[0].mxu0
    %v4057 = vadd.f32 %v181, %v4056
    %v4058 = vpop.f32.mrb[0].mxu0
    %v4059 = vpop.f32.mrb[0].mxu0
    %v4060 = vadd.f32 %v181, %v4059
    %v4061 = vpop.f32.mrb[0].mxu0
    %4062 = vdwg.mxu0
    %v4079 = vcombine.high %v4001, %v4001
    %v4081 = vunpack.c.l.s4 1966171168
    %v4082 = vunpack.c.0.s8 %v4081
    %v4083 = vlaneseq
    %v4084 = vshrl.u32 %v4083, 7
    %v4085 = vsub.s32 %v4082, %v4084
    %v4086 = vrot.slane %v4001, %v4085
    %v4088 = vunpack.c.l.s4 1966171168
    %v4089 = vunpack.c.0.s8 %v4088
    %v4090 = vlaneseq
    %v4091 = vshrl.u32 %v4090, 7
    %v4092 = vsub.s32 %v4089, %v4091
    %v4093 = vrot.slane %v4079, %v4092
    %v4094 = vcombine.high %v4086, %v4086
    %v4095 = vcombine.high %v4093, %v4093
    %v4097 = vunpack.c.l.s4 1966171168
    %v4098 = vunpack.c.0.s8 %v4097
    %v4099 = vlaneseq
    %v4100 = vshrl.u32 %v4099, 7
    %v4101 = vsub.s32 %v4098, %v4100
    %v4102 = vrot.slane %v4086, %v4101
    %v4104 = vunpack.c.l.s4 1966171168
    %v4105 = vunpack.c.0.s8 %v4104
    %v4106 = vlaneseq
    %v4107 = vshrl.u32 %v4106, 7
    %v4108 = vsub.s32 %v4105, %v4107
    %v4109 = vrot.slane %v4093, %v4108
    %v4111 = vunpack.c.l.s4 1966171168
    %v4112 = vunpack.c.0.s8 %v4111
    %v4113 = vlaneseq
    %v4114 = vshrl.u32 %v4113, 7
    %v4115 = vsub.s32 %v4112, %v4114
    %v4116 = vrot.slane %v4094, %v4115
    %v4118 = vunpack.c.l.s4 1966171168
    %v4119 = vunpack.c.0.s8 %v4118
    %v4120 = vlaneseq
    %v4121 = vshrl.u32 %v4120, 7
    %v4122 = vsub.s32 %v4119, %v4121
    %v4123 = vrot.slane %v4095, %v4122
    %v4124 = vcombine.high %v4102, %v4102
    %v4125 = vcombine.high %v4109, %v4109
    %v4126 = vcombine.high %v4116, %v4116
    %v4127 = vcombine.high %v4123, %v4123
    %v4128 = vcombine.high %v4004, %v4004
    %v4130 = vunpack.c.l.s4 1966171168
    %v4131 = vunpack.c.0.s8 %v4130
    %v4132 = vlaneseq
    %v4133 = vshrl.u32 %v4132, 7
    %v4134 = vsub.s32 %v4131, %v4133
    %v4135 = vrot.slane %v4004, %v4134
    %v4137 = vunpack.c.l.s4 1966171168
    %v4138 = vunpack.c.0.s8 %v4137
    %v4139 = vlaneseq
    %v4140 = vshrl.u32 %v4139, 7
    %v4141 = vsub.s32 %v4138, %v4140
    %v4142 = vrot.slane %v4128, %v4141
    %v4143 = vcombine.high %v4135, %v4135
    %v4144 = vcombine.high %v4142, %v4142
    %v4146 = vunpack.c.l.s4 1966171168
    %v4147 = vunpack.c.0.s8 %v4146
    %v4148 = vlaneseq
    %v4149 = vshrl.u32 %v4148, 7
    %v4150 = vsub.s32 %v4147, %v4149
    %v4151 = vrot.slane %v4135, %v4150
    %v4153 = vunpack.c.l.s4 1966171168
    %v4154 = vunpack.c.0.s8 %v4153
    %v4155 = vlaneseq
    %v4156 = vshrl.u32 %v4155, 7
    %v4157 = vsub.s32 %v4154, %v4156
    %v4158 = vrot.slane %v4142, %v4157
    %v4160 = vunpack.c.l.s4 1966171168
    %v4161 = vunpack.c.0.s8 %v4160
    %v4162 = vlaneseq
    %v4163 = vshrl.u32 %v4162, 7
    %v4164 = vsub.s32 %v4161, %v4163
    %v4165 = vrot.slane %v4143, %v4164
    %v4167 = vunpack.c.l.s4 1966171168
    %v4168 = vunpack.c.0.s8 %v4167
    %v4169 = vlaneseq
    %v4170 = vshrl.u32 %v4169, 7
    %v4171 = vsub.s32 %v4168, %v4170
    %v4172 = vrot.slane %v4144, %v4171
    %v4173 = vcombine.high %v4151, %v4151
    %v4174 = vcombine.high %v4158, %v4158
    %v4175 = vcombine.high %v4165, %v4165
    %v4176 = vcombine.high %v4172, %v4172
    %v4177 = vcombine.high %v4009, %v4009
    %v4179 = vunpack.c.l.s4 1966171168
    %v4180 = vunpack.c.0.s8 %v4179
    %v4181 = vlaneseq
    %v4182 = vshrl.u32 %v4181, 7
    %v4183 = vsub.s32 %v4180, %v4182
    %v4184 = vrot.slane %v4009, %v4183
    %v4186 = vunpack.c.l.s4 1966171168
    %v4187 = vunpack.c.0.s8 %v4186
    %v4188 = vlaneseq
    %v4189 = vshrl.u32 %v4188, 7
    %v4190 = vsub.s32 %v4187, %v4189
    %v4191 = vrot.slane %v4177, %v4190
    %v4192 = vcombine.high %v4184, %v4184
    %v4193 = vcombine.high %v4191, %v4191
    %v4195 = vunpack.c.l.s4 1966171168
    %v4196 = vunpack.c.0.s8 %v4195
    %v4197 = vlaneseq
    %v4198 = vshrl.u32 %v4197, 7
    %v4199 = vsub.s32 %v4196, %v4198
    %v4200 = vrot.slane %v4184, %v4199
    %v4202 = vunpack.c.l.s4 1966171168
    %v4203 = vunpack.c.0.s8 %v4202
    %v4204 = vlaneseq
    %v4205 = vshrl.u32 %v4204, 7
    %v4206 = vsub.s32 %v4203, %v4205
    %v4207 = vrot.slane %v4191, %v4206
    %v4209 = vunpack.c.l.s4 1966171168
    %v4210 = vunpack.c.0.s8 %v4209
    %v4211 = vlaneseq
    %v4212 = vshrl.u32 %v4211, 7
    %v4213 = vsub.s32 %v4210, %v4212
    %v4214 = vrot.slane %v4192, %v4213
    %v4216 = vunpack.c.l.s4 1966171168
    %v4217 = vunpack.c.0.s8 %v4216
    %v4218 = vlaneseq
    %v4219 = vshrl.u32 %v4218, 7
    %v4220 = vsub.s32 %v4217, %v4219
    %v4221 = vrot.slane %v4193, %v4220
    %v4222 = vcombine.high %v4200, %v4200
    %v4223 = vcombine.high %v4207, %v4207
    %v4224 = vcombine.high %v4214, %v4214
    %v4225 = vcombine.high %v4221, %v4221
    %v4226 = vcombine.high %v4012, %v4012
    %v4228 = vunpack.c.l.s4 1966171168
    %v4229 = vunpack.c.0.s8 %v4228
    %v4230 = vlaneseq
    %v4231 = vshrl.u32 %v4230, 7
    %v4232 = vsub.s32 %v4229, %v4231
    %v4233 = vrot.slane %v4012, %v4232
    %v4235 = vunpack.c.l.s4 1966171168
    %v4236 = vunpack.c.0.s8 %v4235
    %v4237 = vlaneseq
    %v4238 = vshrl.u32 %v4237, 7
    %v4239 = vsub.s32 %v4236, %v4238
    %v4240 = vrot.slane %v4226, %v4239
    %v4241 = vcombine.high %v4233, %v4233
    %v4242 = vcombine.high %v4240, %v4240
    %v4244 = vunpack.c.l.s4 1966171168
    %v4245 = vunpack.c.0.s8 %v4244
    %v4246 = vlaneseq
    %v4247 = vshrl.u32 %v4246, 7
    %v4248 = vsub.s32 %v4245, %v4247
    %v4249 = vrot.slane %v4233, %v4248
    %v4251 = vunpack.c.l.s4 1966171168
    %v4252 = vunpack.c.0.s8 %v4251
    %v4253 = vlaneseq
    %v4254 = vshrl.u32 %v4253, 7
    %v4255 = vsub.s32 %v4252, %v4254
    %v4256 = vrot.slane %v4240, %v4255
    %v4258 = vunpack.c.l.s4 1966171168
    %v4259 = vunpack.c.0.s8 %v4258
    %v4260 = vlaneseq
    %v4261 = vshrl.u32 %v4260, 7
    %v4262 = vsub.s32 %v4259, %v4261
    %v4263 = vrot.slane %v4241, %v4262
    %v4265 = vunpack.c.l.s4 1966171168
    %v4266 = vunpack.c.0.s8 %v4265
    %v4267 = vlaneseq
    %v4268 = vshrl.u32 %v4267, 7
    %v4269 = vsub.s32 %v4266, %v4268
    %v4270 = vrot.slane %v4242, %v4269
    %v4271 = vcombine.high %v4249, %v4249
    %v4272 = vcombine.high %v4256, %v4256
    %v4273 = vcombine.high %v4263, %v4263
    %v4274 = vcombine.high %v4270, %v4270
    %v4275 = vcombine.high %v4017, %v4017
    %v4277 = vunpack.c.l.s4 1966171168
    %v4278 = vunpack.c.0.s8 %v4277
    %v4279 = vlaneseq
    %v4280 = vshrl.u32 %v4279, 7
    %v4281 = vsub.s32 %v4278, %v4280
    %v4282 = vrot.slane %v4017, %v4281
    %v4284 = vunpack.c.l.s4 1966171168
    %v4285 = vunpack.c.0.s8 %v4284
    %v4286 = vlaneseq
    %v4287 = vshrl.u32 %v4286, 7
    %v4288 = vsub.s32 %v4285, %v4287
    %v4289 = vrot.slane %v4275, %v4288
    %v4290 = vcombine.high %v4282, %v4282
    %v4291 = vcombine.high %v4289, %v4289
    %v4293 = vunpack.c.l.s4 1966171168
    %v4294 = vunpack.c.0.s8 %v4293
    %v4295 = vlaneseq
    %v4296 = vshrl.u32 %v4295, 7
    %v4297 = vsub.s32 %v4294, %v4296
    %v4298 = vrot.slane %v4282, %v4297
    %v4300 = vunpack.c.l.s4 1966171168
    %v4301 = vunpack.c.0.s8 %v4300
    %v4302 = vlaneseq
    %v4303 = vshrl.u32 %v4302, 7
    %v4304 = vsub.s32 %v4301, %v4303
    %v4305 = vrot.slane %v4289, %v4304
    %v4307 = vunpack.c.l.s4 1966171168
    %v4308 = vunpack.c.0.s8 %v4307
    %v4309 = vlaneseq
    %v4310 = vshrl.u32 %v4309, 7
    %v4311 = vsub.s32 %v4308, %v4310
    %v4312 = vrot.slane %v4290, %v4311
    %v4314 = vunpack.c.l.s4 1966171168
    %v4315 = vunpack.c.0.s8 %v4314
    %v4316 = vlaneseq
    %v4317 = vshrl.u32 %v4316, 7
    %v4318 = vsub.s32 %v4315, %v4317
    %v4319 = vrot.slane %v4291, %v4318
    %v4320 = vcombine.high %v4298, %v4298
    %v4321 = vcombine.high %v4305, %v4305
    %v4322 = vcombine.high %v4312, %v4312
    %v4323 = vcombine.high %v4319, %v4319
    %v4324 = vcombine.high %v4020, %v4020
    %v4326 = vunpack.c.l.s4 1966171168
    %v4327 = vunpack.c.0.s8 %v4326
    %v4328 = vlaneseq
    %v4329 = vshrl.u32 %v4328, 7
    %v4330 = vsub.s32 %v4327, %v4329
    %v4331 = vrot.slane %v4020, %v4330
    %v4333 = vunpack.c.l.s4 1966171168
    %v4334 = vunpack.c.0.s8 %v4333
    %v4335 = vlaneseq
    %v4336 = vshrl.u32 %v4335, 7
    %v4337 = vsub.s32 %v4334, %v4336
    %v4338 = vrot.slane %v4324, %v4337
    %v4339 = vcombine.high %v4331, %v4331
    %v4340 = vcombine.high %v4338, %v4338
    %v4342 = vunpack.c.l.s4 1966171168
    %v4343 = vunpack.c.0.s8 %v4342
    %v4344 = vlaneseq
    %v4345 = vshrl.u32 %v4344, 7
    %v4346 = vsub.s32 %v4343, %v4345
    %v4347 = vrot.slane %v4331, %v4346
    %v4349 = vunpack.c.l.s4 1966171168
    %v4350 = vunpack.c.0.s8 %v4349
    %v4351 = vlaneseq
    %v4352 = vshrl.u32 %v4351, 7
    %v4353 = vsub.s32 %v4350, %v4352
    %v4354 = vrot.slane %v4338, %v4353
    %v4356 = vunpack.c.l.s4 1966171168
    %v4357 = vunpack.c.0.s8 %v4356
    %v4358 = vlaneseq
    %v4359 = vshrl.u32 %v4358, 7
    %v4360 = vsub.s32 %v4357, %v4359
    %v4361 = vrot.slane %v4339, %v4360
    %v4363 = vunpack.c.l.s4 1966171168
    %v4364 = vunpack.c.0.s8 %v4363
    %v4365 = vlaneseq
    %v4366 = vshrl.u32 %v4365, 7
    %v4367 = vsub.s32 %v4364, %v4366
    %v4368 = vrot.slane %v4340, %v4367
    %v4369 = vcombine.high %v4347, %v4347
    %v4370 = vcombine.high %v4354, %v4354
    %v4371 = vcombine.high %v4361, %v4361
    %v4372 = vcombine.high %v4368, %v4368
    %v4373 = vcombine.high %v4025, %v4025
    %v4375 = vunpack.c.l.s4 1966171168
    %v4376 = vunpack.c.0.s8 %v4375
    %v4377 = vlaneseq
    %v4378 = vshrl.u32 %v4377, 7
    %v4379 = vsub.s32 %v4376, %v4378
    %v4380 = vrot.slane %v4025, %v4379
    %v4382 = vunpack.c.l.s4 1966171168
    %v4383 = vunpack.c.0.s8 %v4382
    %v4384 = vlaneseq
    %v4385 = vshrl.u32 %v4384, 7
    %v4386 = vsub.s32 %v4383, %v4385
    %v4387 = vrot.slane %v4373, %v4386
    %v4388 = vcombine.high %v4380, %v4380
    %v4389 = vcombine.high %v4387, %v4387
    %v4391 = vunpack.c.l.s4 1966171168
    %v4392 = vunpack.c.0.s8 %v4391
    %v4393 = vlaneseq
    %v4394 = vshrl.u32 %v4393, 7
    %v4395 = vsub.s32 %v4392, %v4394
    %v4396 = vrot.slane %v4380, %v4395
    %v4398 = vunpack.c.l.s4 1966171168
    %v4399 = vunpack.c.0.s8 %v4398
    %v4400 = vlaneseq
    %v4401 = vshrl.u32 %v4400, 7
    %v4402 = vsub.s32 %v4399, %v4401
    %v4403 = vrot.slane %v4387, %v4402
    %v4405 = vunpack.c.l.s4 1966171168
    %v4406 = vunpack.c.0.s8 %v4405
    %v4407 = vlaneseq
    %v4408 = vshrl.u32 %v4407, 7
    %v4409 = vsub.s32 %v4406, %v4408
    %v4410 = vrot.slane %v4388, %v4409
    %v4412 = vunpack.c.l.s4 1966171168
    %v4413 = vunpack.c.0.s8 %v4412
    %v4414 = vlaneseq
    %v4415 = vshrl.u32 %v4414, 7
    %v4416 = vsub.s32 %v4413, %v4415
    %v4417 = vrot.slane %v4389, %v4416
    %v4418 = vcombine.high %v4396, %v4396
    %v4419 = vcombine.high %v4403, %v4403
    %v4420 = vcombine.high %v4410, %v4410
    %v4421 = vcombine.high %v4417, %v4417
    %v4422 = vcombine.high %v4028, %v4028
    %v4424 = vunpack.c.l.s4 1966171168
    %v4425 = vunpack.c.0.s8 %v4424
    %v4426 = vlaneseq
    %v4427 = vshrl.u32 %v4426, 7
    %v4428 = vsub.s32 %v4425, %v4427
    %v4429 = vrot.slane %v4028, %v4428
    %v4431 = vunpack.c.l.s4 1966171168
    %v4432 = vunpack.c.0.s8 %v4431
    %v4433 = vlaneseq
    %v4434 = vshrl.u32 %v4433, 7
    %v4435 = vsub.s32 %v4432, %v4434
    %v4436 = vrot.slane %v4422, %v4435
    %v4437 = vcombine.high %v4429, %v4429
    %v4438 = vcombine.high %v4436, %v4436
    %v4440 = vunpack.c.l.s4 1966171168
    %v4441 = vunpack.c.0.s8 %v4440
    %v4442 = vlaneseq
    %v4443 = vshrl.u32 %v4442, 7
    %v4444 = vsub.s32 %v4441, %v4443
    %v4445 = vrot.slane %v4429, %v4444
    %v4447 = vunpack.c.l.s4 1966171168
    %v4448 = vunpack.c.0.s8 %v4447
    %v4449 = vlaneseq
    %v4450 = vshrl.u32 %v4449, 7
    %v4451 = vsub.s32 %v4448, %v4450
    %v4452 = vrot.slane %v4436, %v4451
    %v4454 = vunpack.c.l.s4 1966171168
    %v4455 = vunpack.c.0.s8 %v4454
    %v4456 = vlaneseq
    %v4457 = vshrl.u32 %v4456, 7
    %v4458 = vsub.s32 %v4455, %v4457
    %v4459 = vrot.slane %v4437, %v4458
    %v4461 = vunpack.c.l.s4 1966171168
    %v4462 = vunpack.c.0.s8 %v4461
    %v4463 = vlaneseq
    %v4464 = vshrl.u32 %v4463, 7
    %v4465 = vsub.s32 %v4462, %v4464
    %v4466 = vrot.slane %v4438, %v4465
    %v4467 = vcombine.high %v4445, %v4445
    %v4468 = vcombine.high %v4452, %v4452
    %v4469 = vcombine.high %v4459, %v4459
    %v4470 = vcombine.high %v4466, %v4466
    %v4471 = vcombine.high %v4033, %v4033
    %v4473 = vunpack.c.l.s4 1966171168
    %v4474 = vunpack.c.0.s8 %v4473
    %v4475 = vlaneseq
    %v4476 = vshrl.u32 %v4475, 7
    %v4477 = vsub.s32 %v4474, %v4476
    %v4478 = vrot.slane %v4033, %v4477
    %v4480 = vunpack.c.l.s4 1966171168
    %v4481 = vunpack.c.0.s8 %v4480
    %v4482 = vlaneseq
    %v4483 = vshrl.u32 %v4482, 7
    %v4484 = vsub.s32 %v4481, %v4483
    %v4485 = vrot.slane %v4471, %v4484
    %v4486 = vcombine.high %v4478, %v4478
    %v4487 = vcombine.high %v4485, %v4485
    %v4489 = vunpack.c.l.s4 1966171168
    %v4490 = vunpack.c.0.s8 %v4489
    %v4491 = vlaneseq
    %v4492 = vshrl.u32 %v4491, 7
    %v4493 = vsub.s32 %v4490, %v4492
    %v4494 = vrot.slane %v4478, %v4493
    %v4496 = vunpack.c.l.s4 1966171168
    %v4497 = vunpack.c.0.s8 %v4496
    %v4498 = vlaneseq
    %v4499 = vshrl.u32 %v4498, 7
    %v4500 = vsub.s32 %v4497, %v4499
    %v4501 = vrot.slane %v4485, %v4500
    %v4503 = vunpack.c.l.s4 1966171168
    %v4504 = vunpack.c.0.s8 %v4503
    %v4505 = vlaneseq
    %v4506 = vshrl.u32 %v4505, 7
    %v4507 = vsub.s32 %v4504, %v4506
    %v4508 = vrot.slane %v4486, %v4507
    %v4510 = vunpack.c.l.s4 1966171168
    %v4511 = vunpack.c.0.s8 %v4510
    %v4512 = vlaneseq
    %v4513 = vshrl.u32 %v4512, 7
    %v4514 = vsub.s32 %v4511, %v4513
    %v4515 = vrot.slane %v4487, %v4514
    %v4516 = vcombine.high %v4494, %v4494
    %v4517 = vcombine.high %v4501, %v4501
    %v4518 = vcombine.high %v4508, %v4508
    %v4519 = vcombine.high %v4515, %v4515
    %v4520 = vcombine.high %v4036, %v4036
    %v4522 = vunpack.c.l.s4 1966171168
    %v4523 = vunpack.c.0.s8 %v4522
    %v4524 = vlaneseq
    %v4525 = vshrl.u32 %v4524, 7
    %v4526 = vsub.s32 %v4523, %v4525
    %v4527 = vrot.slane %v4036, %v4526
    %v4529 = vunpack.c.l.s4 1966171168
    %v4530 = vunpack.c.0.s8 %v4529
    %v4531 = vlaneseq
    %v4532 = vshrl.u32 %v4531, 7
    %v4533 = vsub.s32 %v4530, %v4532
    %v4534 = vrot.slane %v4520, %v4533
    %v4535 = vcombine.high %v4527, %v4527
    %v4536 = vcombine.high %v4534, %v4534
    %v4538 = vunpack.c.l.s4 1966171168
    %v4539 = vunpack.c.0.s8 %v4538
    %v4540 = vlaneseq
    %v4541 = vshrl.u32 %v4540, 7
    %v4542 = vsub.s32 %v4539, %v4541
    %v4543 = vrot.slane %v4527, %v4542
    %v4545 = vunpack.c.l.s4 1966171168
    %v4546 = vunpack.c.0.s8 %v4545
    %v4547 = vlaneseq
    %v4548 = vshrl.u32 %v4547, 7
    %v4549 = vsub.s32 %v4546, %v4548
    %v4550 = vrot.slane %v4534, %v4549
    %v4552 = vunpack.c.l.s4 1966171168
    %v4553 = vunpack.c.0.s8 %v4552
    %v4554 = vlaneseq
    %v4555 = vshrl.u32 %v4554, 7
    %v4556 = vsub.s32 %v4553, %v4555
    %v4557 = vrot.slane %v4535, %v4556
    %v4559 = vunpack.c.l.s4 1966171168
    %v4560 = vunpack.c.0.s8 %v4559
    %v4561 = vlaneseq
    %v4562 = vshrl.u32 %v4561, 7
    %v4563 = vsub.s32 %v4560, %v4562
    %v4564 = vrot.slane %v4536, %v4563
    %v4565 = vcombine.high %v4543, %v4543
    %v4566 = vcombine.high %v4550, %v4550
    %v4567 = vcombine.high %v4557, %v4557
    %v4568 = vcombine.high %v4564, %v4564
    %v4569 = vcombine.high %v4041, %v4041
    %v4571 = vunpack.c.l.s4 1966171168
    %v4572 = vunpack.c.0.s8 %v4571
    %v4573 = vlaneseq
    %v4574 = vshrl.u32 %v4573, 7
    %v4575 = vsub.s32 %v4572, %v4574
    %v4576 = vrot.slane %v4041, %v4575
    %v4578 = vunpack.c.l.s4 1966171168
    %v4579 = vunpack.c.0.s8 %v4578
    %v4580 = vlaneseq
    %v4581 = vshrl.u32 %v4580, 7
    %v4582 = vsub.s32 %v4579, %v4581
    %v4583 = vrot.slane %v4569, %v4582
    %v4584 = vcombine.high %v4576, %v4576
    %v4585 = vcombine.high %v4583, %v4583
    %v4587 = vunpack.c.l.s4 1966171168
    %v4588 = vunpack.c.0.s8 %v4587
    %v4589 = vlaneseq
    %v4590 = vshrl.u32 %v4589, 7
    %v4591 = vsub.s32 %v4588, %v4590
    %v4592 = vrot.slane %v4576, %v4591
    %v4594 = vunpack.c.l.s4 1966171168
    %v4595 = vunpack.c.0.s8 %v4594
    %v4596 = vlaneseq
    %v4597 = vshrl.u32 %v4596, 7
    %v4598 = vsub.s32 %v4595, %v4597
    %v4599 = vrot.slane %v4583, %v4598
    %v4601 = vunpack.c.l.s4 1966171168
    %v4602 = vunpack.c.0.s8 %v4601
    %v4603 = vlaneseq
    %v4604 = vshrl.u32 %v4603, 7
    %v4605 = vsub.s32 %v4602, %v4604
    %v4606 = vrot.slane %v4584, %v4605
    %v4608 = vunpack.c.l.s4 1966171168
    %v4609 = vunpack.c.0.s8 %v4608
    %v4610 = vlaneseq
    %v4611 = vshrl.u32 %v4610, 7
    %v4612 = vsub.s32 %v4609, %v4611
    %v4613 = vrot.slane %v4585, %v4612
    %v4614 = vcombine.high %v4592, %v4592
    %v4615 = vcombine.high %v4599, %v4599
    %v4616 = vcombine.high %v4606, %v4606
    %v4617 = vcombine.high %v4613, %v4613
    %v4618 = vcombine.high %v4044, %v4044
    %v4620 = vunpack.c.l.s4 1966171168
    %v4621 = vunpack.c.0.s8 %v4620
    %v4622 = vlaneseq
    %v4623 = vshrl.u32 %v4622, 7
    %v4624 = vsub.s32 %v4621, %v4623
    %v4625 = vrot.slane %v4044, %v4624
    %v4627 = vunpack.c.l.s4 1966171168
    %v4628 = vunpack.c.0.s8 %v4627
    %v4629 = vlaneseq
    %v4630 = vshrl.u32 %v4629, 7
    %v4631 = vsub.s32 %v4628, %v4630
    %v4632 = vrot.slane %v4618, %v4631
    %v4633 = vcombine.high %v4625, %v4625
    %v4634 = vcombine.high %v4632, %v4632
    %v4636 = vunpack.c.l.s4 1966171168
    %v4637 = vunpack.c.0.s8 %v4636
    %v4638 = vlaneseq
    %v4639 = vshrl.u32 %v4638, 7
    %v4640 = vsub.s32 %v4637, %v4639
    %v4641 = vrot.slane %v4625, %v4640
    %v4643 = vunpack.c.l.s4 1966171168
    %v4644 = vunpack.c.0.s8 %v4643
    %v4645 = vlaneseq
    %v4646 = vshrl.u32 %v4645, 7
    %v4647 = vsub.s32 %v4644, %v4646
    %v4648 = vrot.slane %v4632, %v4647
    %v4650 = vunpack.c.l.s4 1966171168
    %v4651 = vunpack.c.0.s8 %v4650
    %v4652 = vlaneseq
    %v4653 = vshrl.u32 %v4652, 7
    %v4654 = vsub.s32 %v4651, %v4653
    %v4655 = vrot.slane %v4633, %v4654
    %v4657 = vunpack.c.l.s4 1966171168
    %v4658 = vunpack.c.0.s8 %v4657
    %v4659 = vlaneseq
    %v4660 = vshrl.u32 %v4659, 7
    %v4661 = vsub.s32 %v4658, %v4660
    %v4662 = vrot.slane %v4634, %v4661
    %v4663 = vcombine.high %v4641, %v4641
    %v4664 = vcombine.high %v4648, %v4648
    %v4665 = vcombine.high %v4655, %v4655
    %v4666 = vcombine.high %v4662, %v4662
    %v4667 = vcombine.high %v4049, %v4049
    %v4669 = vunpack.c.l.s4 1966171168
    %v4670 = vunpack.c.0.s8 %v4669
    %v4671 = vlaneseq
    %v4672 = vshrl.u32 %v4671, 7
    %v4673 = vsub.s32 %v4670, %v4672
    %v4674 = vrot.slane %v4049, %v4673
    %v4676 = vunpack.c.l.s4 1966171168
    %v4677 = vunpack.c.0.s8 %v4676
    %v4678 = vlaneseq
    %v4679 = vshrl.u32 %v4678, 7
    %v4680 = vsub.s32 %v4677, %v4679
    %v4681 = vrot.slane %v4667, %v4680
    %v4682 = vcombine.high %v4674, %v4674
    %v4683 = vcombine.high %v4681, %v4681
    %v4685 = vunpack.c.l.s4 1966171168
    %v4686 = vunpack.c.0.s8 %v4685
    %v4687 = vlaneseq
    %v4688 = vshrl.u32 %v4687, 7
    %v4689 = vsub.s32 %v4686, %v4688
    %v4690 = vrot.slane %v4674, %v4689
    %v4692 = vunpack.c.l.s4 1966171168
    %v4693 = vunpack.c.0.s8 %v4692
    %v4694 = vlaneseq
    %v4695 = vshrl.u32 %v4694, 7
    %v4696 = vsub.s32 %v4693, %v4695
    %v4697 = vrot.slane %v4681, %v4696
    %v4699 = vunpack.c.l.s4 1966171168
    %v4700 = vunpack.c.0.s8 %v4699
    %v4701 = vlaneseq
    %v4702 = vshrl.u32 %v4701, 7
    %v4703 = vsub.s32 %v4700, %v4702
    %v4704 = vrot.slane %v4682, %v4703
    %v4706 = vunpack.c.l.s4 1966171168
    %v4707 = vunpack.c.0.s8 %v4706
    %v4708 = vlaneseq
    %v4709 = vshrl.u32 %v4708, 7
    %v4710 = vsub.s32 %v4707, %v4709
    %v4711 = vrot.slane %v4683, %v4710
    %v4712 = vcombine.high %v4690, %v4690
    %v4713 = vcombine.high %v4697, %v4697
    %v4714 = vcombine.high %v4704, %v4704
    %v4715 = vcombine.high %v4711, %v4711
    %v4716 = vcombine.high %v4052, %v4052
    %v4718 = vunpack.c.l.s4 1966171168
    %v4719 = vunpack.c.0.s8 %v4718
    %v4720 = vlaneseq
    %v4721 = vshrl.u32 %v4720, 7
    %v4722 = vsub.s32 %v4719, %v4721
    %v4723 = vrot.slane %v4052, %v4722
    %v4725 = vunpack.c.l.s4 1966171168
    %v4726 = vunpack.c.0.s8 %v4725
    %v4727 = vlaneseq
    %v4728 = vshrl.u32 %v4727, 7
    %v4729 = vsub.s32 %v4726, %v4728
    %v4730 = vrot.slane %v4716, %v4729
    %v4731 = vcombine.high %v4723, %v4723
    %v4732 = vcombine.high %v4730, %v4730
    %v4734 = vunpack.c.l.s4 1966171168
    %v4735 = vunpack.c.0.s8 %v4734
    %v4736 = vlaneseq
    %v4737 = vshrl.u32 %v4736, 7
    %v4738 = vsub.s32 %v4735, %v4737
    %v4739 = vrot.slane %v4723, %v4738
    %v4741 = vunpack.c.l.s4 1966171168
    %v4742 = vunpack.c.0.s8 %v4741
    %v4743 = vlaneseq
    %v4744 = vshrl.u32 %v4743, 7
    %v4745 = vsub.s32 %v4742, %v4744
    %v4746 = vrot.slane %v4730, %v4745
    %v4748 = vunpack.c.l.s4 1966171168
    %v4749 = vunpack.c.0.s8 %v4748
    %v4750 = vlaneseq
    %v4751 = vshrl.u32 %v4750, 7
    %v4752 = vsub.s32 %v4749, %v4751
    %v4753 = vrot.slane %v4731, %v4752
    %v4755 = vunpack.c.l.s4 1966171168
    %v4756 = vunpack.c.0.s8 %v4755
    %v4757 = vlaneseq
    %v4758 = vshrl.u32 %v4757, 7
    %v4759 = vsub.s32 %v4756, %v4758
    %v4760 = vrot.slane %v4732, %v4759
    %v4761 = vcombine.high %v4739, %v4739
    %v4762 = vcombine.high %v4746, %v4746
    %v4763 = vcombine.high %v4753, %v4753
    %v4764 = vcombine.high %v4760, %v4760
    %v4765 = vcombine.high %v4057, %v4057
    %v4767 = vunpack.c.l.s4 1966171168
    %v4768 = vunpack.c.0.s8 %v4767
    %v4769 = vlaneseq
    %v4770 = vshrl.u32 %v4769, 7
    %v4771 = vsub.s32 %v4768, %v4770
    %v4772 = vrot.slane %v4057, %v4771
    %v4774 = vunpack.c.l.s4 1966171168
    %v4775 = vunpack.c.0.s8 %v4774
    %v4776 = vlaneseq
    %v4777 = vshrl.u32 %v4776, 7
    %v4778 = vsub.s32 %v4775, %v4777
    %v4779 = vrot.slane %v4765, %v4778
    %v4780 = vcombine.high %v4772, %v4772
    %v4781 = vcombine.high %v4779, %v4779
    %v4783 = vunpack.c.l.s4 1966171168
    %v4784 = vunpack.c.0.s8 %v4783
    %v4785 = vlaneseq
    %v4786 = vshrl.u32 %v4785, 7
    %v4787 = vsub.s32 %v4784, %v4786
    %v4788 = vrot.slane %v4772, %v4787
    %v4790 = vunpack.c.l.s4 1966171168
    %v4791 = vunpack.c.0.s8 %v4790
    %v4792 = vlaneseq
    %v4793 = vshrl.u32 %v4792, 7
    %v4794 = vsub.s32 %v4791, %v4793
    %v4795 = vrot.slane %v4779, %v4794
    %v4797 = vunpack.c.l.s4 1966171168
    %v4798 = vunpack.c.0.s8 %v4797
    %v4799 = vlaneseq
    %v4800 = vshrl.u32 %v4799, 7
    %v4801 = vsub.s32 %v4798, %v4800
    %v4802 = vrot.slane %v4780, %v4801
    %v4804 = vunpack.c.l.s4 1966171168
    %v4805 = vunpack.c.0.s8 %v4804
    %v4806 = vlaneseq
    %v4807 = vshrl.u32 %v4806, 7
    %v4808 = vsub.s32 %v4805, %v4807
    %v4809 = vrot.slane %v4781, %v4808
    %v4810 = vcombine.high %v4788, %v4788
    %v4811 = vcombine.high %v4795, %v4795
    %v4812 = vcombine.high %v4802, %v4802
    %v4813 = vcombine.high %v4809, %v4809
    %v4814 = vcombine.high %v4060, %v4060
    %v4816 = vunpack.c.l.s4 1966171168
    %v4817 = vunpack.c.0.s8 %v4816
    %v4818 = vlaneseq
    %v4819 = vshrl.u32 %v4818, 7
    %v4820 = vsub.s32 %v4817, %v4819
    %v4821 = vrot.slane %v4060, %v4820
    %v4823 = vunpack.c.l.s4 1966171168
    %v4824 = vunpack.c.0.s8 %v4823
    %v4825 = vlaneseq
    %v4826 = vshrl.u32 %v4825, 7
    %v4827 = vsub.s32 %v4824, %v4826
    %v4828 = vrot.slane %v4814, %v4827
    %v4829 = vcombine.high %v4821, %v4821
    %v4830 = vcombine.high %v4828, %v4828
    %v4832 = vunpack.c.l.s4 1966171168
    %v4833 = vunpack.c.0.s8 %v4832
    %v4834 = vlaneseq
    %v4835 = vshrl.u32 %v4834, 7
    %v4836 = vsub.s32 %v4833, %v4835
    %v4837 = vrot.slane %v4821, %v4836
    %v4839 = vunpack.c.l.s4 1966171168
    %v4840 = vunpack.c.0.s8 %v4839
    %v4841 = vlaneseq
    %v4842 = vshrl.u32 %v4841, 7
    %v4843 = vsub.s32 %v4840, %v4842
    %v4844 = vrot.slane %v4828, %v4843
    %v4846 = vunpack.c.l.s4 1966171168
    %v4847 = vunpack.c.0.s8 %v4846
    %v4848 = vlaneseq
    %v4849 = vshrl.u32 %v4848, 7
    %v4850 = vsub.s32 %v4847, %v4849
    %v4851 = vrot.slane %v4829, %v4850
    %v4853 = vunpack.c.l.s4 1966171168
    %v4854 = vunpack.c.0.s8 %v4853
    %v4855 = vlaneseq
    %v4856 = vshrl.u32 %v4855, 7
    %v4857 = vsub.s32 %v4854, %v4856
    %v4858 = vrot.slane %v4830, %v4857
    %v4859 = vcombine.high %v4837, %v4837
    %v4860 = vcombine.high %v4844, %v4844
    %v4861 = vcombine.high %v4851, %v4851
    %v4862 = vcombine.high %v4858, %v4858
    %4991 = vst [vmem:[#allocation3] sm:$0x1] %v4102
    %4992 = vst [vmem:[#allocation3 + $0x1] sm:$0x1] %v4116
    %4993 = vst [vmem:[#allocation3 + $0x2] sm:$0x1] %v4124
    %4994 = vst [vmem:[#allocation3 + $0x3] sm:$0x1] %v4126
    %4995 = vst [vmem:[#allocation3 + $0x4] sm:$0x1] %v4109
    %4996 = vst [vmem:[#allocation3 + $0x5] sm:$0x1] %v4123
    %4997 = vst [vmem:[#allocation3 + $0x6] sm:$0x1] %v4125
    %4998 = vst [vmem:[#allocation3 + $0x7] sm:$0x1] %v4127
    %4999 = vst [vmem:[#allocation3 + $0x8] sm:$0x1] %v4151
    %5000 = vst [vmem:[#allocation3 + $0x9] sm:$0x1] %v4165
    %5001 = vst [vmem:[#allocation3 + $0xa] sm:$0x1] %v4173
    %5002 = vst [vmem:[#allocation3 + $0xb] sm:$0x1] %v4175
    %5003 = vst [vmem:[#allocation3 + $0xc] sm:$0x1] %v4158
    %5004 = vst [vmem:[#allocation3 + $0xd] sm:$0x1] %v4172
    %5005 = vst [vmem:[#allocation3 + $0xe] sm:$0x1] %v4174
    %5006 = vst [vmem:[#allocation3 + $0xf] sm:$0x1] %v4176
    %5007 = vst [vmem:[#allocation3 + $0x10] sm:$0x1] %v4200
    %5008 = vst [vmem:[#allocation3 + $0x11] sm:$0x1] %v4214
    %5009 = vst [vmem:[#allocation3 + $0x12] sm:$0x1] %v4222
    %5010 = vst [vmem:[#allocation3 + $0x13] sm:$0x1] %v4224
    %5011 = vst [vmem:[#allocation3 + $0x14] sm:$0x1] %v4207
    %5012 = vst [vmem:[#allocation3 + $0x15] sm:$0x1] %v4221
    %5013 = vst [vmem:[#allocation3 + $0x16] sm:$0x1] %v4223
    %5014 = vst [vmem:[#allocation3 + $0x17] sm:$0x1] %v4225
    %5015 = vst [vmem:[#allocation3 + $0x18] sm:$0x1] %v4249
    %5016 = vst [vmem:[#allocation3 + $0x19] sm:$0x1] %v4263
    %5017 = vst [vmem:[#allocation3 + $0x1a] sm:$0x1] %v4271
    %5018 = vst [vmem:[#allocation3 + $0x1b] sm:$0x1] %v4273
    %5019 = vst [vmem:[#allocation3 + $0x1c] sm:$0x1] %v4256
    %5020 = vst [vmem:[#allocation3 + $0x1d] sm:$0x1] %v4270
    %5021 = vst [vmem:[#allocation3 + $0x1e] sm:$0x1] %v4272
    %5022 = vst [vmem:[#allocation3 + $0x1f] sm:$0x1] %v4274
    %5023 = vst [vmem:[#allocation3 + $0x20] sm:$0x1] %v4298
    %5024 = vst [vmem:[#allocation3 + $0x21] sm:$0x1] %v4312
    %5025 = vst [vmem:[#allocation3 + $0x22] sm:$0x1] %v4320
    %5026 = vst [vmem:[#allocation3 + $0x23] sm:$0x1] %v4322
    %5027 = vst [vmem:[#allocation3 + $0x24] sm:$0x1] %v4305
    %5028 = vst [vmem:[#allocation3 + $0x25] sm:$0x1] %v4319
    %5029 = vst [vmem:[#allocation3 + $0x26] sm:$0x1] %v4321
    %5030 = vst [vmem:[#allocation3 + $0x27] sm:$0x1] %v4323
    %5031 = vst [vmem:[#allocation3 + $0x28] sm:$0x1] %v4347
    %5032 = vst [vmem:[#allocation3 + $0x29] sm:$0x1] %v4361
    %5033 = vst [vmem:[#allocation3 + $0x2a] sm:$0x1] %v4369
    %5034 = vst [vmem:[#allocation3 + $0x2b] sm:$0x1] %v4371
    %5035 = vst [vmem:[#allocation3 + $0x2c] sm:$0x1] %v4354
    %5036 = vst [vmem:[#allocation3 + $0x2d] sm:$0x1] %v4368
    %5037 = vst [vmem:[#allocation3 + $0x2e] sm:$0x1] %v4370
    %5038 = vst [vmem:[#allocation3 + $0x2f] sm:$0x1] %v4372
    %5039 = vst [vmem:[#allocation3 + $0x30] sm:$0x1] %v4396
    %5040 = vst [vmem:[#allocation3 + $0x31] sm:$0x1] %v4410
    %5041 = vst [vmem:[#allocation3 + $0x32] sm:$0x1] %v4418
    %5042 = vst [vmem:[#allocation3 + $0x33] sm:$0x1] %v4420
    %5043 = vst [vmem:[#allocation3 + $0x34] sm:$0x1] %v4403
    %5044 = vst [vmem:[#allocation3 + $0x35] sm:$0x1] %v4417
    %5045 = vst [vmem:[#allocation3 + $0x36] sm:$0x1] %v4419
    %5046 = vst [vmem:[#allocation3 + $0x37] sm:$0x1] %v4421
    %5047 = vst [vmem:[#allocation3 + $0x38] sm:$0x1] %v4445
    %5048 = vst [vmem:[#allocation3 + $0x39] sm:$0x1] %v4459
    %5049 = vst [vmem:[#allocation3 + $0x3a] sm:$0x1] %v4467
    %5050 = vst [vmem:[#allocation3 + $0x3b] sm:$0x1] %v4469
    %5051 = vst [vmem:[#allocation3 + $0x3c] sm:$0x1] %v4452
    %5052 = vst [vmem:[#allocation3 + $0x3d] sm:$0x1] %v4466
    %5053 = vst [vmem:[#allocation3 + $0x3e] sm:$0x1] %v4468
    %5054 = vst [vmem:[#allocation3 + $0x3f] sm:$0x1] %v4470
    %5055 = vst [vmem:[#allocation3 + $0x40] sm:$0x1] %v4494
    %5056 = vst [vmem:[#allocation3 + $0x41] sm:$0x1] %v4508
    %5057 = vst [vmem:[#allocation3 + $0x42] sm:$0x1] %v4516
    %5058 = vst [vmem:[#allocation3 + $0x43] sm:$0x1] %v4518
    %5059 = vst [vmem:[#allocation3 + $0x44] sm:$0x1] %v4501
    %5060 = vst [vmem:[#allocation3 + $0x45] sm:$0x1] %v4515
    %5061 = vst [vmem:[#allocation3 + $0x46] sm:$0x1] %v4517
    %5062 = vst [vmem:[#allocation3 + $0x47] sm:$0x1] %v4519
    %5063 = vst [vmem:[#allocation3 + $0x48] sm:$0x1] %v4543
    %5064 = vst [vmem:[#allocation3 + $0x49] sm:$0x1] %v4557
    %5065 = vst [vmem:[#allocation3 + $0x4a] sm:$0x1] %v4565
    %5066 = vst [vmem:[#allocation3 + $0x4b] sm:$0x1] %v4567
    %5067 = vst [vmem:[#allocation3 + $0x4c] sm:$0x1] %v4550
    %5068 = vst [vmem:[#allocation3 + $0x4d] sm:$0x1] %v4564
    %5069 = vst [vmem:[#allocation3 + $0x4e] sm:$0x1] %v4566
    %5070 = vst [vmem:[#allocation3 + $0x4f] sm:$0x1] %v4568
    %5071 = vst [vmem:[#allocation3 + $0x50] sm:$0x1] %v4592
    %5072 = vst [vmem:[#allocation3 + $0x51] sm:$0x1] %v4606
    %5073 = vst [vmem:[#allocation3 + $0x52] sm:$0x1] %v4614
    %5074 = vst [vmem:[#allocation3 + $0x53] sm:$0x1] %v4616
    %5075 = vst [vmem:[#allocation3 + $0x54] sm:$0x1] %v4599
    %5076 = vst [vmem:[#allocation3 + $0x55] sm:$0x1] %v4613
    %5077 = vst [vmem:[#allocation3 + $0x56] sm:$0x1] %v4615
    %5078 = vst [vmem:[#allocation3 + $0x57] sm:$0x1] %v4617
    %5079 = vst [vmem:[#allocation3 + $0x58] sm:$0x1] %v4641
    %5080 = vst [vmem:[#allocation3 + $0x59] sm:$0x1] %v4655
    %5081 = vst [vmem:[#allocation3 + $0x5a] sm:$0x1] %v4663
    %5082 = vst [vmem:[#allocation3 + $0x5b] sm:$0x1] %v4665
    %5083 = vst [vmem:[#allocation3 + $0x5c] sm:$0x1] %v4648
    %5084 = vst [vmem:[#allocation3 + $0x5d] sm:$0x1] %v4662
    %5085 = vst [vmem:[#allocation3 + $0x5e] sm:$0x1] %v4664
    %5086 = vst [vmem:[#allocation3 + $0x5f] sm:$0x1] %v4666
    %5087 = vst [vmem:[#allocation3 + $0x60] sm:$0x1] %v4690
    %5088 = vst [vmem:[#allocation3 + $0x61] sm:$0x1] %v4704
    %5089 = vst [vmem:[#allocation3 + $0x62] sm:$0x1] %v4712
    %5090 = vst [vmem:[#allocation3 + $0x63] sm:$0x1] %v4714
    %5091 = vst [vmem:[#allocation3 + $0x64] sm:$0x1] %v4697
    %5092 = vst [vmem:[#allocation3 + $0x65] sm:$0x1] %v4711
    %5093 = vst [vmem:[#allocation3 + $0x66] sm:$0x1] %v4713
    %5094 = vst [vmem:[#allocation3 + $0x67] sm:$0x1] %v4715
    %5095 = vst [vmem:[#allocation3 + $0x68] sm:$0x1] %v4739
    %5096 = vst [vmem:[#allocation3 + $0x69] sm:$0x1] %v4753
    %5097 = vst [vmem:[#allocation3 + $0x6a] sm:$0x1] %v4761
    %5098 = vst [vmem:[#allocation3 + $0x6b] sm:$0x1] %v4763
    %5099 = vst [vmem:[#allocation3 + $0x6c] sm:$0x1] %v4746
    %5100 = vst [vmem:[#allocation3 + $0x6d] sm:$0x1] %v4760
    %5101 = vst [vmem:[#allocation3 + $0x6e] sm:$0x1] %v4762
    %5102 = vst [vmem:[#allocation3 + $0x6f] sm:$0x1] %v4764
    %5103 = vst [vmem:[#allocation3 + $0x70] sm:$0x1] %v4788
    %5104 = vst [vmem:[#allocation3 + $0x71] sm:$0x1] %v4802
    %5105 = vst [vmem:[#allocation3 + $0x72] sm:$0x1] %v4810
    %5106 = vst [vmem:[#allocation3 + $0x73] sm:$0x1] %v4812
    %5107 = vst [vmem:[#allocation3 + $0x74] sm:$0x1] %v4795
    %5108 = vst [vmem:[#allocation3 + $0x75] sm:$0x1] %v4809
    %5109 = vst [vmem:[#allocation3 + $0x76] sm:$0x1] %v4811
    %5110 = vst [vmem:[#allocation3 + $0x77] sm:$0x1] %v4813
    %5111 = vst [vmem:[#allocation3 + $0x78] sm:$0x1] %v4837
    %5112 = vst [vmem:[#allocation3 + $0x79] sm:$0x1] %v4851
    %5113 = vst [vmem:[#allocation3 + $0x7a] sm:$0x1] %v4859
    %5114 = vst [vmem:[#allocation3 + $0x7b] sm:$0x1] %v4861
    %5115 = vst [vmem:[#allocation3 + $0x7c] sm:$0x1] %v4844
    %5116 = vst [vmem:[#allocation3 + $0x7d] sm:$0x1] %v4858
    %5117 = vst [vmem:[#allocation3 + $0x7e] sm:$0x1] %v4860
    %5118 = vst [vmem:[#allocation3 + $0x7f] sm:$0x1] %v4862
    // Predicated region
    $region14: #{_ipex_conv2d_forward_pallas.1} parent=1 // pred_check
      _
    $region15: #{_ipex_conv2d_forward_pallas.1} parent=1 // pred_check_branch
      %5120 = sbr.rel (0) target = $region17
    $region16: #{_ipex_conv2d_forward_pallas.1} parent=1 // pred_region
      %s5122 = ssub.s32 2048, 2048
      %5123 = vsyncadd [#allocation4], %s5122
      %s5124 = sshll.u32 [#allocation3], 4
      %s5125 = int_to_ptr.vmem [resolvable:$true] %s5124
      %5130 = dma.vmem_to_hbm [thread:$0]  %s5125, 2048, %s3, [#allocation4], 16, 16, 1
    $region17: #{_ipex_conv2d_forward_pallas.1} parent=1 // pred_fallthru
      _
    // Predicated region
    $region18: #{_ipex_conv2d_forward_pallas.1} parent=1 // pred_check
      _
    $region19: #{_ipex_conv2d_forward_pallas.1} parent=1 // pred_check_branch
      %5132 = sbr.rel (0) target = $region21
    $region20: #{_ipex_conv2d_forward_pallas.1} parent=1 // pred_region
      %5133 = dma.done [#allocation4], 2048
    $region21: #{_ipex_conv2d_forward_pallas.1} parent=1 // pred_fallthru
      _
    %5134 = vsyncpa [#allocation4], 1

</llo_original>
